<compile_context>
chip_gen: v7x
topology: tpu7x:2x2x1
jax: 0.10.0
libtpu: 0.0.40
codegen_flags: <defaults>
</compile_context>

<pallas_src>
import jax
import jax.numpy as jnp
from jax.experimental import pallas as pl
from jax.experimental.pallas import tpu as pltpu

LEAKY_SLOPE = 0.1


def _round_up(v, m):
    return (v + m - 1) // m * m


def _leaky(x):
    return jnp.where(x >= 0, x, LEAKY_SLOPE * x)


# ----------------------------------------------------------------------------
# Wrapper-side parameter re-layout (pure JAX, done once, exact: gathers only).
# ----------------------------------------------------------------------------
def expand_conv_weight(k, W):
    """HWIO (3, 3, Cin, Cout) -> banded (3*W*Cin, W*Cout) matrix B with

        B[dy*W*Cin + wi*Cin + ci, wo*Cout + co] = k[dy, wi - wo + 1, ci, co]
                                                  if |wi - wo| <= 1 else 0

    so a stride-1 'same' 3x3 conv on the flattened (H, W*Cin) layout becomes,
    per vertical tap dy, one matmul of the dy-shifted rows against the rows
    B[dy*W*Cin:(dy+1)*W*Cin].  W-direction zero padding is encoded by the
    band; the H-direction halo is supplied in-kernel via roll + row mask."""
    KH, KW, Cin, Cout = k.shape
    wi = jnp.arange(W)[:, None]                       # input column  w'
    wo = jnp.arange(W)[None, :]                       # output column w
    dx = wi - wo + (KW // 2)                          # (W, W)
    valid = (dx >= 0) & (dx < KW)
    g = k[:, jnp.clip(dx, 0, KW - 1), :, :]           # (KH, W, W, Cin, Cout)
    g = jnp.where(valid[None, :, :, None, None], g, 0.0)
    g = jnp.transpose(g, (0, 1, 3, 2, 4))             # (dy, wi, ci, wo, co)
    return g.reshape(KH * W * Cin, W * Cout)


# Bias-pack row assignment (one (16, max_width) slab per block).
_B11, _B12, _BCAT, _A1B2, _B21, _B22, _A2B2, _A1B1, _A2B1 = range(9)
_BIAS_ROWS = 16


def expand_dpcab_params(p, W):
    """Expand one DPCAB block's raw parameters into the fused-kernel layout."""
    nf1 = p["b1c1w"].shape[2]
    nf2 = p["b2c1w"].shape[2]
    r1 = p["ca1w1"].shape[1]
    r2 = p["ca2w1"].shape[1]
    r1p = _round_up(max(r1, 8), 8)
    r2p = _round_up(max(r2, 8), 8)
    wc1, wc2 = W * nf1, W * nf2
    maxw = max(wc1, wc2)

    def ec(k):
        return expand_conv_weight(k, W)

    def tb(b):                                        # (1, C) -> (W*C,)
        return jnp.tile(b, (1, W))[0]

    # CALayer 1x1 weights tiled over W: the (H, W) global average pool folds
    # into the kernel's H-row mean (1/W folded into w1) and the per-channel
    # scale comes out already broadcast to (1, W*C).  The bottleneck dim is
    # zero-padded up to a multiple of 8 lanes (padding is exact: zero rows /
    # zero bias -> zero contribution).
    a1w1 = jnp.zeros((wc1, r1p), jnp.float32).at[:, :r1].set(
        jnp.tile(p["ca1w1"], (W, 1)) / W)
    a1w2 = jnp.zeros((r1p, wc1), jnp.float32).at[:r1, :].set(
        jnp.tile(p["ca1w2"], (1, W)))
    a2w1 = jnp.zeros((wc2, r2p), jnp.float32).at[:, :r2].set(
        jnp.tile(p["ca2w1"], (W, 1)) / W)
    a2w2 = jnp.zeros((r2p, wc2), jnp.float32).at[:r2, :].set(
        jnp.tile(p["ca2w2"], (1, W)))

    bias = jnp.zeros((_BIAS_ROWS, maxw), jnp.float32)
    bias = bias.at[_B11, :wc1].set(tb(p["b1c1b"]))
    bias = bias.at[_B12, :wc1].set(tb(p["b1c2b"]))
    bias = bias.at[_BCAT, :wc1].set(tb(p["ca1cb"]))
    bias = bias.at[_A1B2, :wc1].set(tb(p["ca1b2"]))
    bias = bias.at[_B21, :wc2].set(tb(p["b2c1b"]))
    bias = bias.at[_B22, :wc2].set(tb(p["b2c2b"]))
    bias = bias.at[_A2B2, :wc2].set(tb(p["ca2b2"]))
    bias = bias.at[_A1B1, :r1].set(p["ca1b1"][0])
    bias = bias.at[_A2B1, :r2].set(p["ca2b1"][0])

    return (
        ec(p["b1c1w"]), ec(p["b1c2w"]), ec(p["b2c1w"]), ec(p["b2c2w"]),
        # concat-conv weight split along Cin: no (N,H,W,nf1+nf2) concat buffer
        ec(p["ca1cw"][:, :, :nf1, :]), ec(p["ca1cw"][:, :, nf1:, :]),
        a1w1, a1w2, a2w1, a2w2, bias,
    )


def expand_dpcag_params(params, W):
    """Per-block param dicts -> tuple of (nb, ...) stacked arrays."""
    per_block = [expand_dpcab_params(p, W) for p in params]
    return tuple(jnp.stack([pb[i] for pb in per_block], axis=0)
                 for i in range(len(per_block[0])))


# ----------------------------------------------------------------------------
# Fused DPCAG kernel.  Grid = (batch, block); activations stay in VMEM over
# the block axis.  Activations are (H, W*C) slabs, last dim multiple of 128.
# ----------------------------------------------------------------------------
def _dpcag_kernel(
    x0_ref, x1_ref,
    w11_ref, w12_ref, w21_ref, w22_ref,            # body1 / body2 banded convs
    wcaa_ref, wcab_ref,                            # CA_body1 concat conv (Cin split)
    a1w1_ref, a1w2_ref, a2w1_ref, a2w2_ref,        # CALayer dense weights (W-tiled)
    bias_ref,                                      # packed biases (1, 16, maxw)
    y0_ref, y1_ref,
    f0_scr, f1_scr):                               # VMEM-resident running activations
    f32 = jnp.float32
    H, wc1 = f0_scr.shape
    wc2 = f1_scr.shape[1]
    r1p = a1w1_ref.shape[2]
    r2p = a2w1_ref.shape[2]
    k = pl.program_id(1)

    @pl.when(k == 0)
    def _():
        f0_scr[...] = x0_ref[0].astype(f32)
        f1_scr[...] = x1_ref[0].astype(f32)

    def leaky(v):
        return jnp.where(v >= 0, v, LEAKY_SLOPE * v)

    def bias(row, width):
        return bias_ref[0, row:row + 1, :width]                    # (1, width)

    def halo_masks(width):
        rows = jax.lax.broadcasted_iota(jnp.int32, (H, width), 0)
        return rows > 0, rows < H - 1

    masks1 = halo_masks(wc1)
    masks2 = halo_masks(wc2)

    def conv3x3(x, w_ref, masks, b=None):
        """3x3 'same' conv on the flattened (H, W*Cin) layout: three
        accumulated MXU matmuls against per-dy weight slices; the vertical
        halo is built in-register with pltpu.roll (XLU) + a row mask."""
        wc = x.shape[1]
        m_up, m_dn = masks
        x_up = jnp.where(m_up, pltpu.roll(x, 1, axis=0), 0.0)       # x[h-1]
        x_dn = jnp.where(m_dn, pltpu.roll(x, H - 1, axis=0), 0.0)   # x[h+1]
        out = (jnp.dot(x_up, w_ref[0, :wc, :], preferred_element_type=f32)
               + jnp.dot(x, w_ref[0, wc:2 * wc, :], preferred_element_type=f32)
               + jnp.dot(x_dn, w_ref[0, 2 * wc:, :], preferred_element_type=f32))
        if b is not None:
            out = out + b
        return out                                                  # (H, W*Cout)

    def ca_scale(feat, w1_ref, b1, w2_ref, b2):
        """CALayer gate: sigmoid(relu(pool @ W1 + b1) @ W2 + b2) as (1, W*C)."""
        m = jnp.mean(feat, axis=0, keepdims=True)                   # (1, W*C)
        h1 = jnp.dot(m, w1_ref[0], preferred_element_type=f32) + b1
        h1 = jnp.maximum(h1, 0.0)
        z = jnp.dot(h1, w2_ref[0], preferred_element_type=f32) + b2
        return pl.reciprocal(1.0 + jnp.exp(-z), approx=True)        # (1, W*C)

    x0 = f0_scr[...]                                 # (H, W*nf1)
    x1 = f1_scr[...]                                 # (H, W*nf2)

    # body1 / body2: conv -> LeakyReLU(0.1) -> conv
    f1 = conv3x3(leaky(conv3x3(x0, w11_ref, masks1, bias(_B11, wc1))),
                 w12_ref, masks1, bias(_B12, wc1))
    f2 = conv3x3(leaky(conv3x3(x1, w21_ref, masks2, bias(_B21, wc2))),
                 w22_ref, masks2, bias(_B22, wc2))

    # CA_body1: LeakyReLU -> conv3x3 on channel-concat([f1, f2]) -> CALayer.
    # The concat never materializes: the weight is split along Cin.
    g = (conv3x3(leaky(f1), wcaa_ref, masks1)
         + conv3x3(leaky(f2), wcab_ref, masks2)
         + bias(_BCAT, wc1))
    s1 = ca_scale(g, a1w1_ref, bias(_A1B1, r1p), a1w2_ref, bias(_A1B2, wc1))
    out0 = x0 + g * s1

    # CA_body2: CALayer on f2.
    s2 = ca_scale(f2, a2w1_ref, bias(_A2B1, r2p), a2w2_ref, bias(_A2B2, wc2))
    out1 = x1 + f2 * s2

    f0_scr[...] = out0
    f1_scr[...] = out1

    @pl.when(k == pl.num_programs(1) - 1)
    def _():
        # DPCAG tail: y = body(x); y[i] = x[i] + y[i].  The PyTorch Sequential
        # mutates the list in place (y is x), so the output is doubled.
        y0_ref[0] = (out0 + out0).astype(y0_ref.dtype)
        y1_ref[0] = (out1 + out1).astype(y1_ref.dtype)


def dpcag_forward_pallas(x0, x1, stacked):
    """Whole DPCAG group as ONE pallas_call.  x0/x1 are (N, H, W*C)."""
    N, H, wc1 = x0.shape
    _, _, wc2 = x1.shape
    assert wc1 % 128 == 0 and wc2 % 128 == 0, "lane-dense layout needs W*C % 128 == 0"
    assert H % 8 == 0, "H must be a multiple of 8"
    nb = stacked[0].shape[0]

    def act_spec(width):
        # Block index constant over the block axis k: activations are fetched
        # once per batch element and stay resident for all nb blocks.
        return pl.BlockSpec((1, H, width), lambda n, k: (n, 0, 0))

    def par_spec(arr):
        # Per-block parameter: block index follows k (next block's weights are
        # prefetched while the current block computes).
        return pl.BlockSpec((1,) + arr.shape[1:], lambda n, k: (k, 0, 0))

    return pl.pallas_call(
        _dpcag_kernel,
        out_shape=(jax.ShapeDtypeStruct(x0.shape, x0.dtype),
                   jax.ShapeDtypeStruct(x1.shape, x1.dtype)),
        grid=(N, nb),
        in_specs=[act_spec(wc1), act_spec(wc2)] + [par_spec(a) for a in stacked],
        out_specs=(act_spec(wc1), act_spec(wc2)),
        scratch_shapes=[pltpu.VMEM((H, wc1), jnp.float32),
                        pltpu.VMEM((H, wc2), jnp.float32)],
        input_output_aliases={0: 0, 1: 1},
        compiler_params=pltpu.CompilerParams(
            dimension_semantics=("parallel", "arbitrary"),
            vmem_limit_bytes=48 * 1024 * 1024),
    )(x0, x1, *stacked)


# ----------------------------------------------------------------------------
# Pure-JAX reference (verification only).
# ----------------------------------------------------------------------------
def ref_conv3x3(x, w, b, *, pre_leaky=False, post_leaky=False):
    if pre_leaky:
        x = _leaky(x)
    y = jax.lax.conv_general_dilated(
        x, w, window_strides=(1, 1), padding="SAME",
        dimension_numbers=("NHWC", "HWIO", "NHWC"),
        precision=jax.lax.Precision.HIGHEST) + b.reshape(1, 1, 1, -1)
    if post_leaky:
        y = _leaky(y)
    return y


def ref_ca_residual(x, res, w1, b1, w2, b2):
    pooled = jnp.mean(x, axis=(1, 2))                     # (N, C)
    hi = jax.lax.Precision.HIGHEST
    h = jnp.maximum(jnp.dot(pooled, w1, precision=hi) + b1, 0.0)
    s = jax.nn.sigmoid(jnp.dot(h, w2, precision=hi) + b2)
    return res + x * s[:, None, None, :]


def ref_dpcab(x0, x1, p):
    f1 = ref_conv3x3(x0, p["b1c1w"], p["b1c1b"], post_leaky=True)
    f1 = ref_conv3x3(f1, p["b1c2w"], p["b1c2b"])
    f2 = ref_conv3x3(x1, p["b2c1w"], p["b2c1b"], post_leaky=True)
    f2 = ref_conv3x3(f2, p["b2c2w"], p["b2c2b"])
    cat = jnp.concatenate([f1, f2], axis=-1)
    g = ref_conv3x3(cat, p["ca1cw"], p["ca1cb"], pre_leaky=True)
    x0n = ref_ca_residual(g, x0, p["ca1w1"], p["ca1b1"], p["ca1w2"], p["ca1b2"])
    x1n = ref_ca_residual(f2, x1, p["ca2w1"], p["ca2b1"], p["ca2w2"], p["ca2b2"])
    return x0n, x1n


def ref_dpcag(x0, x1, params):
    y0, y1 = x0, x1
    for p in params:
        y0, y1 = ref_dpcab(y0, y1, p)
    # PyTorch list aliasing: the residual add doubles the body output.
    return y0 + y0, y1 + y1


# ----------------------------------------------------------------------------
# Deterministic synthetic parameters.
# ----------------------------------------------------------------------------
def init_dpcab_params(key, nf1, nf2, reduction=4):
    ks = jax.random.split(key, 18)

    def conv_w(k, cin, cout):
        return jax.random.normal(k, (3, 3, cin, cout), jnp.float32) * 0.05

    def dense_w(k, cin, cout):
        return jax.random.normal(k, (cin, cout), jnp.float32) * 0.1

    def bvec(k, c):
        return jax.random.normal(k, (1, c), jnp.float32) * 0.05

    r1, r2 = max(nf1 // reduction, 1), max(nf2 // reduction, 1)
    return {
        "b1c1w": conv_w(ks[0], nf1, nf1), "b1c1b": bvec(ks[9], nf1),
        "b1c2w": conv_w(ks[1], nf1, nf1), "b1c2b": bvec(ks[10], nf1),
        "b2c1w": conv_w(ks[2], nf2, nf2), "b2c1b": bvec(ks[11], nf2),
        "b2c2w": conv_w(ks[3], nf2, nf2), "b2c2b": bvec(ks[12], nf2),
        "ca1cw": conv_w(ks[4], nf1 + nf2, nf1), "ca1cb": bvec(ks[13], nf1),
        "ca1w1": dense_w(ks[5], nf1, r1), "ca1b1": bvec(ks[14], r1),
        "ca1w2": dense_w(ks[6], r1, nf1), "ca1b2": bvec(ks[15], nf1),
        "ca2w1": dense_w(ks[7], nf2, r2), "ca2b1": bvec(ks[16], r2),
        "ca2w2": dense_w(ks[8], r2, nf2), "ca2b2": bvec(ks[17], nf2),
    }


if __name__ == "__main__":
    N, H, W = 2, 16, 16
    nf1, nf2, nb = 8, 8, 2

    key = jax.random.PRNGKey(0)
    k0, k1, kp = jax.random.split(key, 3)
    x0 = jax.random.normal(k0, (N, H, W, nf1), jnp.float32)   # NHWC
    x1 = jax.random.normal(k1, (N, H, W, nf2), jnp.float32)   # NHWC
    params = [init_dpcab_params(k, nf1, nf2) for k in jax.random.split(kp, nb)]

    # One-time exact re-layout + per-block stacking for the fused kernel.
    stacked = expand_dpcag_params(params, W)

    @jax.jit
    def pallas_fwd(a, b, eps):
        n, h, w, c1 = a.shape
        c2 = b.shape[-1]
        y0 = a.reshape(n, h, w * c1)          # lane-dense flattened-NHWC
        y1 = b.reshape(n, h, w * c2)
        y0, y1 = dpcag_forward_pallas(y0, y1, eps)
        return y0.reshape(n, h, w, c1), y1.reshape(n, h, w, c2)

    y0, y1 = pallas_fwd(x0, x1, stacked)
    jax.block_until_ready((y0, y1))

    # Verify against a pure-JAX reference of the same module.
    r0, r1 = ref_dpcag(x0, x1, params)
    assert jnp.allclose(y0, r0, atol=2e-3, rtol=2e-3), "x[0] mismatch"
    assert jnp.allclose(y1, r1, atol=2e-3, rtol=2e-3), "x[1] mismatch"

    print("KERNEL_OK")
</pallas_src>

<mosaic_0001>
module attributes {stable_mosaic.version = 11 : i64} {
  func.func @_dpcag_kernel(%arg0: i32, %arg1: i32, %arg2: memref<1x16x128xf32, #tpu.memory_space<vmem>>, %arg3: memref<1x16x128xf32, #tpu.memory_space<vmem>>, %arg4: memref<1x384x128xf32, #tpu.memory_space<vmem>>, %arg5: memref<1x384x128xf32, #tpu.memory_space<vmem>>, %arg6: memref<1x384x128xf32, #tpu.memory_space<vmem>>, %arg7: memref<1x384x128xf32, #tpu.memory_space<vmem>>, %arg8: memref<1x384x128xf32, #tpu.memory_space<vmem>>, %arg9: memref<1x384x128xf32, #tpu.memory_space<vmem>>, %arg10: memref<1x128x8xf32, #tpu.memory_space<vmem>>, %arg11: memref<1x8x128xf32, #tpu.memory_space<vmem>>, %arg12: memref<1x128x8xf32, #tpu.memory_space<vmem>>, %arg13: memref<1x8x128xf32, #tpu.memory_space<vmem>>, %arg14: memref<1x16x128xf32, #tpu.memory_space<vmem>>, %arg15: memref<1x16x128xf32, #tpu.memory_space<vmem>>, %arg16: memref<1x16x128xf32, #tpu.memory_space<vmem>>, %arg17: memref<16x128xf32, #tpu.memory_space<vmem>>, %arg18: memref<16x128xf32, #tpu.memory_space<vmem>>) attributes {dimension_semantics = [#tpu.dimension_semantics<parallel>, #tpu.dimension_semantics<arbitrary>], iteration_bounds = array<i64: 2, 2>, scalar_prefetch = 0 : i64, scratch_operands = 2 : i64, tpu.core_type = #tpu.core_type<tc>, window_params = [{transform_indices = @transform_0, window_bounds = array<i64: 1, 16, 128>}, {transform_indices = @transform_1, window_bounds = array<i64: 1, 16, 128>}, {transform_indices = @transform_2, window_bounds = array<i64: 1, 384, 128>}, {transform_indices = @transform_3, window_bounds = array<i64: 1, 384, 128>}, {transform_indices = @transform_4, window_bounds = array<i64: 1, 384, 128>}, {transform_indices = @transform_5, window_bounds = array<i64: 1, 384, 128>}, {transform_indices = @transform_6, window_bounds = array<i64: 1, 384, 128>}, {transform_indices = @transform_7, window_bounds = array<i64: 1, 384, 128>}, {transform_indices = @transform_8, window_bounds = array<i64: 1, 128, 8>}, {transform_indices = @transform_9, window_bounds = array<i64: 1, 8, 128>}, {transform_indices = @transform_10, window_bounds = array<i64: 1, 128, 8>}, {transform_indices = @transform_11, window_bounds = array<i64: 1, 8, 128>}, {transform_indices = @transform_12, window_bounds = array<i64: 1, 16, 128>}, {transform_indices = @transform_13, window_bounds = array<i64: 1, 16, 128>}, {transform_indices = @transform_14, window_bounds = array<i64: 1, 16, 128>}]} {
    %c0_i32 = arith.constant 0 : i32
    %0 = arith.cmpi eq, %arg1, %c0_i32 : i32
    %1 = arith.extui %0 : i1 to i32
    %c0_i32_0 = arith.constant 0 : i32
    %2 = arith.cmpi ne, %1, %c0_i32_0 : i32
    scf.if %2 {
      %c0_158 = arith.constant 0 : index
      %c0_159 = arith.constant 0 : index
      %c0_160 = arith.constant 0 : index
      %217 = vector.load %arg2[%c0_158, %c0_159, %c0_160] : memref<1x16x128xf32, #tpu.memory_space<vmem>>, vector<1x16x128xf32>
      %218 = vector.shape_cast %217 : vector<1x16x128xf32> to vector<16x128xf32>
      %c0_161 = arith.constant 0 : index
      %c0_162 = arith.constant 0 : index
      %219 = vector.load %arg17[%c0_161, %c0_162] : memref<16x128xf32, #tpu.memory_space<vmem>>, vector<16x128xf32>
      tpu.vector_store %arg17[%c0_161, %c0_162], %218 {strides = array<i32>} : memref<16x128xf32, #tpu.memory_space<vmem>>, vector<16x128xf32>,
      %c0_163 = arith.constant 0 : index
      %c0_164 = arith.constant 0 : index
      %c0_165 = arith.constant 0 : index
      %220 = vector.load %arg3[%c0_163, %c0_164, %c0_165] : memref<1x16x128xf32, #tpu.memory_space<vmem>>, vector<1x16x128xf32>
      %221 = vector.shape_cast %220 : vector<1x16x128xf32> to vector<16x128xf32>
      %c0_166 = arith.constant 0 : index
      %c0_167 = arith.constant 0 : index
      %222 = vector.load %arg18[%c0_166, %c0_167] : memref<16x128xf32, #tpu.memory_space<vmem>>, vector<16x128xf32>
      tpu.vector_store %arg18[%c0_166, %c0_167], %221 {strides = array<i32>} : memref<16x128xf32, #tpu.memory_space<vmem>>, vector<16x128xf32>,
    } else {
    }
    %3 = tpu.iota {dimensions = array<i32: 0>} : vector<16x128xi32>
    %c0_i32_1 = arith.constant 0 : i32
    %4 = vector.broadcast %c0_i32_1 : i32 to vector<16x128xi32>
    %5 = arith.cmpi sgt, %3, %4 : vector<16x128xi32>
    %c15_i32 = arith.constant 15 : i32
    %6 = vector.broadcast %c15_i32 : i32 to vector<16x128xi32>
    %7 = arith.cmpi slt, %3, %6 : vector<16x128xi32>
    %8 = tpu.iota {dimensions = array<i32: 0>} : vector<16x128xi32>
    %c0_i32_2 = arith.constant 0 : i32
    %9 = vector.broadcast %c0_i32_2 : i32 to vector<16x128xi32>
    %10 = arith.cmpi sgt, %8, %9 : vector<16x128xi32>
    %c15_i32_3 = arith.constant 15 : i32
    %11 = vector.broadcast %c15_i32_3 : i32 to vector<16x128xi32>
    %12 = arith.cmpi slt, %8, %11 : vector<16x128xi32>
    %c0 = arith.constant 0 : index
    %c0_4 = arith.constant 0 : index
    %13 = vector.load %arg17[%c0, %c0_4] : memref<16x128xf32, #tpu.memory_space<vmem>>, vector<16x128xf32>
    %c0_5 = arith.constant 0 : index
    %c0_6 = arith.constant 0 : index
    %14 = vector.load %arg18[%c0_5, %c0_6] : memref<16x128xf32, #tpu.memory_space<vmem>>, vector<16x128xf32>
    %c0_7 = arith.constant 0 : index
    %c0_8 = arith.constant 0 : index
    %c0_9 = arith.constant 0 : index
    %15 = vector.load %arg14[%c0_7, %c0_8, %c0_9] : memref<1x16x128xf32, #tpu.memory_space<vmem>>, vector<1x1x128xf32>
    %16 = vector.shape_cast %15 : vector<1x1x128xf32> to vector<1x128xf32>
    %c1_i32 = arith.constant 1 : i32
    %17 = tpu.dynamic_rotate %13 by %c1_i32 dim 0 : vector<16x128xf32>, i32 -> vector<16x128xf32>
    %cst = arith.constant 0.000000e+00 : f32
    %18 = vector.broadcast %cst : f32 to vector<16x128xf32>
    %19 = arith.select %5, %17, %18 : vector<16x128xi1>, vector<16x128xf32>
    %c15_i32_10 = arith.constant 15 : i32
    %20 = tpu.dynamic_rotate %13 by %c15_i32_10 dim 0 : vector<16x128xf32>, i32 -> vector<16x128xf32>
    %cst_11 = arith.constant 0.000000e+00 : f32
    %21 = vector.broadcast %cst_11 : f32 to vector<16x128xf32>
    %22 = arith.select %7, %20, %21 : vector<16x128xi1>, vector<16x128xf32>
    %c0_12 = arith.constant 0 : index
    %c0_13 = arith.constant 0 : index
    %c0_14 = arith.constant 0 : index
    %23 = vector.load %arg4[%c0_12, %c0_13, %c0_14] : memref<1x384x128xf32, #tpu.memory_space<vmem>>, vector<1x128x128xf32>
    %24 = vector.shape_cast %23 : vector<1x128x128xf32> to vector<128x128xf32>
    %cst_15 = arith.constant dense<0.000000e+00> : vector<16x128xf32>
    %25 = tpu.matmul %19, %24, %cst_15 {dimension_numbers = #tpu.dot_dimension_numbers<[1], [0], [0], [1], [0, 0, 1, 1], [], []>} : vector<16x128xf32>, vector<128x128xf32>, vector<16x128xf32> -> vector<16x128xf32>
    %c0_16 = arith.constant 0 : index
    %c128 = arith.constant 128 : index
    %c0_17 = arith.constant 0 : index
    %26 = vector.load %arg4[%c0_16, %c128, %c0_17] : memref<1x384x128xf32, #tpu.memory_space<vmem>>, vector<1x128x128xf32>
    %27 = vector.shape_cast %26 : vector<1x128x128xf32> to vector<128x128xf32>
    %cst_18 = arith.constant dense<0.000000e+00> : vector<16x128xf32>
    %28 = tpu.matmul %13, %27, %cst_18 {dimension_numbers = #tpu.dot_dimension_numbers<[1], [0], [0], [1], [0, 0, 1, 1], [], []>} : vector<16x128xf32>, vector<128x128xf32>, vector<16x128xf32> -> vector<16x128xf32>
    %29 = arith.addf %25, %28 : vector<16x128xf32>
    %c0_19 = arith.constant 0 : index
    %c256 = arith.constant 256 : index
    %c0_20 = arith.constant 0 : index
    %30 = vector.load %arg4[%c0_19, %c256, %c0_20] : memref<1x384x128xf32, #tpu.memory_space<vmem>>, vector<1x128x128xf32>
    %31 = vector.shape_cast %30 : vector<1x128x128xf32> to vector<128x128xf32>
    %cst_21 = arith.constant dense<0.000000e+00> : vector<16x128xf32>
    %32 = tpu.matmul %22, %31, %cst_21 {dimension_numbers = #tpu.dot_dimension_numbers<[1], [0], [0], [1], [0, 0, 1, 1], [], []>} : vector<16x128xf32>, vector<128x128xf32>, vector<16x128xf32> -> vector<16x128xf32>
    %33 = arith.addf %29, %32 : vector<16x128xf32>
    %34 = vector.broadcast %16 : vector<1x128xf32> to vector<16x128xf32>
    %35 = arith.addf %33, %34 : vector<16x128xf32>
    %cst_22 = arith.constant 0.000000e+00 : f32
    %36 = vector.broadcast %cst_22 : f32 to vector<16x128xf32>
    %37 = arith.cmpf oge, %35, %36 : vector<16x128xf32>
    %cst_23 = arith.constant 1.000000e-01 : f32
    %38 = vector.broadcast %cst_23 : f32 to vector<16x128xf32>
    %39 = arith.mulf %38, %35 : vector<16x128xf32>
    %40 = arith.select %37, %35, %39 : vector<16x128xi1>, vector<16x128xf32>
    %c0_24 = arith.constant 0 : index
    %c1 = arith.constant 1 : index
    %c0_25 = arith.constant 0 : index
    %41 = vector.load %arg14[%c0_24, %c1, %c0_25] : memref<1x16x128xf32, #tpu.memory_space<vmem>>, vector<1x1x128xf32>
    %42 = vector.shape_cast %41 : vector<1x1x128xf32> to vector<1x128xf32>
    %c1_i32_26 = arith.constant 1 : i32
    %43 = tpu.dynamic_rotate %40 by %c1_i32_26 dim 0 : vector<16x128xf32>, i32 -> vector<16x128xf32>
    %cst_27 = arith.constant 0.000000e+00 : f32
    %44 = vector.broadcast %cst_27 : f32 to vector<16x128xf32>
    %45 = arith.select %5, %43, %44 : vector<16x128xi1>, vector<16x128xf32>
    %c15_i32_28 = arith.constant 15 : i32
    %46 = tpu.dynamic_rotate %40 by %c15_i32_28 dim 0 : vector<16x128xf32>, i32 -> vector<16x128xf32>
    %cst_29 = arith.constant 0.000000e+00 : f32
    %47 = vector.broadcast %cst_29 : f32 to vector<16x128xf32>
    %48 = arith.select %7, %46, %47 : vector<16x128xi1>, vector<16x128xf32>
    %c0_30 = arith.constant 0 : index
    %c0_31 = arith.constant 0 : index
    %c0_32 = arith.constant 0 : index
    %49 = vector.load %arg5[%c0_30, %c0_31, %c0_32] : memref<1x384x128xf32, #tpu.memory_space<vmem>>, vector<1x128x128xf32>
    %50 = vector.shape_cast %49 : vector<1x128x128xf32> to vector<128x128xf32>
    %cst_33 = arith.constant dense<0.000000e+00> : vector<16x128xf32>
    %51 = tpu.matmul %45, %50, %cst_33 {dimension_numbers = #tpu.dot_dimension_numbers<[1], [0], [0], [1], [0, 0, 1, 1], [], []>} : vector<16x128xf32>, vector<128x128xf32>, vector<16x128xf32> -> vector<16x128xf32>
    %c0_34 = arith.constant 0 : index
    %c128_35 = arith.constant 128 : index
    %c0_36 = arith.constant 0 : index
    %52 = vector.load %arg5[%c0_34, %c128_35, %c0_36] : memref<1x384x128xf32, #tpu.memory_space<vmem>>, vector<1x128x128xf32>
    %53 = vector.shape_cast %52 : vector<1x128x128xf32> to vector<128x128xf32>
    %cst_37 = arith.constant dense<0.000000e+00> : vector<16x128xf32>
    %54 = tpu.matmul %40, %53, %cst_37 {dimension_numbers = #tpu.dot_dimension_numbers<[1], [0], [0], [1], [0, 0, 1, 1], [], []>} : vector<16x128xf32>, vector<128x128xf32>, vector<16x128xf32> -> vector<16x128xf32>
    %55 = arith.addf %51, %54 : vector<16x128xf32>
    %c0_38 = arith.constant 0 : index
    %c256_39 = arith.constant 256 : index
    %c0_40 = arith.constant 0 : index
    %56 = vector.load %arg5[%c0_38, %c256_39, %c0_40] : memref<1x384x128xf32, #tpu.memory_space<vmem>>, vector<1x128x128xf32>
    %57 = vector.shape_cast %56 : vector<1x128x128xf32> to vector<128x128xf32>
    %cst_41 = arith.constant dense<0.000000e+00> : vector<16x128xf32>
    %58 = tpu.matmul %48, %57, %cst_41 {dimension_numbers = #tpu.dot_dimension_numbers<[1], [0], [0], [1], [0, 0, 1, 1], [], []>} : vector<16x128xf32>, vector<128x128xf32>, vector<16x128xf32> -> vector<16x128xf32>
    %59 = arith.addf %55, %58 : vector<16x128xf32>
    %60 = vector.broadcast %42 : vector<1x128xf32> to vector<16x128xf32>
    %61 = arith.addf %59, %60 : vector<16x128xf32>
    %c0_42 = arith.constant 0 : index
    %c4 = arith.constant 4 : index
    %c0_43 = arith.constant 0 : index
    %62 = vector.load %arg14[%c0_42, %c4, %c0_43] : memref<1x16x128xf32, #tpu.memory_space<vmem>>, vector<1x1x128xf32>
    %63 = vector.shape_cast %62 : vector<1x1x128xf32> to vector<1x128xf32>
    %c1_i32_44 = arith.constant 1 : i32
    %64 = tpu.dynamic_rotate %14 by %c1_i32_44 dim 0 : vector<16x128xf32>, i32 -> vector<16x128xf32>
    %cst_45 = arith.constant 0.000000e+00 : f32
    %65 = vector.broadcast %cst_45 : f32 to vector<16x128xf32>
    %66 = arith.select %10, %64, %65 : vector<16x128xi1>, vector<16x128xf32>
    %c15_i32_46 = arith.constant 15 : i32
    %67 = tpu.dynamic_rotate %14 by %c15_i32_46 dim 0 : vector<16x128xf32>, i32 -> vector<16x128xf32>
    %cst_47 = arith.constant 0.000000e+00 : f32
    %68 = vector.broadcast %cst_47 : f32 to vector<16x128xf32>
    %69 = arith.select %12, %67, %68 : vector<16x128xi1>, vector<16x128xf32>
    %c0_48 = arith.constant 0 : index
    %c0_49 = arith.constant 0 : index
    %c0_50 = arith.constant 0 : index
    %70 = vector.load %arg6[%c0_48, %c0_49, %c0_50] : memref<1x384x128xf32, #tpu.memory_space<vmem>>, vector<1x128x128xf32>
    %71 = vector.shape_cast %70 : vector<1x128x128xf32> to vector<128x128xf32>
    %cst_51 = arith.constant dense<0.000000e+00> : vector<16x128xf32>
    %72 = tpu.matmul %66, %71, %cst_51 {dimension_numbers = #tpu.dot_dimension_numbers<[1], [0], [0], [1], [0, 0, 1, 1], [], []>} : vector<16x128xf32>, vector<128x128xf32>, vector<16x128xf32> -> vector<16x128xf32>
    %c0_52 = arith.constant 0 : index
    %c128_53 = arith.constant 128 : index
    %c0_54 = arith.constant 0 : index
    %73 = vector.load %arg6[%c0_52, %c128_53, %c0_54] : memref<1x384x128xf32, #tpu.memory_space<vmem>>, vector<1x128x128xf32>
    %74 = vector.shape_cast %73 : vector<1x128x128xf32> to vector<128x128xf32>
    %cst_55 = arith.constant dense<0.000000e+00> : vector<16x128xf32>
    %75 = tpu.matmul %14, %74, %cst_55 {dimension_numbers = #tpu.dot_dimension_numbers<[1], [0], [0], [1], [0, 0, 1, 1], [], []>} : vector<16x128xf32>, vector<128x128xf32>, vector<16x128xf32> -> vector<16x128xf32>
    %76 = arith.addf %72, %75 : vector<16x128xf32>
    %c0_56 = arith.constant 0 : index
    %c256_57 = arith.constant 256 : index
    %c0_58 = arith.constant 0 : index
    %77 = vector.load %arg6[%c0_56, %c256_57, %c0_58] : memref<1x384x128xf32, #tpu.memory_space<vmem>>, vector<1x128x128xf32>
    %78 = vector.shape_cast %77 : vector<1x128x128xf32> to vector<128x128xf32>
    %cst_59 = arith.constant dense<0.000000e+00> : vector<16x128xf32>
    %79 = tpu.matmul %69, %78, %cst_59 {dimension_numbers = #tpu.dot_dimension_numbers<[1], [0], [0], [1], [0, 0, 1, 1], [], []>} : vector<16x128xf32>, vector<128x128xf32>, vector<16x128xf32> -> vector<16x128xf32>
    %80 = arith.addf %76, %79 : vector<16x128xf32>
    %81 = vector.broadcast %63 : vector<1x128xf32> to vector<16x128xf32>
    %82 = arith.addf %80, %81 : vector<16x128xf32>
    %cst_60 = arith.constant 0.000000e+00 : f32
    %83 = vector.broadcast %cst_60 : f32 to vector<16x128xf32>
    %84 = arith.cmpf oge, %82, %83 : vector<16x128xf32>
    %cst_61 = arith.constant 1.000000e-01 : f32
    %85 = vector.broadcast %cst_61 : f32 to vector<16x128xf32>
    %86 = arith.mulf %85, %82 : vector<16x128xf32>
    %87 = arith.select %84, %82, %86 : vector<16x128xi1>, vector<16x128xf32>
    %c0_62 = arith.constant 0 : index
    %c5 = arith.constant 5 : index
    %c0_63 = arith.constant 0 : index
    %88 = vector.load %arg14[%c0_62, %c5, %c0_63] : memref<1x16x128xf32, #tpu.memory_space<vmem>>, vector<1x1x128xf32>
    %89 = vector.shape_cast %88 : vector<1x1x128xf32> to vector<1x128xf32>
    %c1_i32_64 = arith.constant 1 : i32
    %90 = tpu.dynamic_rotate %87 by %c1_i32_64 dim 0 : vector<16x128xf32>, i32 -> vector<16x128xf32>
    %cst_65 = arith.constant 0.000000e+00 : f32
    %91 = vector.broadcast %cst_65 : f32 to vector<16x128xf32>
    %92 = arith.select %10, %90, %91 : vector<16x128xi1>, vector<16x128xf32>
    %c15_i32_66 = arith.constant 15 : i32
    %93 = tpu.dynamic_rotate %87 by %c15_i32_66 dim 0 : vector<16x128xf32>, i32 -> vector<16x128xf32>
    %cst_67 = arith.constant 0.000000e+00 : f32
    %94 = vector.broadcast %cst_67 : f32 to vector<16x128xf32>
    %95 = arith.select %12, %93, %94 : vector<16x128xi1>, vector<16x128xf32>
    %c0_68 = arith.constant 0 : index
    %c0_69 = arith.constant 0 : index
    %c0_70 = arith.constant 0 : index
    %96 = vector.load %arg7[%c0_68, %c0_69, %c0_70] : memref<1x384x128xf32, #tpu.memory_space<vmem>>, vector<1x128x128xf32>
    %97 = vector.shape_cast %96 : vector<1x128x128xf32> to vector<128x128xf32>
    %cst_71 = arith.constant dense<0.000000e+00> : vector<16x128xf32>
    %98 = tpu.matmul %92, %97, %cst_71 {dimension_numbers = #tpu.dot_dimension_numbers<[1], [0], [0], [1], [0, 0, 1, 1], [], []>} : vector<16x128xf32>, vector<128x128xf32>, vector<16x128xf32> -> vector<16x128xf32>
    %c0_72 = arith.constant 0 : index
    %c128_73 = arith.constant 128 : index
    %c0_74 = arith.constant 0 : index
    %99 = vector.load %arg7[%c0_72, %c128_73, %c0_74] : memref<1x384x128xf32, #tpu.memory_space<vmem>>, vector<1x128x128xf32>
    %100 = vector.shape_cast %99 : vector<1x128x128xf32> to vector<128x128xf32>
    %cst_75 = arith.constant dense<0.000000e+00> : vector<16x128xf32>
    %101 = tpu.matmul %87, %100, %cst_75 {dimension_numbers = #tpu.dot_dimension_numbers<[1], [0], [0], [1], [0, 0, 1, 1], [], []>} : vector<16x128xf32>, vector<128x128xf32>, vector<16x128xf32> -> vector<16x128xf32>
    %102 = arith.addf %98, %101 : vector<16x128xf32>
    %c0_76 = arith.constant 0 : index
    %c256_77 = arith.constant 256 : index
    %c0_78 = arith.constant 0 : index
    %103 = vector.load %arg7[%c0_76, %c256_77, %c0_78] : memref<1x384x128xf32, #tpu.memory_space<vmem>>, vector<1x128x128xf32>
    %104 = vector.shape_cast %103 : vector<1x128x128xf32> to vector<128x128xf32>
    %cst_79 = arith.constant dense<0.000000e+00> : vector<16x128xf32>
    %105 = tpu.matmul %95, %104, %cst_79 {dimension_numbers = #tpu.dot_dimension_numbers<[1], [0], [0], [1], [0, 0, 1, 1], [], []>} : vector<16x128xf32>, vector<128x128xf32>, vector<16x128xf32> -> vector<16x128xf32>
    %106 = arith.addf %102, %105 : vector<16x128xf32>
    %107 = vector.broadcast %89 : vector<1x128xf32> to vector<16x128xf32>
    %108 = arith.addf %106, %107 : vector<16x128xf32>
    %cst_80 = arith.constant 0.000000e+00 : f32
    %109 = vector.broadcast %cst_80 : f32 to vector<16x128xf32>
    %110 = arith.cmpf oge, %61, %109 : vector<16x128xf32>
    %cst_81 = arith.constant 1.000000e-01 : f32
    %111 = vector.broadcast %cst_81 : f32 to vector<16x128xf32>
    %112 = arith.mulf %111, %61 : vector<16x128xf32>
    %113 = arith.select %110, %61, %112 : vector<16x128xi1>, vector<16x128xf32>
    %c1_i32_82 = arith.constant 1 : i32
    %114 = tpu.dynamic_rotate %113 by %c1_i32_82 dim 0 : vector<16x128xf32>, i32 -> vector<16x128xf32>
    %cst_83 = arith.constant 0.000000e+00 : f32
    %115 = vector.broadcast %cst_83 : f32 to vector<16x128xf32>
    %116 = arith.select %5, %114, %115 : vector<16x128xi1>, vector<16x128xf32>
    %c15_i32_84 = arith.constant 15 : i32
    %117 = tpu.dynamic_rotate %113 by %c15_i32_84 dim 0 : vector<16x128xf32>, i32 -> vector<16x128xf32>
    %cst_85 = arith.constant 0.000000e+00 : f32
    %118 = vector.broadcast %cst_85 : f32 to vector<16x128xf32>
    %119 = arith.select %7, %117, %118 : vector<16x128xi1>, vector<16x128xf32>
    %c0_86 = arith.constant 0 : index
    %c0_87 = arith.constant 0 : index
    %c0_88 = arith.constant 0 : index
    %120 = vector.load %arg8[%c0_86, %c0_87, %c0_88] : memref<1x384x128xf32, #tpu.memory_space<vmem>>, vector<1x128x128xf32>
    %121 = vector.shape_cast %120 : vector<1x128x128xf32> to vector<128x128xf32>
    %cst_89 = arith.constant dense<0.000000e+00> : vector<16x128xf32>
    %122 = tpu.matmul %116, %121, %cst_89 {dimension_numbers = #tpu.dot_dimension_numbers<[1], [0], [0], [1], [0, 0, 1, 1], [], []>} : vector<16x128xf32>, vector<128x128xf32>, vector<16x128xf32> -> vector<16x128xf32>
    %c0_90 = arith.constant 0 : index
    %c128_91 = arith.constant 128 : index
    %c0_92 = arith.constant 0 : index
    %123 = vector.load %arg8[%c0_90, %c128_91, %c0_92] : memref<1x384x128xf32, #tpu.memory_space<vmem>>, vector<1x128x128xf32>
    %124 = vector.shape_cast %123 : vector<1x128x128xf32> to vector<128x128xf32>
    %cst_93 = arith.constant dense<0.000000e+00> : vector<16x128xf32>
    %125 = tpu.matmul %113, %124, %cst_93 {dimension_numbers = #tpu.dot_dimension_numbers<[1], [0], [0], [1], [0, 0, 1, 1], [], []>} : vector<16x128xf32>, vector<128x128xf32>, vector<16x128xf32> -> vector<16x128xf32>
    %126 = arith.addf %122, %125 : vector<16x128xf32>
    %c0_94 = arith.constant 0 : index
    %c256_95 = arith.constant 256 : index
    %c0_96 = arith.constant 0 : index
    %127 = vector.load %arg8[%c0_94, %c256_95, %c0_96] : memref<1x384x128xf32, #tpu.memory_space<vmem>>, vector<1x128x128xf32>
    %128 = vector.shape_cast %127 : vector<1x128x128xf32> to vector<128x128xf32>
    %cst_97 = arith.constant dense<0.000000e+00> : vector<16x128xf32>
    %129 = tpu.matmul %119, %128, %cst_97 {dimension_numbers = #tpu.dot_dimension_numbers<[1], [0], [0], [1], [0, 0, 1, 1], [], []>} : vector<16x128xf32>, vector<128x128xf32>, vector<16x128xf32> -> vector<16x128xf32>
    %130 = arith.addf %126, %129 : vector<16x128xf32>
    %cst_98 = arith.constant 0.000000e+00 : f32
    %131 = vector.broadcast %cst_98 : f32 to vector<16x128xf32>
    %132 = arith.cmpf oge, %108, %131 : vector<16x128xf32>
    %cst_99 = arith.constant 1.000000e-01 : f32
    %133 = vector.broadcast %cst_99 : f32 to vector<16x128xf32>
    %134 = arith.mulf %133, %108 : vector<16x128xf32>
    %135 = arith.select %132, %108, %134 : vector<16x128xi1>, vector<16x128xf32>
    %c1_i32_100 = arith.constant 1 : i32
    %136 = tpu.dynamic_rotate %135 by %c1_i32_100 dim 0 : vector<16x128xf32>, i32 -> vector<16x128xf32>
    %cst_101 = arith.constant 0.000000e+00 : f32
    %137 = vector.broadcast %cst_101 : f32 to vector<16x128xf32>
    %138 = arith.select %10, %136, %137 : vector<16x128xi1>, vector<16x128xf32>
    %c15_i32_102 = arith.constant 15 : i32
    %139 = tpu.dynamic_rotate %135 by %c15_i32_102 dim 0 : vector<16x128xf32>, i32 -> vector<16x128xf32>
    %cst_103 = arith.constant 0.000000e+00 : f32
    %140 = vector.broadcast %cst_103 : f32 to vector<16x128xf32>
    %141 = arith.select %12, %139, %140 : vector<16x128xi1>, vector<16x128xf32>
    %c0_104 = arith.constant 0 : index
    %c0_105 = arith.constant 0 : index
    %c0_106 = arith.constant 0 : index
    %142 = vector.load %arg9[%c0_104, %c0_105, %c0_106] : memref<1x384x128xf32, #tpu.memory_space<vmem>>, vector<1x128x128xf32>
    %143 = vector.shape_cast %142 : vector<1x128x128xf32> to vector<128x128xf32>
    %cst_107 = arith.constant dense<0.000000e+00> : vector<16x128xf32>
    %144 = tpu.matmul %138, %143, %cst_107 {dimension_numbers = #tpu.dot_dimension_numbers<[1], [0], [0], [1], [0, 0, 1, 1], [], []>} : vector<16x128xf32>, vector<128x128xf32>, vector<16x128xf32> -> vector<16x128xf32>
    %c0_108 = arith.constant 0 : index
    %c128_109 = arith.constant 128 : index
    %c0_110 = arith.constant 0 : index
    %145 = vector.load %arg9[%c0_108, %c128_109, %c0_110] : memref<1x384x128xf32, #tpu.memory_space<vmem>>, vector<1x128x128xf32>
    %146 = vector.shape_cast %145 : vector<1x128x128xf32> to vector<128x128xf32>
    %cst_111 = arith.constant dense<0.000000e+00> : vector<16x128xf32>
    %147 = tpu.matmul %135, %146, %cst_111 {dimension_numbers = #tpu.dot_dimension_numbers<[1], [0], [0], [1], [0, 0, 1, 1], [], []>} : vector<16x128xf32>, vector<128x128xf32>, vector<16x128xf32> -> vector<16x128xf32>
    %148 = arith.addf %144, %147 : vector<16x128xf32>
    %c0_112 = arith.constant 0 : index
    %c256_113 = arith.constant 256 : index
    %c0_114 = arith.constant 0 : index
    %149 = vector.load %arg9[%c0_112, %c256_113, %c0_114] : memref<1x384x128xf32, #tpu.memory_space<vmem>>, vector<1x128x128xf32>
    %150 = vector.shape_cast %149 : vector<1x128x128xf32> to vector<128x128xf32>
    %cst_115 = arith.constant dense<0.000000e+00> : vector<16x128xf32>
    %151 = tpu.matmul %141, %150, %cst_115 {dimension_numbers = #tpu.dot_dimension_numbers<[1], [0], [0], [1], [0, 0, 1, 1], [], []>} : vector<16x128xf32>, vector<128x128xf32>, vector<16x128xf32> -> vector<16x128xf32>
    %152 = arith.addf %148, %151 : vector<16x128xf32>
    %153 = arith.addf %130, %152 : vector<16x128xf32>
    %c0_116 = arith.constant 0 : index
    %c2 = arith.constant 2 : index
    %c0_117 = arith.constant 0 : index
    %154 = vector.load %arg14[%c0_116, %c2, %c0_117] : memref<1x16x128xf32, #tpu.memory_space<vmem>>, vector<1x1x128xf32>
    %155 = vector.shape_cast %154 : vector<1x1x128xf32> to vector<1x128xf32>
    %156 = vector.broadcast %155 : vector<1x128xf32> to vector<16x128xf32>
    %157 = arith.addf %153, %156 : vector<16x128xf32>
    %c0_118 = arith.constant 0 : index
    %c7 = arith.constant 7 : index
    %c0_119 = arith.constant 0 : index
    %158 = vector.load %arg14[%c0_118, %c7, %c0_119] : memref<1x16x128xf32, #tpu.memory_space<vmem>>, vector<1x1x8xf32>
    %159 = vector.shape_cast %158 : vector<1x1x8xf32> to vector<1x8xf32>
    %c0_120 = arith.constant 0 : index
    %c3 = arith.constant 3 : index
    %c0_121 = arith.constant 0 : index
    %160 = vector.load %arg14[%c0_120, %c3, %c0_121] : memref<1x16x128xf32, #tpu.memory_space<vmem>>, vector<1x1x128xf32>
    %161 = vector.shape_cast %160 : vector<1x1x128xf32> to vector<1x128xf32>
    %cst_122 = arith.constant dense<0.000000e+00> : vector<128xf32>
    %162 = vector.multi_reduction <add>, %157, %cst_122 [0] : vector<16x128xf32> to vector<128xf32>
    %163 = vector.shape_cast %162 : vector<128xf32> to vector<1x128xf32>
    %cst_123 = arith.constant 1.600000e+01 : f32
    %164 = vector.broadcast %cst_123 : f32 to vector<1x128xf32>
    %165 = arith.divf %163, %164 : vector<1x128xf32>
    %c0_124 = arith.constant 0 : index
    %c0_125 = arith.constant 0 : index
    %c0_126 = arith.constant 0 : index
    %166 = vector.load %arg10[%c0_124, %c0_125, %c0_126] : memref<1x128x8xf32, #tpu.memory_space<vmem>>, vector<1x128x8xf32>
    %167 = vector.shape_cast %166 : vector<1x128x8xf32> to vector<128x8xf32>
    %cst_127 = arith.constant dense<0.000000e+00> : vector<1x8xf32>
    %168 = tpu.matmul %165, %167, %cst_127 {dimension_numbers = #tpu.dot_dimension_numbers<[1], [0], [0], [1], [0, 0, 1, 1], [], []>} : vector<1x128xf32>, vector<128x8xf32>, vector<1x8xf32> -> vector<1x8xf32>
    %169 = arith.addf %168, %159 : vector<1x8xf32>
    %cst_128 = arith.constant 0.000000e+00 : f32
    %170 = vector.broadcast %cst_128 : f32 to vector<1x8xf32>
    %171 = arith.maximumf %169, %170 : vector<1x8xf32>
    %c0_129 = arith.constant 0 : index
    %c0_130 = arith.constant 0 : index
    %c0_131 = arith.constant 0 : index
    %172 = vector.load %arg11[%c0_129, %c0_130, %c0_131] : memref<1x8x128xf32, #tpu.memory_space<vmem>>, vector<1x8x128xf32>
    %173 = vector.shape_cast %172 : vector<1x8x128xf32> to vector<8x128xf32>
    %cst_132 = arith.constant dense<0.000000e+00> : vector<1x128xf32>
    %174 = tpu.matmul %171, %173, %cst_132 {dimension_numbers = #tpu.dot_dimension_numbers<[1], [0], [0], [1], [0, 0, 1, 1], [], []>} : vector<1x8xf32>, vector<8x128xf32>, vector<1x128xf32> -> vector<1x128xf32>
    %175 = arith.addf %174, %161 : vector<1x128xf32>
    %cst_133 = arith.constant 0.000000e+00 : f32
    %176 = vector.broadcast %cst_133 : f32 to vector<1x128xf32>
    %177 = arith.subf %176, %175 : vector<1x128xf32>
    %178 = math.exp %177 : vector<1x128xf32>
    %cst_134 = arith.constant 1.000000e+00 : f32
    %179 = vector.broadcast %cst_134 : f32 to vector<1x128xf32>
    %180 = arith.addf %179, %178 : vector<1x128xf32>
    %181 = tpu.reciprocal %180 {approx = true} : vector<1x128xf32> -> vector<1x128xf32>
    %182 = vector.broadcast %181 : vector<1x128xf32> to vector<16x128xf32>
    %183 = arith.mulf %157, %182 : vector<16x128xf32>
    %184 = arith.addf %13, %183 : vector<16x128xf32>
    %c0_135 = arith.constant 0 : index
    %c8 = arith.constant 8 : index
    %c0_136 = arith.constant 0 : index
    %185 = vector.load %arg14[%c0_135, %c8, %c0_136] : memref<1x16x128xf32, #tpu.memory_space<vmem>>, vector<1x1x8xf32>
    %186 = vector.shape_cast %185 : vector<1x1x8xf32> to vector<1x8xf32>
    %c0_137 = arith.constant 0 : index
    %c6 = arith.constant 6 : index
    %c0_138 = arith.constant 0 : index
    %187 = vector.load %arg14[%c0_137, %c6, %c0_138] : memref<1x16x128xf32, #tpu.memory_space<vmem>>, vector<1x1x128xf32>
    %188 = vector.shape_cast %187 : vector<1x1x128xf32> to vector<1x128xf32>
    %cst_139 = arith.constant dense<0.000000e+00> : vector<128xf32>
    %189 = vector.multi_reduction <add>, %108, %cst_139 [0] : vector<16x128xf32> to vector<128xf32>
    %190 = vector.shape_cast %189 : vector<128xf32> to vector<1x128xf32>
    %cst_140 = arith.constant 1.600000e+01 : f32
    %191 = vector.broadcast %cst_140 : f32 to vector<1x128xf32>
    %192 = arith.divf %190, %191 : vector<1x128xf32>
    %c0_141 = arith.constant 0 : index
    %c0_142 = arith.constant 0 : index
    %c0_143 = arith.constant 0 : index
    %193 = vector.load %arg12[%c0_141, %c0_142, %c0_143] : memref<1x128x8xf32, #tpu.memory_space<vmem>>, vector<1x128x8xf32>
    %194 = vector.shape_cast %193 : vector<1x128x8xf32> to vector<128x8xf32>
    %cst_144 = arith.constant dense<0.000000e+00> : vector<1x8xf32>
    %195 = tpu.matmul %192, %194, %cst_144 {dimension_numbers = #tpu.dot_dimension_numbers<[1], [0], [0], [1], [0, 0, 1, 1], [], []>} : vector<1x128xf32>, vector<128x8xf32>, vector<1x8xf32> -> vector<1x8xf32>
    %196 = arith.addf %195, %186 : vector<1x8xf32>
    %cst_145 = arith.constant 0.000000e+00 : f32
    %197 = vector.broadcast %cst_145 : f32 to vector<1x8xf32>
    %198 = arith.maximumf %196, %197 : vector<1x8xf32>
    %c0_146 = arith.constant 0 : index
    %c0_147 = arith.constant 0 : index
    %c0_148 = arith.constant 0 : index
    %199 = vector.load %arg13[%c0_146, %c0_147, %c0_148] : memref<1x8x128xf32, #tpu.memory_space<vmem>>, vector<1x8x128xf32>
    %200 = vector.shape_cast %199 : vector<1x8x128xf32> to vector<8x128xf32>
    %cst_149 = arith.constant dense<0.000000e+00> : vector<1x128xf32>
    %201 = tpu.matmul %198, %200, %cst_149 {dimension_numbers = #tpu.dot_dimension_numbers<[1], [0], [0], [1], [0, 0, 1, 1], [], []>} : vector<1x8xf32>, vector<8x128xf32>, vector<1x128xf32> -> vector<1x128xf32>
    %202 = arith.addf %201, %188 : vector<1x128xf32>
    %cst_150 = arith.constant 0.000000e+00 : f32
    %203 = vector.broadcast %cst_150 : f32 to vector<1x128xf32>
    %204 = arith.subf %203, %202 : vector<1x128xf32>
    %205 = math.exp %204 : vector<1x128xf32>
    %cst_151 = arith.constant 1.000000e+00 : f32
    %206 = vector.broadcast %cst_151 : f32 to vector<1x128xf32>
    %207 = arith.addf %206, %205 : vector<1x128xf32>
    %208 = tpu.reciprocal %207 {approx = true} : vector<1x128xf32> -> vector<1x128xf32>
    %209 = vector.broadcast %208 : vector<1x128xf32> to vector<16x128xf32>
    %210 = arith.mulf %108, %209 : vector<16x128xf32>
    %211 = arith.addf %14, %210 : vector<16x128xf32>
    %c0_152 = arith.constant 0 : index
    %c0_153 = arith.constant 0 : index
    %212 = vector.load %arg17[%c0_152, %c0_153] : memref<16x128xf32, #tpu.memory_space<vmem>>, vector<16x128xf32>
    tpu.vector_store %arg17[%c0_152, %c0_153], %184 {strides = array<i32>} : memref<16x128xf32, #tpu.memory_space<vmem>>, vector<16x128xf32>,
    %c0_154 = arith.constant 0 : index
    %c0_155 = arith.constant 0 : index
    %213 = vector.load %arg18[%c0_154, %c0_155] : memref<16x128xf32, #tpu.memory_space<vmem>>, vector<16x128xf32>
    tpu.vector_store %arg18[%c0_154, %c0_155], %211 {strides = array<i32>} : memref<16x128xf32, #tpu.memory_space<vmem>>, vector<16x128xf32>,
    %c1_i32_156 = arith.constant 1 : i32
    %214 = arith.cmpi eq, %arg1, %c1_i32_156 : i32
    %215 = arith.extui %214 : i1 to i32
    %c0_i32_157 = arith.constant 0 : i32
    %216 = arith.cmpi ne, %215, %c0_i32_157 : i32
    scf.if %216 {
      %217 = arith.addf %184, %184 : vector<16x128xf32>
      %c0_158 = arith.constant 0 : index
      %c0_159 = arith.constant 0 : index
      %c0_160 = arith.constant 0 : index
      %218 = vector.load %arg15[%c0_158, %c0_159, %c0_160] : memref<1x16x128xf32, #tpu.memory_space<vmem>>, vector<1x16x128xf32>
      %219 = vector.shape_cast %218 : vector<1x16x128xf32> to vector<16x128xf32>
      %220 = vector.shape_cast %217 : vector<16x128xf32> to vector<1x16x128xf32>
      tpu.vector_store %arg15[%c0_158, %c0_159, %c0_160], %220 {strides = array<i32>} : memref<1x16x128xf32, #tpu.memory_space<vmem>>, vector<1x16x128xf32>,
      %221 = arith.addf %211, %211 : vector<16x128xf32>
      %c0_161 = arith.constant 0 : index
      %c0_162 = arith.constant 0 : index
      %c0_163 = arith.constant 0 : index
      %222 = vector.load %arg16[%c0_161, %c0_162, %c0_163] : memref<1x16x128xf32, #tpu.memory_space<vmem>>, vector<1x16x128xf32>
      %223 = vector.shape_cast %222 : vector<1x16x128xf32> to vector<16x128xf32>
      %224 = vector.shape_cast %221 : vector<16x128xf32> to vector<1x16x128xf32>
      tpu.vector_store %arg16[%c0_161, %c0_162, %c0_163], %224 {strides = array<i32>} : memref<1x16x128xf32, #tpu.memory_space<vmem>>, vector<1x16x128xf32>,
    } else {
    }
    return
  }
  func.func @transform_0(%arg0: i32, %arg1: i32) -> (i32, i32, i32) {
    %c0_i32 = arith.constant 0 : i32
    %c0_i32_0 = arith.constant 0 : i32
    %c0_i32_1 = arith.constant 0 : i32
    return %arg0, %c0_i32, %c0_i32_0 : i32, i32, i32
  }
  func.func @transform_1(%arg0: i32, %arg1: i32) -> (i32, i32, i32) {
    %c0_i32 = arith.constant 0 : i32
    %c0_i32_0 = arith.constant 0 : i32
    %c0_i32_1 = arith.constant 0 : i32
    return %arg0, %c0_i32, %c0_i32_0 : i32, i32, i32
  }
  func.func @transform_2(%arg0: i32, %arg1: i32) -> (i32, i32, i32) {
    %c0_i32 = arith.constant 0 : i32
    %c0_i32_0 = arith.constant 0 : i32
    %c0_i32_1 = arith.constant 0 : i32
    return %arg1, %c0_i32, %c0_i32_0 : i32, i32, i32
  }
  func.func @transform_3(%arg0: i32, %arg1: i32) -> (i32, i32, i32) {
    %c0_i32 = arith.constant 0 : i32
    %c0_i32_0 = arith.constant 0 : i32
    %c0_i32_1 = arith.constant 0 : i32
    return %arg1, %c0_i32, %c0_i32_0 : i32, i32, i32
  }
  func.func @transform_4(%arg0: i32, %arg1: i32) -> (i32, i32, i32) {
    %c0_i32 = arith.constant 0 : i32
    %c0_i32_0 = arith.constant 0 : i32
    %c0_i32_1 = arith.constant 0 : i32
    return %arg1, %c0_i32, %c0_i32_0 : i32, i32, i32
  }
  func.func @transform_5(%arg0: i32, %arg1: i32) -> (i32, i32, i32) {
    %c0_i32 = arith.constant 0 : i32
    %c0_i32_0 = arith.constant 0 : i32
    %c0_i32_1 = arith.constant 0 : i32
    return %arg1, %c0_i32, %c0_i32_0 : i32, i32, i32
  }
  func.func @transform_6(%arg0: i32, %arg1: i32) -> (i32, i32, i32) {
    %c0_i32 = arith.constant 0 : i32
    %c0_i32_0 = arith.constant 0 : i32
    %c0_i32_1 = arith.constant 0 : i32
    return %arg1, %c0_i32, %c0_i32_0 : i32, i32, i32
  }
  func.func @transform_7(%arg0: i32, %arg1: i32) -> (i32, i32, i32) {
    %c0_i32 = arith.constant 0 : i32
    %c0_i32_0 = arith.constant 0 : i32
    %c0_i32_1 = arith.constant 0 : i32
    return %arg1, %c0_i32, %c0_i32_0 : i32, i32, i32
  }
  func.func @transform_8(%arg0: i32, %arg1: i32) -> (i32, i32, i32) {
    %c0_i32 = arith.constant 0 : i32
    %c0_i32_0 = arith.constant 0 : i32
    %c0_i32_1 = arith.constant 0 : i32
    return %arg1, %c0_i32, %c0_i32_0 : i32, i32, i32
  }
  func.func @transform_9(%arg0: i32, %arg1: i32) -> (i32, i32, i32) {
    %c0_i32 = arith.constant 0 : i32
    %c0_i32_0 = arith.constant 0 : i32
    %c0_i32_1 = arith.constant 0 : i32
    return %arg1, %c0_i32, %c0_i32_0 : i32, i32, i32
  }
  func.func @transform_10(%arg0: i32, %arg1: i32) -> (i32, i32, i32) {
    %c0_i32 = arith.constant 0 : i32
    %c0_i32_0 = arith.constant 0 : i32
    %c0_i32_1 = arith.constant 0 : i32
    return %arg1, %c0_i32, %c0_i32_0 : i32, i32, i32
  }
  func.func @transform_11(%arg0: i32, %arg1: i32) -> (i32, i32, i32) {
    %c0_i32 = arith.constant 0 : i32
    %c0_i32_0 = arith.constant 0 : i32
    %c0_i32_1 = arith.constant 0 : i32
    return %arg1, %c0_i32, %c0_i32_0 : i32, i32, i32
  }
  func.func @transform_12(%arg0: i32, %arg1: i32) -> (i32, i32, i32) {
    %c0_i32 = arith.constant 0 : i32
    %c0_i32_0 = arith.constant 0 : i32
    %c0_i32_1 = arith.constant 0 : i32
    return %arg1, %c0_i32, %c0_i32_0 : i32, i32, i32
  }
  func.func @transform_13(%arg0: i32, %arg1: i32) -> (i32, i32, i32) {
    %c0_i32 = arith.constant 0 : i32
    %c0_i32_0 = arith.constant 0 : i32
    %c0_i32_1 = arith.constant 0 : i32
    return %arg0, %c0_i32, %c0_i32_0 : i32, i32, i32
  }
  func.func @transform_14(%arg0: i32, %arg1: i32) -> (i32, i32, i32) {
    %c0_i32 = arith.constant 0 : i32
    %c0_i32_0 = arith.constant 0 : i32
    %c0_i32_1 = arith.constant 0 : i32
    return %arg0, %c0_i32, %c0_i32_0 : i32, i32, i32
  }
}

</mosaic_0001>

<llo_original>
// kernel: pallas_fwd.1
$region0: #{pallas_fwd.1}
  #allocation0 [shape = 'u32[]', space=smem, size = 0x4, offset = 0x4, fixed_abs, tag = 'smem constant byte address 0x4 - core index']
  #allocation1 [shape = 'u32[144,128]{1,0:T(1,128)}', space=vmem, size = 0x12000, scoped, tag = 'internal scratch']
  #allocation2 [shape = 'f32[16,128]{1,0:T(8,128)}', space=vmem, size = 0x2000, scoped, tag = 'scratch operand']
  #allocation3 [shape = 'f32[16,128]{1,0:T(8,128)}', space=vmem, size = 0x2000, scoped, tag = 'scratch operand']
  %s0 = inlined_call_operand.vmem [shape: f32[2,16,128], index: 0, kind: input, shape index: {}, may-alias: {0,13}]
  %s1 = inlined_call_operand.vmem [shape: f32[2,16,128], index: 1, kind: input, shape index: {}, may-alias: {1,14}]
  %s2 = inlined_call_operand.vmem [shape: f32[2,384,128], index: 2, kind: input, shape index: {}]
  %s3 = inlined_call_operand.vmem [shape: f32[2,384,128], index: 3, kind: input, shape index: {}]
  %s4 = inlined_call_operand.hbm [shape: f32[2,384,128], index: 4, kind: input, shape index: {}]
  %s5 = inlined_call_operand.hbm [shape: f32[2,384,128], index: 5, kind: input, shape index: {}]
  %s6 = inlined_call_operand.hbm [shape: f32[2,384,128], index: 6, kind: input, shape index: {}]
  %s7 = inlined_call_operand.hbm [shape: f32[2,384,128], index: 7, kind: input, shape index: {}]
  %s8 = inlined_call_operand.vmem [shape: f32[2,128,8], index: 8, kind: input, shape index: {}]
  %s9 = inlined_call_operand.vmem [shape: f32[2,8,128], index: 9, kind: input, shape index: {}]
  %s10 = inlined_call_operand.vmem [shape: f32[2,128,8], index: 10, kind: input, shape index: {}]
  %s11 = inlined_call_operand.vmem [shape: f32[2,8,128], index: 11, kind: input, shape index: {}]
  %s12 = inlined_call_operand.vmem [shape: f32[2,16,128], index: 12, kind: input, shape index: {}]
  %s13 = inlined_call_operand.vmem [shape: f32[2,16,128], index: 13, kind: output, shape index: {0}, may-alias: {0,13}]
  %s14 = inlined_call_operand.vmem [shape: f32[2,16,128], index: 14, kind: output, shape index: {1}, may-alias: {1,14}]
  %15 = xla_tuple %s13, %s14
  %s16 = sld [smem:[#allocation0]]
  $region117: #{pallas_fwd.1} parent=0
    _
  %s18 = ssub.s32 1, %s16
  %s19 = scalar_select 0, %s18, %s16
  $region1: #{pallas_fwd.1} parent=0
    #allocation4 [shape = 'u8[393216]{0}', space=vmem, size = 0x60000, scoped, tag = 'input window, operand 4']
    #allocation5 [shape = 's32[2]{0}', space=sflag, size = 0x8, scoped, tag = 'scoped memory for pallas_fwd.1']
    #allocation6 [shape = 'u8[393216]{0}', space=vmem, size = 0x60000, scoped, tag = 'input window, operand 5']
    #allocation7 [shape = 's32[2]{0}', space=sflag, size = 0x8, scoped, tag = 'scoped memory for pallas_fwd.1']
    #allocation8 [shape = 'u8[393216]{0}', space=vmem, size = 0x60000, scoped, tag = 'input window, operand 6']
    #allocation9 [shape = 'u8[393216]{0}', space=vmem, size = 0x60000, scoped, tag = 'input window, operand 7']
    #allocation10 [shape = 's32[2]{0}', space=sflag, size = 0x8, scoped, tag = 'scoped memory for pallas_fwd.1']
    %20 = vsyncpa [#allocation5], 0
    %s21 = scalar_lea.sflag [#allocation5], 1
    %22 = vsyncpa %s21, 0
    %23 = vsyncpa [#allocation7], 0
    %s24 = scalar_lea.sflag [#allocation7], 1
    %25 = vsyncpa %s24, 0
    %26 = vsyncpa [#allocation10], 0
    %s27 = scalar_lea.sflag [#allocation10], 1
    %28 = vsyncpa %s27, 0
    loop: start=0, step=1, limit=6
    $region2: #{pallas_fwd.1} parent=1 // loop_pre_header
      _
    $region3: #{pallas_fwd.1} parent=1 // loop_header
      %s30 = sphi 0, %s34
      %p31 = scmp.ge.s32.totalorder %s30, 6
      %s37 = sphi 0, %s49
      %s38 = sphi 0, %s45
      %s39 = sphi 0, %s37
      %s40 = sphi 0, %s38
      %s41 = sphi 0, %s39
      %s42 = sphi 0, %s40
      %s52 = sphi 0, %s54
      %s55 = sphi 0, %s52
      %s56 = sphi 0, %s55
      %s72 = sphi 0, %s56
      %s78 = sphi 0, %s80
      %s81 = sphi 0, %s78
      %s82 = sphi 0, %s81
      %s98 = sphi 0, %s82
      %s104 = sphi 0, %s106
      %s107 = sphi 0, %s104
      %s108 = sphi 0, %s107
      %s124 = sphi 0, %s108
      %s130 = sphi 0, %s132
      %s133 = sphi 0, %s130
      %s134 = sphi 0, %s133
      %s150 = sphi 0, %s134
      %s156 = sphi 0, %s158
      %s159 = sphi 0, %s156
      %s160 = sphi 0, %s159
      %s176 = sphi 0, %s160
      %s182 = sphi 0, %s184
      %s185 = sphi 0, %s182
      %s186 = sphi 0, %s185
      %s202 = sphi 0, %s186
      %s208 = sphi 0, %s210
      %s211 = sphi 0, %s208
      %s212 = sphi 0, %s211
      %s228 = sphi 0, %s212
      %s234 = sphi 0, %s236
      %s237 = sphi 0, %s234
      %s238 = sphi 0, %s237
      %s254 = sphi 0, %s238
      %s260 = sphi 0, %s262
      %s263 = sphi 0, %s260
      %s264 = sphi 0, %s263
      %s280 = sphi 0, %s264
      %s286 = sphi 0, %s288
      %s289 = sphi 0, %s286
      %s290 = sphi 0, %s289
      %s306 = sphi 0, %s290
      %s312 = sphi 0, %s314
      %s315 = sphi 0, %s312
      %s316 = sphi 0, %s315
      %s332 = sphi 0, %s316
      %s338 = sphi 0, %s340
      %s341 = sphi 0, %s338
      %s342 = sphi 0, %s341
      %s358 = sphi 0, %s342
      %s364 = sphi 0, %s366
      %s367 = sphi 0, %s364
      %s368 = sphi 0, %s367
      %s384 = sphi 0, %s368
      %s390 = sphi 0, %s392
      %s393 = sphi 0, %s390
      %s394 = sphi 0, %s393
      %s410 = sphi 0, %s394
      %s416 = sphi 0, %s418
      %s419 = sphi 0, %s416
      %s420 = sphi 0, %s419
      %s436 = sphi 0, %s420
    $region4: #{pallas_fwd.1} parent=1 // loop_header_branch
      %33 = sbr.rel (%p31) target = $region8
    $region5: #{pallas_fwd.1} parent=1 // loop_body
      %s35 = ssub.s32 %s30, 1
      %s36 = ssub.s32 %s30, 2
      %s43 = sadd.s32 1, %s38
      %p44 = scmp.ge.s32.totalorder %s43, 2
      %s45 = scalar_select %p44, 0, %s43
      %s46 = sadd.s32 1, %s37
      %s47 = scalar_select %p44, %s46, %s37
      %p48 = scmp.ge.s32.totalorder %s47, 2
      %s49 = scalar_select %p48, 0, %s47
      %s50 = ssub.s32 %s37, %s49
      %p51 = scmp.eq.s32.totalorder %s50, 0
      %s53 = sadd.s32 %s52, 1
      %s54 = scalar_select %p51, %s52, %s53
      %p57 = pneg %p51
      %p58 = scmp.eq.s32.totalorder %s30, 3
      %p59 = por %p57, %p58
      %p60 = scmp.ne.s32.totalorder %s52, %s55
      %p61 = scmp.eq.s32.totalorder %s30, 0
      %p62 = por %p60, %p61
      %p63 = scmp.ne.s32.totalorder %s52, %s55
      %p64 = scmp.eq.s32.totalorder %s35, 3
      %p65 = por %p63, %p64
      %p66 = scmp.ne.s32.totalorder %s55, %s56
      %p67 = scmp.eq.s32.totalorder %s35, 0
      %p68 = por %p66, %p67
      %p69 = scmp.ne.s32.totalorder %s55, %s56
      %p70 = scmp.eq.s32.totalorder %s36, 3
      %p71 = por %p69, %p70
      %p73 = scmp.ne.s32.totalorder %s56, %s72
      %p74 = scmp.eq.s32.totalorder %s36, 0
      %p75 = por %p73, %p74
      %s76 = ssub.s32 %s37, %s49
      %p77 = scmp.eq.s32.totalorder %s76, 0
      %s79 = sadd.s32 %s78, 1
      %s80 = scalar_select %p77, %s78, %s79
      %p83 = pneg %p77
      %p84 = scmp.eq.s32.totalorder %s30, 3
      %p85 = por %p83, %p84
      %p86 = scmp.ne.s32.totalorder %s78, %s81
      %p87 = scmp.eq.s32.totalorder %s30, 0
      %p88 = por %p86, %p87
      %p89 = scmp.ne.s32.totalorder %s78, %s81
      %p90 = scmp.eq.s32.totalorder %s35, 3
      %p91 = por %p89, %p90
      %p92 = scmp.ne.s32.totalorder %s81, %s82
      %p93 = scmp.eq.s32.totalorder %s35, 0
      %p94 = por %p92, %p93
      %p95 = scmp.ne.s32.totalorder %s81, %s82
      %p96 = scmp.eq.s32.totalorder %s36, 3
      %p97 = por %p95, %p96
      %p99 = scmp.ne.s32.totalorder %s82, %s98
      %p100 = scmp.eq.s32.totalorder %s36, 0
      %p101 = por %p99, %p100
      %s102 = ssub.s32 %s38, %s45
      %p103 = scmp.eq.s32.totalorder %s102, 0
      %s105 = sadd.s32 %s104, 1
      %s106 = scalar_select %p103, %s104, %s105
      %p109 = pneg %p103
      %p110 = scmp.eq.s32.totalorder %s30, 3
      %p111 = por %p109, %p110
      %p112 = scmp.ne.s32.totalorder %s104, %s107
      %p113 = scmp.eq.s32.totalorder %s30, 0
      %p114 = por %p112, %p113
      %p115 = scmp.ne.s32.totalorder %s104, %s107
      %p116 = scmp.eq.s32.totalorder %s35, 3
      %p117 = por %p115, %p116
      %p118 = scmp.ne.s32.totalorder %s107, %s108
      %p119 = scmp.eq.s32.totalorder %s35, 0
      %p120 = por %p118, %p119
      %p121 = scmp.ne.s32.totalorder %s107, %s108
      %p122 = scmp.eq.s32.totalorder %s36, 3
      %p123 = por %p121, %p122
      %p125 = scmp.ne.s32.totalorder %s108, %s124
      %p126 = scmp.eq.s32.totalorder %s36, 0
      %p127 = por %p125, %p126
      %s128 = ssub.s32 %s38, %s45
      %p129 = scmp.eq.s32.totalorder %s128, 0
      %s131 = sadd.s32 %s130, 1
      %s132 = scalar_select %p129, %s130, %s131
      %p135 = pneg %p129
      %p136 = scmp.eq.s32.totalorder %s30, 3
      %p137 = por %p135, %p136
      %p138 = scmp.ne.s32.totalorder %s130, %s133
      %p139 = scmp.eq.s32.totalorder %s30, 0
      %p140 = por %p138, %p139
      %p141 = scmp.ne.s32.totalorder %s130, %s133
      %p142 = scmp.eq.s32.totalorder %s35, 3
      %p143 = por %p141, %p142
      %p144 = scmp.ne.s32.totalorder %s133, %s134
      %p145 = scmp.eq.s32.totalorder %s35, 0
      %p146 = por %p144, %p145
      %p147 = scmp.ne.s32.totalorder %s133, %s134
      %p148 = scmp.eq.s32.totalorder %s36, 3
      %p149 = por %p147, %p148
      %p151 = scmp.ne.s32.totalorder %s134, %s150
      %p152 = scmp.eq.s32.totalorder %s36, 0
      %p153 = por %p151, %p152
      %s154 = ssub.s32 %s38, %s45
      %p155 = scmp.eq.s32.totalorder %s154, 0
      %s157 = sadd.s32 %s156, 1
      %s158 = scalar_select %p155, %s156, %s157
      %p161 = pneg %p155
      %p162 = scmp.eq.s32.totalorder %s30, 3
      %p163 = por %p161, %p162
      %p164 = scmp.ne.s32.totalorder %s156, %s159
      %p165 = scmp.eq.s32.totalorder %s30, 0
      %p166 = por %p164, %p165
      %p167 = scmp.ne.s32.totalorder %s156, %s159
      %p168 = scmp.eq.s32.totalorder %s35, 3
      %p169 = por %p167, %p168
      %p170 = scmp.ne.s32.totalorder %s159, %s160
      %p171 = scmp.eq.s32.totalorder %s35, 0
      %p172 = por %p170, %p171
      %p173 = scmp.ne.s32.totalorder %s159, %s160
      %p174 = scmp.eq.s32.totalorder %s36, 3
      %p175 = por %p173, %p174
      %p177 = scmp.ne.s32.totalorder %s160, %s176
      %p178 = scmp.eq.s32.totalorder %s36, 0
      %p179 = por %p177, %p178
      %s180 = ssub.s32 %s38, %s45
      %p181 = scmp.eq.s32.totalorder %s180, 0
      %s183 = sadd.s32 %s182, 1
      %s184 = scalar_select %p181, %s182, %s183
      %p187 = pneg %p181
      %p188 = scmp.eq.s32.totalorder %s30, 3
      %p189 = por %p187, %p188
      %p190 = scmp.ne.s32.totalorder %s182, %s185
      %p191 = scmp.eq.s32.totalorder %s30, 0
      %p192 = por %p190, %p191
      %p193 = scmp.ne.s32.totalorder %s182, %s185
      %p194 = scmp.eq.s32.totalorder %s35, 3
      %p195 = por %p193, %p194
      %p196 = scmp.ne.s32.totalorder %s185, %s186
      %p197 = scmp.eq.s32.totalorder %s35, 0
      %p198 = por %p196, %p197
      %p199 = scmp.ne.s32.totalorder %s185, %s186
      %p200 = scmp.eq.s32.totalorder %s36, 3
      %p201 = por %p199, %p200
      %p203 = scmp.ne.s32.totalorder %s186, %s202
      %p204 = scmp.eq.s32.totalorder %s36, 0
      %p205 = por %p203, %p204
      %s206 = ssub.s32 %s38, %s45
      %p207 = scmp.eq.s32.totalorder %s206, 0
      %s209 = sadd.s32 %s208, 1
      %s210 = scalar_select %p207, %s208, %s209
      %p213 = pneg %p207
      %p214 = scmp.eq.s32.totalorder %s30, 3
      %p215 = por %p213, %p214
      %p216 = scmp.ne.s32.totalorder %s208, %s211
      %p217 = scmp.eq.s32.totalorder %s30, 0
      %p218 = por %p216, %p217
      %p219 = scmp.ne.s32.totalorder %s208, %s211
      %p220 = scmp.eq.s32.totalorder %s35, 3
      %p221 = por %p219, %p220
      %p222 = scmp.ne.s32.totalorder %s211, %s212
      %p223 = scmp.eq.s32.totalorder %s35, 0
      %p224 = por %p222, %p223
      %p225 = scmp.ne.s32.totalorder %s211, %s212
      %p226 = scmp.eq.s32.totalorder %s36, 3
      %p227 = por %p225, %p226
      %p229 = scmp.ne.s32.totalorder %s212, %s228
      %p230 = scmp.eq.s32.totalorder %s36, 0
      %p231 = por %p229, %p230
      %s232 = ssub.s32 %s38, %s45
      %p233 = scmp.eq.s32.totalorder %s232, 0
      %s235 = sadd.s32 %s234, 1
      %s236 = scalar_select %p233, %s234, %s235
      %p239 = pneg %p233
      %p240 = scmp.eq.s32.totalorder %s30, 3
      %p241 = por %p239, %p240
      %p242 = scmp.ne.s32.totalorder %s234, %s237
      %p243 = scmp.eq.s32.totalorder %s30, 0
      %p244 = por %p242, %p243
      %p245 = scmp.ne.s32.totalorder %s234, %s237
      %p246 = scmp.eq.s32.totalorder %s35, 3
      %p247 = por %p245, %p246
      %p248 = scmp.ne.s32.totalorder %s237, %s238
      %p249 = scmp.eq.s32.totalorder %s35, 0
      %p250 = por %p248, %p249
      %p251 = scmp.ne.s32.totalorder %s237, %s238
      %p252 = scmp.eq.s32.totalorder %s36, 3
      %p253 = por %p251, %p252
      %p255 = scmp.ne.s32.totalorder %s238, %s254
      %p256 = scmp.eq.s32.totalorder %s36, 0
      %p257 = por %p255, %p256
      %s258 = ssub.s32 %s38, %s45
      %p259 = scmp.eq.s32.totalorder %s258, 0
      %s261 = sadd.s32 %s260, 1
      %s262 = scalar_select %p259, %s260, %s261
      %p265 = pneg %p259
      %p266 = scmp.eq.s32.totalorder %s30, 3
      %p267 = por %p265, %p266
      %p268 = scmp.ne.s32.totalorder %s260, %s263
      %p269 = scmp.eq.s32.totalorder %s30, 0
      %p270 = por %p268, %p269
      %p271 = scmp.ne.s32.totalorder %s260, %s263
      %p272 = scmp.eq.s32.totalorder %s35, 3
      %p273 = por %p271, %p272
      %p274 = scmp.ne.s32.totalorder %s263, %s264
      %p275 = scmp.eq.s32.totalorder %s35, 0
      %p276 = por %p274, %p275
      %p277 = scmp.ne.s32.totalorder %s263, %s264
      %p278 = scmp.eq.s32.totalorder %s36, 3
      %p279 = por %p277, %p278
      %p281 = scmp.ne.s32.totalorder %s264, %s280
      %p282 = scmp.eq.s32.totalorder %s36, 0
      %p283 = por %p281, %p282
      %s284 = ssub.s32 %s38, %s45
      %p285 = scmp.eq.s32.totalorder %s284, 0
      %s287 = sadd.s32 %s286, 1
      %s288 = scalar_select %p285, %s286, %s287
      %p291 = pneg %p285
      %p292 = scmp.eq.s32.totalorder %s30, 3
      %p293 = por %p291, %p292
      %p294 = scmp.ne.s32.totalorder %s286, %s289
      %p295 = scmp.eq.s32.totalorder %s30, 0
      %p296 = por %p294, %p295
      %p297 = scmp.ne.s32.totalorder %s286, %s289
      %p298 = scmp.eq.s32.totalorder %s35, 3
      %p299 = por %p297, %p298
      %p300 = scmp.ne.s32.totalorder %s289, %s290
      %p301 = scmp.eq.s32.totalorder %s35, 0
      %p302 = por %p300, %p301
      %p303 = scmp.ne.s32.totalorder %s289, %s290
      %p304 = scmp.eq.s32.totalorder %s36, 3
      %p305 = por %p303, %p304
      %p307 = scmp.ne.s32.totalorder %s290, %s306
      %p308 = scmp.eq.s32.totalorder %s36, 0
      %p309 = por %p307, %p308
      %s310 = ssub.s32 %s38, %s45
      %p311 = scmp.eq.s32.totalorder %s310, 0
      %s313 = sadd.s32 %s312, 1
      %s314 = scalar_select %p311, %s312, %s313
      %p317 = pneg %p311
      %p318 = scmp.eq.s32.totalorder %s30, 3
      %p319 = por %p317, %p318
      %p320 = scmp.ne.s32.totalorder %s312, %s315
      %p321 = scmp.eq.s32.totalorder %s30, 0
      %p322 = por %p320, %p321
      %p323 = scmp.ne.s32.totalorder %s312, %s315
      %p324 = scmp.eq.s32.totalorder %s35, 3
      %p325 = por %p323, %p324
      %p326 = scmp.ne.s32.totalorder %s315, %s316
      %p327 = scmp.eq.s32.totalorder %s35, 0
      %p328 = por %p326, %p327
      %p329 = scmp.ne.s32.totalorder %s315, %s316
      %p330 = scmp.eq.s32.totalorder %s36, 3
      %p331 = por %p329, %p330
      %p333 = scmp.ne.s32.totalorder %s316, %s332
      %p334 = scmp.eq.s32.totalorder %s36, 0
      %p335 = por %p333, %p334
      %s336 = ssub.s32 %s38, %s45
      %p337 = scmp.eq.s32.totalorder %s336, 0
      %s339 = sadd.s32 %s338, 1
      %s340 = scalar_select %p337, %s338, %s339
      %p343 = pneg %p337
      %p344 = scmp.eq.s32.totalorder %s30, 3
      %p345 = por %p343, %p344
      %p346 = scmp.ne.s32.totalorder %s338, %s341
      %p347 = scmp.eq.s32.totalorder %s30, 0
      %p348 = por %p346, %p347
      %p349 = scmp.ne.s32.totalorder %s338, %s341
      %p350 = scmp.eq.s32.totalorder %s35, 3
      %p351 = por %p349, %p350
      %p352 = scmp.ne.s32.totalorder %s341, %s342
      %p353 = scmp.eq.s32.totalorder %s35, 0
      %p354 = por %p352, %p353
      %p355 = scmp.ne.s32.totalorder %s341, %s342
      %p356 = scmp.eq.s32.totalorder %s36, 3
      %p357 = por %p355, %p356
      %p359 = scmp.ne.s32.totalorder %s342, %s358
      %p360 = scmp.eq.s32.totalorder %s36, 0
      %p361 = por %p359, %p360
      %s362 = ssub.s32 %s38, %s45
      %p363 = scmp.eq.s32.totalorder %s362, 0
      %s365 = sadd.s32 %s364, 1
      %s366 = scalar_select %p363, %s364, %s365
      %p369 = pneg %p363
      %p370 = scmp.eq.s32.totalorder %s30, 3
      %p371 = por %p369, %p370
      %p372 = scmp.ne.s32.totalorder %s364, %s367
      %p373 = scmp.eq.s32.totalorder %s30, 0
      %p374 = por %p372, %p373
      %p375 = scmp.ne.s32.totalorder %s364, %s367
      %p376 = scmp.eq.s32.totalorder %s35, 3
      %p377 = por %p375, %p376
      %p378 = scmp.ne.s32.totalorder %s367, %s368
      %p379 = scmp.eq.s32.totalorder %s35, 0
      %p380 = por %p378, %p379
      %p381 = scmp.ne.s32.totalorder %s367, %s368
      %p382 = scmp.eq.s32.totalorder %s36, 3
      %p383 = por %p381, %p382
      %p385 = scmp.ne.s32.totalorder %s368, %s384
      %p386 = scmp.eq.s32.totalorder %s36, 0
      %p387 = por %p385, %p386
      %s388 = ssub.s32 %s37, %s49
      %p389 = scmp.eq.s32.totalorder %s388, 0
      %s391 = sadd.s32 %s390, 1
      %s392 = scalar_select %p389, %s390, %s391
      %p395 = pneg %p389
      %p396 = scmp.eq.s32.totalorder %s30, 3
      %p397 = por %p395, %p396
      %p398 = scmp.ne.s32.totalorder %s390, %s393
      %p399 = scmp.eq.s32.totalorder %s30, 0
      %p400 = por %p398, %p399
      %p401 = scmp.ne.s32.totalorder %s390, %s393
      %p402 = scmp.eq.s32.totalorder %s35, 3
      %p403 = por %p401, %p402
      %p404 = scmp.ne.s32.totalorder %s393, %s394
      %p405 = scmp.eq.s32.totalorder %s35, 0
      %p406 = por %p404, %p405
      %p407 = scmp.ne.s32.totalorder %s393, %s394
      %p408 = scmp.eq.s32.totalorder %s36, 3
      %p409 = por %p407, %p408
      %p411 = scmp.ne.s32.totalorder %s394, %s410
      %p412 = scmp.eq.s32.totalorder %s36, 0
      %p413 = por %p411, %p412
      %s414 = ssub.s32 %s37, %s49
      %p415 = scmp.eq.s32.totalorder %s414, 0
      %s417 = sadd.s32 %s416, 1
      %s418 = scalar_select %p415, %s416, %s417
      %p421 = pneg %p415
      %p422 = scmp.eq.s32.totalorder %s30, 3
      %p423 = por %p421, %p422
      %p424 = scmp.ne.s32.totalorder %s416, %s419
      %p425 = scmp.eq.s32.totalorder %s30, 0
      %p426 = por %p424, %p425
      %p427 = scmp.ne.s32.totalorder %s416, %s419
      %p428 = scmp.eq.s32.totalorder %s35, 3
      %p429 = por %p427, %p428
      %p430 = scmp.ne.s32.totalorder %s419, %s420
      %p431 = scmp.eq.s32.totalorder %s35, 0
      %p432 = por %p430, %p431
      %p433 = scmp.ne.s32.totalorder %s419, %s420
      %p434 = scmp.eq.s32.totalorder %s36, 3
      %p435 = por %p433, %p434
      %p437 = scmp.ne.s32.totalorder %s420, %s436
      %p438 = scmp.eq.s32.totalorder %s36, 0
      %p439 = por %p437, %p438
      %p440 = scmp.le.s32.totalorder 1, %s30
      %p441 = scmp.lt.s32.totalorder %s30, 5
      %p442 = pnand %p440, %p441
      %p443 = pneg %p442
      // Predicated region
      $region9: #{pallas_fwd.1} parent=5 // pred_check
        _
      $region10: #{pallas_fwd.1} parent=5 // pred_check_branch
        %445 = sbr.rel (%p442) target = $region12
      $region11: #{pallas_fwd.1} parent=5 // pred_region
        %s446 = ssub.s32 %s30, 1
      $region12: #{pallas_fwd.1} parent=5 // pred_fallthru
        _
      %p447 = scmp.lt.s32.totalorder %s30, 4
      // Predicated region
      $region13: #{pallas_fwd.1} parent=5 // pred_check
        %p448 = pneg %p447
      $region14: #{pallas_fwd.1} parent=5 // pred_check_branch
        %450 = sbr.rel (%p448) target = $region16
      $region15: #{pallas_fwd.1} parent=5 // pred_region
        // Predicated region
        $region17: #{pallas_fwd.1} parent=15 // pred_check
          %p451 = pneg %p62
        $region18: #{pallas_fwd.1} parent=15 // pred_check_branch
          %453 = sbr.rel (%p451) target = $region20
        $region19: #{pallas_fwd.1} parent=15 // pred_region
          %p454 = scmp.lt.s32.totalorder %s37, 1
          %s455 = scalar_select %p454, %s37, 1
          %s456 = smul.addr %s455, 2
          %s457 = smul.addr %s456, 8
          %s458 = scalar_lea.vmem %s0, %s457
        $region20: #{pallas_fwd.1} parent=15 // pred_fallthru
          _
        // Predicated region
        $region21: #{pallas_fwd.1} parent=15 // pred_check
          %p459 = pneg %p88
        $region22: #{pallas_fwd.1} parent=15 // pred_check_branch
          %461 = sbr.rel (%p459) target = $region24
        $region23: #{pallas_fwd.1} parent=15 // pred_region
          %p462 = scmp.lt.s32.totalorder %s37, 1
          %s463 = scalar_select %p462, %s37, 1
          %s464 = smul.addr %s463, 2
          %s465 = smul.addr %s464, 8
          %s466 = scalar_lea.vmem %s1, %s465
        $region24: #{pallas_fwd.1} parent=15 // pred_fallthru
          _
        // Predicated region
        $region25: #{pallas_fwd.1} parent=15 // pred_check
          %p467 = pneg %p114
        $region26: #{pallas_fwd.1} parent=15 // pred_check_branch
          %469 = sbr.rel (%p467) target = $region28
        $region27: #{pallas_fwd.1} parent=15 // pred_region
          %p470 = scmp.lt.s32.totalorder %s38, 1
          %s471 = scalar_select %p470, %s38, 1
          %s472 = smul.addr %s471, 48
          %s473 = smul.addr %s472, 8
          %s474 = scalar_lea.vmem %s2, %s473
        $region28: #{pallas_fwd.1} parent=15 // pred_fallthru
          _
        // Predicated region
        $region29: #{pallas_fwd.1} parent=15 // pred_check
          %p475 = pneg %p140
        $region30: #{pallas_fwd.1} parent=15 // pred_check_branch
          %477 = sbr.rel (%p475) target = $region32
        $region31: #{pallas_fwd.1} parent=15 // pred_region
          %p478 = scmp.lt.s32.totalorder %s38, 1
          %s479 = scalar_select %p478, %s38, 1
          %s480 = smul.addr %s479, 48
          %s481 = smul.addr %s480, 8
          %s482 = scalar_lea.vmem %s3, %s481
        $region32: #{pallas_fwd.1} parent=15 // pred_fallthru
          _
        // Predicated region
        $region33: #{pallas_fwd.1} parent=15 // pred_check
          %p483 = pneg %p166
        $region34: #{pallas_fwd.1} parent=15 // pred_check_branch
          %485 = sbr.rel (%p483) target = $region36
        $region35: #{pallas_fwd.1} parent=15 // pred_region
          %s486 = sand.u32 %s156, 1
          %s487 = scalar_lea.sflag [#allocation5], %s486
          %s488 = sand.u32 %s156, 1
          %s489 = smul.addr %s488, 384
          %s490 = scalar_lea.vmem [#allocation4], %s489
          %s492 = ssub.s32 6144, 6144
          %493 = vsyncadd %s487, %s492
          %s494 = smul.addr %s38, 48
          %s495 = smul.addr %s494, 128
          %s496 = scalar_lea.hbm %s4, %s495
          %s497 = sshll.u32 %s490, 4
          %s498 = int_to_ptr.vmem [resolvable:$true] %s497
          %503 = dma.hbm_to_vmem [thread:$0]  %s496, 6144, %s498, %s487, 128, 128, 8
        $region36: #{pallas_fwd.1} parent=15 // pred_fallthru
          _
        // Predicated region
        $region37: #{pallas_fwd.1} parent=15 // pred_check
          %p504 = pneg %p192
        $region38: #{pallas_fwd.1} parent=15 // pred_check_branch
          %506 = sbr.rel (%p504) target = $region40
        $region39: #{pallas_fwd.1} parent=15 // pred_region
          %s507 = sand.u32 %s30, 1
          %s508 = scalar_lea.sflag [#allocation7], %s507
          %s509 = sand.u32 %s182, 1
          %s510 = smul.addr %s509, 384
          %s511 = scalar_lea.vmem [#allocation6], %s510
          %s513 = ssub.s32 6144, 6144
          %514 = vsyncadd %s508, %s513
          %s515 = smul.addr %s38, 48
          %s516 = smul.addr %s515, 128
          %s517 = scalar_lea.hbm %s5, %s516
          %s518 = sshll.u32 %s511, 4
          %s519 = int_to_ptr.vmem [resolvable:$true] %s518
          %524 = dma.hbm_to_vmem [thread:$0]  %s517, 6144, %s519, %s508, 128, 128, 8
        $region40: #{pallas_fwd.1} parent=15 // pred_fallthru
          _
        // Predicated region
        $region41: #{pallas_fwd.1} parent=15 // pred_check
          %p525 = pneg %p218
        $region42: #{pallas_fwd.1} parent=15 // pred_check_branch
          %527 = sbr.rel (%p525) target = $region44
        $region43: #{pallas_fwd.1} parent=15 // pred_region
          %s528 = sand.u32 %s30, 1
          %s529 = scalar_lea.sflag [#allocation7], %s528
          %s530 = sand.u32 %s208, 1
          %s531 = smul.addr %s530, 384
          %s532 = scalar_lea.vmem [#allocation8], %s531
          %s534 = ssub.s32 6144, 6144
          %535 = vsyncadd %s529, %s534
          %s536 = smul.addr %s38, 48
          %s537 = smul.addr %s536, 128
          %s538 = scalar_lea.hbm %s6, %s537
          %s539 = sshll.u32 %s532, 4
          %s540 = int_to_ptr.vmem [resolvable:$true] %s539
          %545 = dma.hbm_to_vmem [thread:$0]  %s538, 6144, %s540, %s529, 128, 128, 8
        $region44: #{pallas_fwd.1} parent=15 // pred_fallthru
          _
        // Predicated region
        $region45: #{pallas_fwd.1} parent=15 // pred_check
          %p546 = pneg %p244
        $region46: #{pallas_fwd.1} parent=15 // pred_check_branch
          %548 = sbr.rel (%p546) target = $region48
        $region47: #{pallas_fwd.1} parent=15 // pred_region
          %s549 = sand.u32 %s234, 1
          %s550 = scalar_lea.sflag [#allocation10], %s549
          %s551 = sand.u32 %s234, 1
          %s552 = smul.addr %s551, 384
          %s553 = scalar_lea.vmem [#allocation9], %s552
          %s555 = ssub.s32 6144, 6144
          %556 = vsyncadd %s550, %s555
          %s557 = smul.addr %s38, 48
          %s558 = smul.addr %s557, 128
          %s559 = scalar_lea.hbm %s7, %s558
          %s560 = sshll.u32 %s553, 4
          %s561 = int_to_ptr.vmem [resolvable:$true] %s560
          %566 = dma.hbm_to_vmem [thread:$0]  %s559, 6144, %s561, %s550, 128, 128, 8
        $region48: #{pallas_fwd.1} parent=15 // pred_fallthru
          _
        // Predicated region
        $region49: #{pallas_fwd.1} parent=15 // pred_check
          %p567 = pneg %p270
        $region50: #{pallas_fwd.1} parent=15 // pred_check_branch
          %569 = sbr.rel (%p567) target = $region52
        $region51: #{pallas_fwd.1} parent=15 // pred_region
          %p570 = scmp.lt.s32.totalorder %s38, 1
          %s571 = scalar_select %p570, %s38, 1
          %s572 = smul.addr %s571, 16
          %s573 = smul.addr %s572, 8
          %s574 = scalar_lea.vmem %s8, %s573
        $region52: #{pallas_fwd.1} parent=15 // pred_fallthru
          _
        // Predicated region
        $region53: #{pallas_fwd.1} parent=15 // pred_check
          %p575 = pneg %p296
        $region54: #{pallas_fwd.1} parent=15 // pred_check_branch
          %577 = sbr.rel (%p575) target = $region56
        $region55: #{pallas_fwd.1} parent=15 // pred_region
          %p578 = scmp.lt.s32.totalorder %s38, 1
          %s579 = scalar_select %p578, %s38, 1
          %s580 = smul.addr %s579, 8
          %s581 = scalar_lea.vmem %s9, %s580
        $region56: #{pallas_fwd.1} parent=15 // pred_fallthru
          _
        // Predicated region
        $region57: #{pallas_fwd.1} parent=15 // pred_check
          %p582 = pneg %p322
        $region58: #{pallas_fwd.1} parent=15 // pred_check_branch
          %584 = sbr.rel (%p582) target = $region60
        $region59: #{pallas_fwd.1} parent=15 // pred_region
          %p585 = scmp.lt.s32.totalorder %s38, 1
          %s586 = scalar_select %p585, %s38, 1
          %s587 = smul.addr %s586, 16
          %s588 = smul.addr %s587, 8
          %s589 = scalar_lea.vmem %s10, %s588
        $region60: #{pallas_fwd.1} parent=15 // pred_fallthru
          _
        // Predicated region
        $region61: #{pallas_fwd.1} parent=15 // pred_check
          %p590 = pneg %p348
        $region62: #{pallas_fwd.1} parent=15 // pred_check_branch
          %592 = sbr.rel (%p590) target = $region64
        $region63: #{pallas_fwd.1} parent=15 // pred_region
          %p593 = scmp.lt.s32.totalorder %s38, 1
          %s594 = scalar_select %p593, %s38, 1
          %s595 = smul.addr %s594, 8
          %s596 = scalar_lea.vmem %s11, %s595
        $region64: #{pallas_fwd.1} parent=15 // pred_fallthru
          _
        // Predicated region
        $region65: #{pallas_fwd.1} parent=15 // pred_check
          %p597 = pneg %p374
        $region66: #{pallas_fwd.1} parent=15 // pred_check_branch
          %599 = sbr.rel (%p597) target = $region68
        $region67: #{pallas_fwd.1} parent=15 // pred_region
          %p600 = scmp.lt.s32.totalorder %s38, 1
          %s601 = scalar_select %p600, %s38, 1
          %s602 = smul.addr %s601, 2
          %s603 = smul.addr %s602, 8
          %s604 = scalar_lea.vmem %s12, %s603
        $region68: #{pallas_fwd.1} parent=15 // pred_fallthru
          _
      $region16: #{pallas_fwd.1} parent=5 // pred_fallthru
        _
      %p605 = scmp.le.s32.totalorder 1, %s30
      %p606 = scmp.lt.s32.totalorder %s30, 5
      %p607 = pnand %p605, %p606
      %p608 = pneg %p607
      // Predicated region
      $region69: #{pallas_fwd.1} parent=5 // pred_check
        _
      $region70: #{pallas_fwd.1} parent=5 // pred_check_branch
        %610 = sbr.rel (%p607) target = $region72
      $region71: #{pallas_fwd.1} parent=5 // pred_region
        %s611 = ssub.s32 %s30, 1
        %s612 = sand.u32 %s159, 1
        %s613 = scalar_lea.sflag [#allocation5], %s612
        %s614 = sand.u32 %s159, 1
        %s615 = smul.addr %s614, 384
        %s616 = scalar_lea.vmem [#allocation4], %s615
        // Predicated region
        $region73: #{pallas_fwd.1} parent=71 // pred_check
          %p617 = pneg %p172
        $region74: #{pallas_fwd.1} parent=71 // pred_check_branch
          %619 = sbr.rel (%p617) target = $region76
        $region75: #{pallas_fwd.1} parent=71 // pred_region
          %620 = dma.done %s613, 6144
        $region76: #{pallas_fwd.1} parent=71 // pred_fallthru
          _
        %s621 = sand.u32 %s35, 1
        %s622 = scalar_lea.sflag [#allocation7], %s621
        %s623 = sand.u32 %s185, 1
        %s624 = smul.addr %s623, 384
        %s625 = scalar_lea.vmem [#allocation6], %s624
        // Predicated region
        $region77: #{pallas_fwd.1} parent=71 // pred_check
          %p626 = pneg %p198
        $region78: #{pallas_fwd.1} parent=71 // pred_check_branch
          %628 = sbr.rel (%p626) target = $region80
        $region79: #{pallas_fwd.1} parent=71 // pred_region
          %629 = dma.done %s622, 6144
        $region80: #{pallas_fwd.1} parent=71 // pred_fallthru
          _
        %s630 = sand.u32 %s35, 1
        %s631 = scalar_lea.sflag [#allocation7], %s630
        %s632 = sand.u32 %s211, 1
        %s633 = smul.addr %s632, 384
        %s634 = scalar_lea.vmem [#allocation8], %s633
        // Predicated region
        $region81: #{pallas_fwd.1} parent=71 // pred_check
          %p635 = pneg %p224
        $region82: #{pallas_fwd.1} parent=71 // pred_check_branch
          %637 = sbr.rel (%p635) target = $region84
        $region83: #{pallas_fwd.1} parent=71 // pred_region
          %638 = dma.done %s631, 6144
        $region84: #{pallas_fwd.1} parent=71 // pred_fallthru
          _
        %s639 = sand.u32 %s237, 1
        %s640 = scalar_lea.sflag [#allocation10], %s639
        %s641 = sand.u32 %s237, 1
        %s642 = smul.addr %s641, 384
        %s643 = scalar_lea.vmem [#allocation9], %s642
        // Predicated region
        $region85: #{pallas_fwd.1} parent=71 // pred_check
          %p644 = pneg %p250
        $region86: #{pallas_fwd.1} parent=71 // pred_check_branch
          %646 = sbr.rel (%p644) target = $region88
        $region87: #{pallas_fwd.1} parent=71 // pred_region
          %647 = dma.done %s640, 6144
        $region88: #{pallas_fwd.1} parent=71 // pred_fallthru
          _
        %p648 = scmp.lt.s32.totalorder %s39, 1
        %s649 = scalar_select %p648, %s39, 1
        %s650 = smul.addr %s649, 2
        %s651 = smul.addr %s650, 8
        %s652 = scalar_lea.vmem %s0, %s651
        %p653 = pneg %p68
        %p654 = pneg %p65
        %p655 = scmp.lt.s32.totalorder %s39, 1
        %s656 = scalar_select %p655, %s39, 1
        %s657 = smul.addr %s656, 2
        %s658 = smul.addr %s657, 8
        %s659 = scalar_lea.vmem %s1, %s658
        %p660 = pneg %p94
        %p661 = pneg %p91
        %p662 = scmp.lt.s32.totalorder %s40, 1
        %s663 = scalar_select %p662, %s40, 1
        %s664 = smul.addr %s663, 48
        %s665 = smul.addr %s664, 8
        %s666 = scalar_lea.vmem %s2, %s665
        %p667 = pneg %p120
        %p668 = pneg %p117
        %p669 = scmp.lt.s32.totalorder %s40, 1
        %s670 = scalar_select %p669, %s40, 1
        %s671 = smul.addr %s670, 48
        %s672 = smul.addr %s671, 8
        %s673 = scalar_lea.vmem %s3, %s672
        %p674 = pneg %p146
        %p675 = pneg %p143
        %s676 = sand.u32 %s159, 1
        %s677 = scalar_lea.sflag [#allocation5], %s676
        %s678 = sand.u32 %s159, 1
        %s679 = smul.addr %s678, 384
        %s680 = scalar_lea.vmem [#allocation4], %s679
        %p681 = pneg %p172
        %p682 = pneg %p169
        %s683 = sand.u32 %s35, 1
        %s684 = scalar_lea.sflag [#allocation7], %s683
        %s685 = sand.u32 %s185, 1
        %s686 = smul.addr %s685, 384
        %s687 = scalar_lea.vmem [#allocation6], %s686
        %p688 = pneg %p198
        %p689 = pneg %p195
        %s690 = sand.u32 %s35, 1
        %s691 = scalar_lea.sflag [#allocation7], %s690
        %s692 = sand.u32 %s211, 1
        %s693 = smul.addr %s692, 384
        %s694 = scalar_lea.vmem [#allocation8], %s693
        %p695 = pneg %p224
        %p696 = pneg %p221
        %s697 = sand.u32 %s237, 1
        %s698 = scalar_lea.sflag [#allocation10], %s697
        %s699 = sand.u32 %s237, 1
        %s700 = smul.addr %s699, 384
        %s701 = scalar_lea.vmem [#allocation9], %s700
        %p702 = pneg %p250
        %p703 = pneg %p247
        %p704 = scmp.lt.s32.totalorder %s40, 1
        %s705 = scalar_select %p704, %s40, 1
        %s706 = smul.addr %s705, 16
        %s707 = smul.addr %s706, 8
        %s708 = scalar_lea.vmem %s8, %s707
        %p709 = pneg %p276
        %p710 = pneg %p273
        %p711 = scmp.lt.s32.totalorder %s40, 1
        %s712 = scalar_select %p711, %s40, 1
        %s713 = smul.addr %s712, 8
        %s714 = scalar_lea.vmem %s9, %s713
        %p715 = pneg %p302
        %p716 = pneg %p299
        %p717 = scmp.lt.s32.totalorder %s40, 1
        %s718 = scalar_select %p717, %s40, 1
        %s719 = smul.addr %s718, 16
        %s720 = smul.addr %s719, 8
        %s721 = scalar_lea.vmem %s10, %s720
        %p722 = pneg %p328
        %p723 = pneg %p325
        %p724 = scmp.lt.s32.totalorder %s40, 1
        %s725 = scalar_select %p724, %s40, 1
        %s726 = smul.addr %s725, 8
        %s727 = scalar_lea.vmem %s11, %s726
        %p728 = pneg %p354
        %p729 = pneg %p351
        %p730 = scmp.lt.s32.totalorder %s40, 1
        %s731 = scalar_select %p730, %s40, 1
        %s732 = smul.addr %s731, 2
        %s733 = smul.addr %s732, 8
        %s734 = scalar_lea.vmem %s12, %s733
        %p735 = pneg %p380
        %p736 = pneg %p377
        %p737 = pneg %p406
        %p738 = pneg %p403
        %p739 = scmp.lt.s32.totalorder %s39, 1
        %s740 = scalar_select %p739, %s39, 1
        %s741 = smul.addr %s740, 2
        %s742 = smul.addr %s741, 8
        %s743 = scalar_lea.vmem %s13, %s742
        %p744 = pneg %p432
        %p745 = pneg %p429
        %p746 = scmp.lt.s32.totalorder %s39, 1
        %s747 = scalar_select %p746, %s39, 1
        %s748 = smul.addr %s747, 2
        %s749 = smul.addr %s748, 8
        %s750 = scalar_lea.vmem %s14, %s749
        %p751 = scmp.lt.s32.totalorder %s39, 1
        %s752 = scalar_select %p751, %s39, 1
        %s753 = smul.addr %s752, 2
        %s754 = smul.addr %s753, 8
        %s755 = scalar_lea.vmem %s0, %s754
        %p756 = scmp.lt.s32.totalorder %s39, 1
        %s757 = scalar_select %p756, %s39, 1
        %s758 = smul.addr %s757, 2
        %s759 = smul.addr %s758, 8
        %s760 = scalar_lea.vmem %s1, %s759
        %p761 = scmp.lt.s32.totalorder %s40, 1
        %s762 = scalar_select %p761, %s40, 1
        %s763 = smul.addr %s762, 48
        %s764 = smul.addr %s763, 8
        %s765 = scalar_lea.vmem %s2, %s764
        %p766 = scmp.lt.s32.totalorder %s40, 1
        %s767 = scalar_select %p766, %s40, 1
        %s768 = smul.addr %s767, 48
        %s769 = smul.addr %s768, 8
        %s770 = scalar_lea.vmem %s3, %s769
        %p771 = scmp.lt.s32.totalorder %s40, 1
        %s772 = scalar_select %p771, %s40, 1
        %s773 = smul.addr %s772, 16
        %s774 = smul.addr %s773, 8
        %s775 = scalar_lea.vmem %s8, %s774
        %p776 = scmp.lt.s32.totalorder %s40, 1
        %s777 = scalar_select %p776, %s40, 1
        %s778 = smul.addr %s777, 8
        %s779 = scalar_lea.vmem %s9, %s778
        %p780 = scmp.lt.s32.totalorder %s40, 1
        %s781 = scalar_select %p780, %s40, 1
        %s782 = smul.addr %s781, 16
        %s783 = smul.addr %s782, 8
        %s784 = scalar_lea.vmem %s10, %s783
        %p785 = scmp.lt.s32.totalorder %s40, 1
        %s786 = scalar_select %p785, %s40, 1
        %s787 = smul.addr %s786, 8
        %s788 = scalar_lea.vmem %s11, %s787
        %p789 = scmp.lt.s32.totalorder %s40, 1
        %s790 = scalar_select %p789, %s40, 1
        %s791 = smul.addr %s790, 2
        %s792 = smul.addr %s791, 8
        %s793 = scalar_lea.vmem %s12, %s792
        %p794 = scmp.lt.s32.totalorder %s39, 1
        %s795 = scalar_select %p794, %s39, 1
        %s796 = smul.addr %s795, 2
        %s797 = smul.addr %s796, 8
        %s798 = scalar_lea.vmem %s13, %s797
        %p799 = scmp.lt.s32.totalorder %s39, 1
        %s800 = scalar_select %p799, %s39, 1
        %s801 = smul.addr %s800, 2
        %s802 = smul.addr %s801, 8
        %s803 = scalar_lea.vmem %s14, %s802
        %p804 = scmp.eq.s32.totalorder %s40, 0
        // Predicated region
        $region89: #{pallas_fwd.1} parent=71 // pred_check
          %p805 = pneg %p804
        $region90: #{pallas_fwd.1} parent=71 // pred_check_branch
          %807 = sbr.rel (%p805) target = $region92
        $region91: #{pallas_fwd.1} parent=71 // pred_region
          %v808 = vld [vmem:[%s755] sm:$0xff]
          %v809 = vld [vmem:[%s755 + $0x8] sm:$0xff]
          %810 = vst [vmem:[#allocation2] sm:$0xff] %v808
          %811 = vst [vmem:[#allocation2 + $0x8] sm:$0xff] %v809
          %v812 = vld [vmem:[%s760] sm:$0xff]
          %v813 = vld [vmem:[%s760 + $0x8] sm:$0xff]
          %814 = vst [vmem:[#allocation3] sm:$0xff] %v812
          %815 = vst [vmem:[#allocation3 + $0x8] sm:$0xff] %v813
        $region92: #{pallas_fwd.1} parent=71 // pred_fallthru
          _
        %v816 = vlaneseq
        %v817 = vshrl.u32 %v816, 7
        %v818 = vadd.s32 %v817, 8
        %vm819 = vcmp.gt.s32.totalorder %v817, 0
        %vm820 = vcmp.gt.s32.totalorder %v818, 0
        %vm821 = vcmp.lt.s32.totalorder %v817, 15
        %vm822 = vcmp.lt.s32.totalorder %v818, 15
        %v823 = vld [vmem:[#allocation2] sm:$0xff]
        %v824 = vld [vmem:[#allocation2 + $0x8] sm:$0xff]
        %v825 = vld [vmem:[#allocation3] sm:$0xff]
        %v826 = vld [vmem:[#allocation3 + $0x8] sm:$0xff]
        %v827 = vld [vmem:[%s793] sm:$0x1]
        %v828 = vrot.slane %v823, 7
        %v829 = vrot.slane %v824, 7
        %vm830 = vcmp.lt.s32.totalorder %v817, 1
        %v831 = vsel %vm830, %v828, %v829
        %v832 = vsel %vm830, %v829, %v828
        %v833 = vsel %vm819, %v832, 0.0
        %v834 = vsel %vm820, %v831, 0.0
        %v835 = vrot.slane %v823, 1
        %v836 = vrot.slane %v824, 1
        %vm837 = vcmp.lt.s32.totalorder %v817, 7
        %v838 = vsel %vm837, %v835, %v836
        %v839 = vsel %vm837, %v836, %v835
        %v840 = vsel %vm821, %v838, 0.0
        %v841 = vsel %vm822, %v839, 0.0
        %v842 = vld [vmem:[%s765] sm:$0xff]
        %v843 = vld [vmem:[%s765 + $0x8] sm:$0xff]
        %v844 = vld [vmem:[%s765 + $0x10] sm:$0xff]
        %v845 = vld [vmem:[%s765 + $0x18] sm:$0xff]
        %v846 = vld [vmem:[%s765 + $0x20] sm:$0xff]
        %v847 = vld [vmem:[%s765 + $0x28] sm:$0xff]
        %v848 = vld [vmem:[%s765 + $0x30] sm:$0xff]
        %v849 = vld [vmem:[%s765 + $0x38] sm:$0xff]
        %v850 = vld [vmem:[%s765 + $0x40] sm:$0xff]
        %v851 = vld [vmem:[%s765 + $0x48] sm:$0xff]
        %v852 = vld [vmem:[%s765 + $0x50] sm:$0xff]
        %v853 = vld [vmem:[%s765 + $0x58] sm:$0xff]
        %v854 = vld [vmem:[%s765 + $0x60] sm:$0xff]
        %v855 = vld [vmem:[%s765 + $0x68] sm:$0xff]
        %v856 = vld [vmem:[%s765 + $0x70] sm:$0xff]
        %v857 = vld [vmem:[%s765 + $0x78] sm:$0xff]
        %v858 = vld [vmem:[%s765 + $0x80] sm:$0xff]
        %v859 = vld [vmem:[%s765 + $0x88] sm:$0xff]
        %v860 = vld [vmem:[%s765 + $0x90] sm:$0xff]
        %v861 = vld [vmem:[%s765 + $0x98] sm:$0xff]
        %v862 = vld [vmem:[%s765 + $0xa0] sm:$0xff]
        %v863 = vld [vmem:[%s765 + $0xa8] sm:$0xff]
        %v864 = vld [vmem:[%s765 + $0xb0] sm:$0xff]
        %v865 = vld [vmem:[%s765 + $0xb8] sm:$0xff]
        %v866 = vld [vmem:[%s765 + $0xc0] sm:$0xff]
        %v867 = vld [vmem:[%s765 + $0xc8] sm:$0xff]
        %v868 = vld [vmem:[%s765 + $0xd0] sm:$0xff]
        %v869 = vld [vmem:[%s765 + $0xd8] sm:$0xff]
        %v870 = vld [vmem:[%s765 + $0xe0] sm:$0xff]
        %v871 = vld [vmem:[%s765 + $0xe8] sm:$0xff]
        %v872 = vld [vmem:[%s765 + $0xf0] sm:$0xff]
        %v873 = vld [vmem:[%s765 + $0xf8] sm:$0xff]
        %874 = vmatprep.subr.mxu0 0.0
        %875 = vmatpush1.msra.mxu0 %v858
        %876 = vmatprep.subr.mxu0 0.0
        %877 = vmatpush1.msra.mxu0 %v859
        %878 = vmatprep.subr.mxu0 0.0
        %879 = vmatpush1.msra.mxu0 %v860
        %880 = vmatprep.subr.mxu0 0.0
        %881 = vmatpush1.msra.mxu0 %v861
        %882 = vmatprep.subr.mxu0 0.0
        %883 = vmatpush1.msra.mxu0 %v862
        %884 = vmatprep.subr.mxu0 0.0
        %885 = vmatpush1.msra.mxu0 %v863
        %886 = vmatprep.subr.mxu0 0.0
        %887 = vmatpush1.msra.mxu0 %v864
        %888 = vmatprep.subr.mxu0 0.0
        %889 = vmatpush1.msra.mxu0 %v865
        %890 = vmatprep.subr.mxu0 0.0
        %891 = vmatpush1.msra.mxu0 %v866
        %892 = vmatprep.subr.mxu0 0.0
        %893 = vmatpush1.msra.mxu0 %v867
        %894 = vmatprep.subr.mxu0 0.0
        %895 = vmatpush1.msra.mxu0 %v868
        %896 = vmatprep.subr.mxu0 0.0
        %897 = vmatpush1.msra.mxu0 %v869
        %898 = vmatprep.subr.mxu0 0.0
        %899 = vmatpush1.msra.mxu0 %v870
        %900 = vmatprep.subr.mxu0 0.0
        %901 = vmatpush1.msra.mxu0 %v871
        %902 = vmatprep.subr.mxu0 0.0
        %903 = vmatpush1.msra.mxu0 %v872
        %904 = vmatprep.subr.mxu0 0.0
        %905 = vmatpush1.msra.mxu0 %v873
        %906 = vmatprep.subr.mxu0 0.0
        %907 = vmatpush1.msra.mxu0 0.0
        %908 = vmatprep.subr.mxu0 0.0
        %909 = vmatpush1.msra.mxu0 0.0
        %910 = vmatprep.subr.mxu0 0.0
        %911 = vmatpush1.msra.mxu0 0.0
        %912 = vmatprep.subr.mxu0 0.0
        %913 = vmatpush1.msra.mxu0 0.0
        %914 = vmatprep.subr.mxu0 0.0
        %915 = vmatpush1.msra.mxu0 0.0
        %916 = vmatprep.subr.mxu0 0.0
        %917 = vmatpush1.msra.mxu0 0.0
        %918 = vmatprep.subr.mxu0 0.0
        %919 = vmatpush1.msra.mxu0 0.0
        %920 = vmatprep.subr.mxu0 0.0
        %921 = vmatpush1.msra.mxu0 0.0
        %922 = vmatprep.subr.mxu0 0.0
        %923 = vmatpush1.msra.mxu0 0.0
        %924 = vmatprep.subr.mxu0 0.0
        %925 = vmatpush1.msra.mxu0 0.0
        %926 = vmatprep.subr.mxu0 0.0
        %927 = vmatpush1.msra.mxu0 0.0
        %928 = vmatprep.subr.mxu0 0.0
        %929 = vmatpush1.msra.mxu0 0.0
        %930 = vmatprep.subr.mxu0 0.0
        %931 = vmatpush1.msra.mxu0 0.0
        %932 = vmatprep.subr.mxu0 0.0
        %933 = vmatpush1.msra.mxu0 0.0
        %934 = vmatprep.subr.mxu0 0.0
        %935 = vmatpush1.msra.mxu0 0.0
        %936 = vmatprep.subr.mxu0 0.0
        %937 = vmatpush1.msra.mxu0 0.0
        %938 = vmatprep.mubr.f32.mxu0 0.0
        %939 = vmatmul.mubr.f32.gmra.mrb[0].mxu0 %v823
        %v940 = vpop.f32.mrb[0].mxu0
        %v941 = vadd.f32 0.0, %v940
        %v942 = vpop.f32.mrb[0].mxu0
        %943 = vmatprep.mubr.f32.mxu0 0.0
        %944 = vmatmul.mubr.f32.gmra.mrb[0].mxu0 %v824
        %v945 = vpop.f32.mrb[0].mxu0
        %v946 = vadd.f32 0.0, %v945
        %v947 = vpop.f32.mrb[0].mxu0
        %948 = vdwg.mxu0
        %949 = vmatprep.subr.mxu0 0.0
        %950 = vmatpush1.msra.mxu0 %v842
        %951 = vmatprep.subr.mxu0 0.0
        %952 = vmatpush1.msra.mxu0 %v843
        %953 = vmatprep.subr.mxu0 0.0
        %954 = vmatpush1.msra.mxu0 %v844
        %955 = vmatprep.subr.mxu0 0.0
        %956 = vmatpush1.msra.mxu0 %v845
        %957 = vmatprep.subr.mxu0 0.0
        %958 = vmatpush1.msra.mxu0 %v846
        %959 = vmatprep.subr.mxu0 0.0
        %960 = vmatpush1.msra.mxu0 %v847
        %961 = vmatprep.subr.mxu0 0.0
        %962 = vmatpush1.msra.mxu0 %v848
        %963 = vmatprep.subr.mxu0 0.0
        %964 = vmatpush1.msra.mxu0 %v849
        %965 = vmatprep.subr.mxu0 0.0
        %966 = vmatpush1.msra.mxu0 %v850
        %967 = vmatprep.subr.mxu0 0.0
        %968 = vmatpush1.msra.mxu0 %v851
        %969 = vmatprep.subr.mxu0 0.0
        %970 = vmatpush1.msra.mxu0 %v852
        %971 = vmatprep.subr.mxu0 0.0
        %972 = vmatpush1.msra.mxu0 %v853
        %973 = vmatprep.subr.mxu0 0.0
        %974 = vmatpush1.msra.mxu0 %v854
        %975 = vmatprep.subr.mxu0 0.0
        %976 = vmatpush1.msra.mxu0 %v855
        %977 = vmatprep.subr.mxu0 0.0
        %978 = vmatpush1.msra.mxu0 %v856
        %979 = vmatprep.subr.mxu0 0.0
        %980 = vmatpush1.msra.mxu0 %v857
        %981 = vmatprep.subr.mxu0 0.0
        %982 = vmatpush1.msra.mxu0 0.0
        %983 = vmatprep.subr.mxu0 0.0
        %984 = vmatpush1.msra.mxu0 0.0
        %985 = vmatprep.subr.mxu0 0.0
        %986 = vmatpush1.msra.mxu0 0.0
        %987 = vmatprep.subr.mxu0 0.0
        %988 = vmatpush1.msra.mxu0 0.0
        %989 = vmatprep.subr.mxu0 0.0
        %990 = vmatpush1.msra.mxu0 0.0
        %991 = vmatprep.subr.mxu0 0.0
        %992 = vmatpush1.msra.mxu0 0.0
        %993 = vmatprep.subr.mxu0 0.0
        %994 = vmatpush1.msra.mxu0 0.0
        %995 = vmatprep.subr.mxu0 0.0
        %996 = vmatpush1.msra.mxu0 0.0
        %997 = vmatprep.subr.mxu0 0.0
        %998 = vmatpush1.msra.mxu0 0.0
        %999 = vmatprep.subr.mxu0 0.0
        %1000 = vmatpush1.msra.mxu0 0.0
        %1001 = vmatprep.subr.mxu0 0.0
        %1002 = vmatpush1.msra.mxu0 0.0
        %1003 = vmatprep.subr.mxu0 0.0
        %1004 = vmatpush1.msra.mxu0 0.0
        %1005 = vmatprep.subr.mxu0 0.0
        %1006 = vmatpush1.msra.mxu0 0.0
        %1007 = vmatprep.subr.mxu0 0.0
        %1008 = vmatpush1.msra.mxu0 0.0
        %1009 = vmatprep.subr.mxu0 0.0
        %1010 = vmatpush1.msra.mxu0 0.0
        %1011 = vmatprep.subr.mxu0 0.0
        %1012 = vmatpush1.msra.mxu0 0.0
        %1013 = vmatprep.mubr.f32.mxu0 0.0
        %1014 = vmatmul.mubr.f32.gmra.mrb[0].mxu0 %v833
        %v1015 = vpop.f32.mrb[0].mxu0
        %v1016 = vadd.f32 %v941, %v1015
        %v1017 = vpop.f32.mrb[0].mxu0
        %1018 = vmatprep.mubr.f32.mxu0 0.0
        %1019 = vmatmul.mubr.f32.gmra.mrb[0].mxu0 %v834
        %v1020 = vpop.f32.mrb[0].mxu0
        %v1021 = vadd.f32 %v946, %v1020
        %v1022 = vpop.f32.mrb[0].mxu0
        %1023 = vdwg.mxu0
        %v1024 = vld [vmem:[%s765 + $0x100] sm:$0xff]
        %v1025 = vld [vmem:[%s765 + $0x108] sm:$0xff]
        %v1026 = vld [vmem:[%s765 + $0x110] sm:$0xff]
        %v1027 = vld [vmem:[%s765 + $0x118] sm:$0xff]
        %v1028 = vld [vmem:[%s765 + $0x120] sm:$0xff]
        %v1029 = vld [vmem:[%s765 + $0x128] sm:$0xff]
        %v1030 = vld [vmem:[%s765 + $0x130] sm:$0xff]
        %v1031 = vld [vmem:[%s765 + $0x138] sm:$0xff]
        %v1032 = vld [vmem:[%s765 + $0x140] sm:$0xff]
        %v1033 = vld [vmem:[%s765 + $0x148] sm:$0xff]
        %v1034 = vld [vmem:[%s765 + $0x150] sm:$0xff]
        %v1035 = vld [vmem:[%s765 + $0x158] sm:$0xff]
        %v1036 = vld [vmem:[%s765 + $0x160] sm:$0xff]
        %v1037 = vld [vmem:[%s765 + $0x168] sm:$0xff]
        %v1038 = vld [vmem:[%s765 + $0x170] sm:$0xff]
        %v1039 = vld [vmem:[%s765 + $0x178] sm:$0xff]
        %1040 = vmatprep.subr.mxu0 0.0
        %1041 = vmatpush1.msra.mxu0 %v1024
        %1042 = vmatprep.subr.mxu0 0.0
        %1043 = vmatpush1.msra.mxu0 %v1025
        %1044 = vmatprep.subr.mxu0 0.0
        %1045 = vmatpush1.msra.mxu0 %v1026
        %1046 = vmatprep.subr.mxu0 0.0
        %1047 = vmatpush1.msra.mxu0 %v1027
        %1048 = vmatprep.subr.mxu0 0.0
        %1049 = vmatpush1.msra.mxu0 %v1028
        %1050 = vmatprep.subr.mxu0 0.0
        %1051 = vmatpush1.msra.mxu0 %v1029
        %1052 = vmatprep.subr.mxu0 0.0
        %1053 = vmatpush1.msra.mxu0 %v1030
        %1054 = vmatprep.subr.mxu0 0.0
        %1055 = vmatpush1.msra.mxu0 %v1031
        %1056 = vmatprep.subr.mxu0 0.0
        %1057 = vmatpush1.msra.mxu0 %v1032
        %1058 = vmatprep.subr.mxu0 0.0
        %1059 = vmatpush1.msra.mxu0 %v1033
        %1060 = vmatprep.subr.mxu0 0.0
        %1061 = vmatpush1.msra.mxu0 %v1034
        %1062 = vmatprep.subr.mxu0 0.0
        %1063 = vmatpush1.msra.mxu0 %v1035
        %1064 = vmatprep.subr.mxu0 0.0
        %1065 = vmatpush1.msra.mxu0 %v1036
        %1066 = vmatprep.subr.mxu0 0.0
        %1067 = vmatpush1.msra.mxu0 %v1037
        %1068 = vmatprep.subr.mxu0 0.0
        %1069 = vmatpush1.msra.mxu0 %v1038
        %1070 = vmatprep.subr.mxu0 0.0
        %1071 = vmatpush1.msra.mxu0 %v1039
        %1072 = vmatprep.subr.mxu0 0.0
        %1073 = vmatpush1.msra.mxu0 0.0
        %1074 = vmatprep.subr.mxu0 0.0
        %1075 = vmatpush1.msra.mxu0 0.0
        %1076 = vmatprep.subr.mxu0 0.0
        %1077 = vmatpush1.msra.mxu0 0.0
        %1078 = vmatprep.subr.mxu0 0.0
        %1079 = vmatpush1.msra.mxu0 0.0
        %1080 = vmatprep.subr.mxu0 0.0
        %1081 = vmatpush1.msra.mxu0 0.0
        %1082 = vmatprep.subr.mxu0 0.0
        %1083 = vmatpush1.msra.mxu0 0.0
        %1084 = vmatprep.subr.mxu0 0.0
        %1085 = vmatpush1.msra.mxu0 0.0
        %1086 = vmatprep.subr.mxu0 0.0
        %1087 = vmatpush1.msra.mxu0 0.0
        %1088 = vmatprep.subr.mxu0 0.0
        %1089 = vmatpush1.msra.mxu0 0.0
        %1090 = vmatprep.subr.mxu0 0.0
        %1091 = vmatpush1.msra.mxu0 0.0
        %1092 = vmatprep.subr.mxu0 0.0
        %1093 = vmatpush1.msra.mxu0 0.0
        %1094 = vmatprep.subr.mxu0 0.0
        %1095 = vmatpush1.msra.mxu0 0.0
        %1096 = vmatprep.subr.mxu0 0.0
        %1097 = vmatpush1.msra.mxu0 0.0
        %1098 = vmatprep.subr.mxu0 0.0
        %1099 = vmatpush1.msra.mxu0 0.0
        %1100 = vmatprep.subr.mxu0 0.0
        %1101 = vmatpush1.msra.mxu0 0.0
        %1102 = vmatprep.subr.mxu0 0.0
        %1103 = vmatpush1.msra.mxu0 0.0
        %1104 = vmatprep.mubr.f32.mxu0 0.0
        %1105 = vmatmul.mubr.f32.gmra.mrb[0].mxu0 %v840
        %v1106 = vpop.f32.mrb[0].mxu0
        %v1107 = vadd.f32 0.0, %v1106
        %v1108 = vpop.f32.mrb[0].mxu0
        %1109 = vmatprep.mubr.f32.mxu0 0.0
        %1110 = vmatmul.mubr.f32.gmra.mrb[0].mxu0 %v841
        %v1111 = vpop.f32.mrb[0].mxu0
        %v1112 = vadd.f32 0.0, %v1111
        %v1113 = vpop.f32.mrb[0].mxu0
        %1114 = vdwg.mxu0
        %v1115 = vadd.f32 %v1016, %v1107
        %v1116 = vadd.f32 %v1021, %v1112
        %v1117 = vlaneseq
        %v1118 = vshrl.u32 %v1117, 7
        %v1119 = vsub.s32 0, %v1118
        %v1120 = vrot.slane %v827, %v1119
        %v1121 = vadd.f32 %v1115, %v1120
        %v1122 = vadd.f32 %v1116, %v1120
        %vm1123 = vcmp.ge.f32.partialorder %v1121, 0.0
        %vm1124 = vcmp.ge.f32.partialorder %v1122, 0.0
        %v1125 = vmul.f32 %v1121, 0.1
        %v1126 = vmul.f32 %v1122, 0.1
        %v1127 = vsel %vm1123, %v1121, %v1125
        %v1128 = vsel %vm1124, %v1122, %v1126
        %v1129 = vld [vmem:[%s793 + $0x1] sm:$0x1]
        %v1130 = vrot.slane %v1127, 7
        %v1131 = vrot.slane %v1128, 7
        %v1132 = vsel %vm830, %v1130, %v1131
        %v1133 = vsel %vm830, %v1131, %v1130
        %v1134 = vsel %vm819, %v1133, 0.0
        %v1135 = vsel %vm820, %v1132, 0.0
        %v1136 = vrot.slane %v1127, 1
        %v1137 = vrot.slane %v1128, 1
        %v1138 = vsel %vm837, %v1136, %v1137
        %v1139 = vsel %vm837, %v1137, %v1136
        %v1140 = vsel %vm821, %v1138, 0.0
        %v1141 = vsel %vm822, %v1139, 0.0
        %v1142 = vld [vmem:[%s770] sm:$0xff]
        %v1143 = vld [vmem:[%s770 + $0x8] sm:$0xff]
        %v1144 = vld [vmem:[%s770 + $0x10] sm:$0xff]
        %v1145 = vld [vmem:[%s770 + $0x18] sm:$0xff]
        %v1146 = vld [vmem:[%s770 + $0x20] sm:$0xff]
        %v1147 = vld [vmem:[%s770 + $0x28] sm:$0xff]
        %v1148 = vld [vmem:[%s770 + $0x30] sm:$0xff]
        %v1149 = vld [vmem:[%s770 + $0x38] sm:$0xff]
        %v1150 = vld [vmem:[%s770 + $0x40] sm:$0xff]
        %v1151 = vld [vmem:[%s770 + $0x48] sm:$0xff]
        %v1152 = vld [vmem:[%s770 + $0x50] sm:$0xff]
        %v1153 = vld [vmem:[%s770 + $0x58] sm:$0xff]
        %v1154 = vld [vmem:[%s770 + $0x60] sm:$0xff]
        %v1155 = vld [vmem:[%s770 + $0x68] sm:$0xff]
        %v1156 = vld [vmem:[%s770 + $0x70] sm:$0xff]
        %v1157 = vld [vmem:[%s770 + $0x78] sm:$0xff]
        %v1158 = vld [vmem:[%s770 + $0x80] sm:$0xff]
        %v1159 = vld [vmem:[%s770 + $0x88] sm:$0xff]
        %v1160 = vld [vmem:[%s770 + $0x90] sm:$0xff]
        %v1161 = vld [vmem:[%s770 + $0x98] sm:$0xff]
        %v1162 = vld [vmem:[%s770 + $0xa0] sm:$0xff]
        %v1163 = vld [vmem:[%s770 + $0xa8] sm:$0xff]
        %v1164 = vld [vmem:[%s770 + $0xb0] sm:$0xff]
        %v1165 = vld [vmem:[%s770 + $0xb8] sm:$0xff]
        %v1166 = vld [vmem:[%s770 + $0xc0] sm:$0xff]
        %v1167 = vld [vmem:[%s770 + $0xc8] sm:$0xff]
        %v1168 = vld [vmem:[%s770 + $0xd0] sm:$0xff]
        %v1169 = vld [vmem:[%s770 + $0xd8] sm:$0xff]
        %v1170 = vld [vmem:[%s770 + $0xe0] sm:$0xff]
        %v1171 = vld [vmem:[%s770 + $0xe8] sm:$0xff]
        %v1172 = vld [vmem:[%s770 + $0xf0] sm:$0xff]
        %v1173 = vld [vmem:[%s770 + $0xf8] sm:$0xff]
        %1174 = vmatprep.subr.mxu0 0.0
        %1175 = vmatpush1.msra.mxu0 %v1158
        %1176 = vmatprep.subr.mxu0 0.0
        %1177 = vmatpush1.msra.mxu0 %v1159
        %1178 = vmatprep.subr.mxu0 0.0
        %1179 = vmatpush1.msra.mxu0 %v1160
        %1180 = vmatprep.subr.mxu0 0.0
        %1181 = vmatpush1.msra.mxu0 %v1161
        %1182 = vmatprep.subr.mxu0 0.0
        %1183 = vmatpush1.msra.mxu0 %v1162
        %1184 = vmatprep.subr.mxu0 0.0
        %1185 = vmatpush1.msra.mxu0 %v1163
        %1186 = vmatprep.subr.mxu0 0.0
        %1187 = vmatpush1.msra.mxu0 %v1164
        %1188 = vmatprep.subr.mxu0 0.0
        %1189 = vmatpush1.msra.mxu0 %v1165
        %1190 = vmatprep.subr.mxu0 0.0
        %1191 = vmatpush1.msra.mxu0 %v1166
        %1192 = vmatprep.subr.mxu0 0.0
        %1193 = vmatpush1.msra.mxu0 %v1167
        %1194 = vmatprep.subr.mxu0 0.0
        %1195 = vmatpush1.msra.mxu0 %v1168
        %1196 = vmatprep.subr.mxu0 0.0
        %1197 = vmatpush1.msra.mxu0 %v1169
        %1198 = vmatprep.subr.mxu0 0.0
        %1199 = vmatpush1.msra.mxu0 %v1170
        %1200 = vmatprep.subr.mxu0 0.0
        %1201 = vmatpush1.msra.mxu0 %v1171
        %1202 = vmatprep.subr.mxu0 0.0
        %1203 = vmatpush1.msra.mxu0 %v1172
        %1204 = vmatprep.subr.mxu0 0.0
        %1205 = vmatpush1.msra.mxu0 %v1173
        %1206 = vmatprep.subr.mxu0 0.0
        %1207 = vmatpush1.msra.mxu0 0.0
        %1208 = vmatprep.subr.mxu0 0.0
        %1209 = vmatpush1.msra.mxu0 0.0
        %1210 = vmatprep.subr.mxu0 0.0
        %1211 = vmatpush1.msra.mxu0 0.0
        %1212 = vmatprep.subr.mxu0 0.0
        %1213 = vmatpush1.msra.mxu0 0.0
        %1214 = vmatprep.subr.mxu0 0.0
        %1215 = vmatpush1.msra.mxu0 0.0
        %1216 = vmatprep.subr.mxu0 0.0
        %1217 = vmatpush1.msra.mxu0 0.0
        %1218 = vmatprep.subr.mxu0 0.0
        %1219 = vmatpush1.msra.mxu0 0.0
        %1220 = vmatprep.subr.mxu0 0.0
        %1221 = vmatpush1.msra.mxu0 0.0
        %1222 = vmatprep.subr.mxu0 0.0
        %1223 = vmatpush1.msra.mxu0 0.0
        %1224 = vmatprep.subr.mxu0 0.0
        %1225 = vmatpush1.msra.mxu0 0.0
        %1226 = vmatprep.subr.mxu0 0.0
        %1227 = vmatpush1.msra.mxu0 0.0
        %1228 = vmatprep.subr.mxu0 0.0
        %1229 = vmatpush1.msra.mxu0 0.0
        %1230 = vmatprep.subr.mxu0 0.0
        %1231 = vmatpush1.msra.mxu0 0.0
        %1232 = vmatprep.subr.mxu0 0.0
        %1233 = vmatpush1.msra.mxu0 0.0
        %1234 = vmatprep.subr.mxu0 0.0
        %1235 = vmatpush1.msra.mxu0 0.0
        %1236 = vmatprep.subr.mxu0 0.0
        %1237 = vmatpush1.msra.mxu0 0.0
        %1238 = vmatprep.mubr.f32.mxu0 0.0
        %1239 = vmatmul.mubr.f32.gmra.mrb[0].mxu0 %v1127
        %v1240 = vpop.f32.mrb[0].mxu0
        %v1241 = vadd.f32 0.0, %v1240
        %v1242 = vpop.f32.mrb[0].mxu0
        %1243 = vmatprep.mubr.f32.mxu0 0.0
        %1244 = vmatmul.mubr.f32.gmra.mrb[0].mxu0 %v1128
        %v1245 = vpop.f32.mrb[0].mxu0
        %v1246 = vadd.f32 0.0, %v1245
        %v1247 = vpop.f32.mrb[0].mxu0
        %1248 = vdwg.mxu0
        %1249 = vmatprep.subr.mxu0 0.0
        %1250 = vmatpush1.msra.mxu0 %v1142
        %1251 = vmatprep.subr.mxu0 0.0
        %1252 = vmatpush1.msra.mxu0 %v1143
        %1253 = vmatprep.subr.mxu0 0.0
        %1254 = vmatpush1.msra.mxu0 %v1144
        %1255 = vmatprep.subr.mxu0 0.0
        %1256 = vmatpush1.msra.mxu0 %v1145
        %1257 = vmatprep.subr.mxu0 0.0
        %1258 = vmatpush1.msra.mxu0 %v1146
        %1259 = vmatprep.subr.mxu0 0.0
        %1260 = vmatpush1.msra.mxu0 %v1147
        %1261 = vmatprep.subr.mxu0 0.0
        %1262 = vmatpush1.msra.mxu0 %v1148
        %1263 = vmatprep.subr.mxu0 0.0
        %1264 = vmatpush1.msra.mxu0 %v1149
        %1265 = vmatprep.subr.mxu0 0.0
        %1266 = vmatpush1.msra.mxu0 %v1150
        %1267 = vmatprep.subr.mxu0 0.0
        %1268 = vmatpush1.msra.mxu0 %v1151
        %1269 = vmatprep.subr.mxu0 0.0
        %1270 = vmatpush1.msra.mxu0 %v1152
        %1271 = vmatprep.subr.mxu0 0.0
        %1272 = vmatpush1.msra.mxu0 %v1153
        %1273 = vmatprep.subr.mxu0 0.0
        %1274 = vmatpush1.msra.mxu0 %v1154
        %1275 = vmatprep.subr.mxu0 0.0
        %1276 = vmatpush1.msra.mxu0 %v1155
        %1277 = vmatprep.subr.mxu0 0.0
        %1278 = vmatpush1.msra.mxu0 %v1156
        %1279 = vmatprep.subr.mxu0 0.0
        %1280 = vmatpush1.msra.mxu0 %v1157
        %1281 = vmatprep.subr.mxu0 0.0
        %1282 = vmatpush1.msra.mxu0 0.0
        %1283 = vmatprep.subr.mxu0 0.0
        %1284 = vmatpush1.msra.mxu0 0.0
        %1285 = vmatprep.subr.mxu0 0.0
        %1286 = vmatpush1.msra.mxu0 0.0
        %1287 = vmatprep.subr.mxu0 0.0
        %1288 = vmatpush1.msra.mxu0 0.0
        %1289 = vmatprep.subr.mxu0 0.0
        %1290 = vmatpush1.msra.mxu0 0.0
        %1291 = vmatprep.subr.mxu0 0.0
        %1292 = vmatpush1.msra.mxu0 0.0
        %1293 = vmatprep.subr.mxu0 0.0
        %1294 = vmatpush1.msra.mxu0 0.0
        %1295 = vmatprep.subr.mxu0 0.0
        %1296 = vmatpush1.msra.mxu0 0.0
        %1297 = vmatprep.subr.mxu0 0.0
        %1298 = vmatpush1.msra.mxu0 0.0
        %1299 = vmatprep.subr.mxu0 0.0
        %1300 = vmatpush1.msra.mxu0 0.0
        %1301 = vmatprep.subr.mxu0 0.0
        %1302 = vmatpush1.msra.mxu0 0.0
        %1303 = vmatprep.subr.mxu0 0.0
        %1304 = vmatpush1.msra.mxu0 0.0
        %1305 = vmatprep.subr.mxu0 0.0
        %1306 = vmatpush1.msra.mxu0 0.0
        %1307 = vmatprep.subr.mxu0 0.0
        %1308 = vmatpush1.msra.mxu0 0.0
        %1309 = vmatprep.subr.mxu0 0.0
        %1310 = vmatpush1.msra.mxu0 0.0
        %1311 = vmatprep.subr.mxu0 0.0
        %1312 = vmatpush1.msra.mxu0 0.0
        %1313 = vmatprep.mubr.f32.mxu0 0.0
        %1314 = vmatmul.mubr.f32.gmra.mrb[0].mxu0 %v1134
        %v1315 = vpop.f32.mrb[0].mxu0
        %v1316 = vadd.f32 %v1241, %v1315
        %v1317 = vpop.f32.mrb[0].mxu0
        %1318 = vmatprep.mubr.f32.mxu0 0.0
        %1319 = vmatmul.mubr.f32.gmra.mrb[0].mxu0 %v1135
        %v1320 = vpop.f32.mrb[0].mxu0
        %v1321 = vadd.f32 %v1246, %v1320
        %v1322 = vpop.f32.mrb[0].mxu0
        %1323 = vdwg.mxu0
        %v1324 = vld [vmem:[%s770 + $0x100] sm:$0xff]
        %v1325 = vld [vmem:[%s770 + $0x108] sm:$0xff]
        %v1326 = vld [vmem:[%s770 + $0x110] sm:$0xff]
        %v1327 = vld [vmem:[%s770 + $0x118] sm:$0xff]
        %v1328 = vld [vmem:[%s770 + $0x120] sm:$0xff]
        %v1329 = vld [vmem:[%s770 + $0x128] sm:$0xff]
        %v1330 = vld [vmem:[%s770 + $0x130] sm:$0xff]
        %v1331 = vld [vmem:[%s770 + $0x138] sm:$0xff]
        %v1332 = vld [vmem:[%s770 + $0x140] sm:$0xff]
        %v1333 = vld [vmem:[%s770 + $0x148] sm:$0xff]
        %v1334 = vld [vmem:[%s770 + $0x150] sm:$0xff]
        %v1335 = vld [vmem:[%s770 + $0x158] sm:$0xff]
        %v1336 = vld [vmem:[%s770 + $0x160] sm:$0xff]
        %v1337 = vld [vmem:[%s770 + $0x168] sm:$0xff]
        %v1338 = vld [vmem:[%s770 + $0x170] sm:$0xff]
        %v1339 = vld [vmem:[%s770 + $0x178] sm:$0xff]
        %1340 = vmatprep.subr.mxu0 0.0
        %1341 = vmatpush1.msra.mxu0 %v1324
        %1342 = vmatprep.subr.mxu0 0.0
        %1343 = vmatpush1.msra.mxu0 %v1325
        %1344 = vmatprep.subr.mxu0 0.0
        %1345 = vmatpush1.msra.mxu0 %v1326
        %1346 = vmatprep.subr.mxu0 0.0
        %1347 = vmatpush1.msra.mxu0 %v1327
        %1348 = vmatprep.subr.mxu0 0.0
        %1349 = vmatpush1.msra.mxu0 %v1328
        %1350 = vmatprep.subr.mxu0 0.0
        %1351 = vmatpush1.msra.mxu0 %v1329
        %1352 = vmatprep.subr.mxu0 0.0
        %1353 = vmatpush1.msra.mxu0 %v1330
        %1354 = vmatprep.subr.mxu0 0.0
        %1355 = vmatpush1.msra.mxu0 %v1331
        %1356 = vmatprep.subr.mxu0 0.0
        %1357 = vmatpush1.msra.mxu0 %v1332
        %1358 = vmatprep.subr.mxu0 0.0
        %1359 = vmatpush1.msra.mxu0 %v1333
        %1360 = vmatprep.subr.mxu0 0.0
        %1361 = vmatpush1.msra.mxu0 %v1334
        %1362 = vmatprep.subr.mxu0 0.0
        %1363 = vmatpush1.msra.mxu0 %v1335
        %1364 = vmatprep.subr.mxu0 0.0
        %1365 = vmatpush1.msra.mxu0 %v1336
        %1366 = vmatprep.subr.mxu0 0.0
        %1367 = vmatpush1.msra.mxu0 %v1337
        %1368 = vmatprep.subr.mxu0 0.0
        %1369 = vmatpush1.msra.mxu0 %v1338
        %1370 = vmatprep.subr.mxu0 0.0
        %1371 = vmatpush1.msra.mxu0 %v1339
        %1372 = vmatprep.subr.mxu0 0.0
        %1373 = vmatpush1.msra.mxu0 0.0
        %1374 = vmatprep.subr.mxu0 0.0
        %1375 = vmatpush1.msra.mxu0 0.0
        %1376 = vmatprep.subr.mxu0 0.0
        %1377 = vmatpush1.msra.mxu0 0.0
        %1378 = vmatprep.subr.mxu0 0.0
        %1379 = vmatpush1.msra.mxu0 0.0
        %1380 = vmatprep.subr.mxu0 0.0
        %1381 = vmatpush1.msra.mxu0 0.0
        %1382 = vmatprep.subr.mxu0 0.0
        %1383 = vmatpush1.msra.mxu0 0.0
        %1384 = vmatprep.subr.mxu0 0.0
        %1385 = vmatpush1.msra.mxu0 0.0
        %1386 = vmatprep.subr.mxu0 0.0
        %1387 = vmatpush1.msra.mxu0 0.0
        %1388 = vmatprep.subr.mxu0 0.0
        %1389 = vmatpush1.msra.mxu0 0.0
        %1390 = vmatprep.subr.mxu0 0.0
        %1391 = vmatpush1.msra.mxu0 0.0
        %1392 = vmatprep.subr.mxu0 0.0
        %1393 = vmatpush1.msra.mxu0 0.0
        %1394 = vmatprep.subr.mxu0 0.0
        %1395 = vmatpush1.msra.mxu0 0.0
        %1396 = vmatprep.subr.mxu0 0.0
        %1397 = vmatpush1.msra.mxu0 0.0
        %1398 = vmatprep.subr.mxu0 0.0
        %1399 = vmatpush1.msra.mxu0 0.0
        %1400 = vmatprep.subr.mxu0 0.0
        %1401 = vmatpush1.msra.mxu0 0.0
        %1402 = vmatprep.subr.mxu0 0.0
        %1403 = vmatpush1.msra.mxu0 0.0
        %1404 = vmatprep.mubr.f32.mxu0 0.0
        %1405 = vmatmul.mubr.f32.gmra.mrb[0].mxu0 %v1140
        %v1406 = vpop.f32.mrb[0].mxu0
        %v1407 = vadd.f32 0.0, %v1406
        %v1408 = vpop.f32.mrb[0].mxu0
        %1409 = vmatprep.mubr.f32.mxu0 0.0
        %1410 = vmatmul.mubr.f32.gmra.mrb[0].mxu0 %v1141
        %v1411 = vpop.f32.mrb[0].mxu0
        %v1412 = vadd.f32 0.0, %v1411
        %v1413 = vpop.f32.mrb[0].mxu0
        %1414 = vdwg.mxu0
        %v1415 = vadd.f32 %v1316, %v1407
        %v1416 = vadd.f32 %v1321, %v1412
        %v1417 = vlaneseq
        %v1418 = vshrl.u32 %v1417, 7
        %v1419 = vsub.s32 0, %v1418
        %v1420 = vrot.slane %v1129, %v1419
        %v1421 = vadd.f32 %v1415, %v1420
        %v1422 = vadd.f32 %v1416, %v1420
        %v1423 = vld [vmem:[%s793 + $0x4] sm:$0x1]
        %v1424 = vrot.slane %v825, 7
        %v1425 = vrot.slane %v826, 7
        %v1426 = vsel %vm830, %v1424, %v1425
        %v1427 = vsel %vm830, %v1425, %v1424
        %v1428 = vsel %vm819, %v1427, 0.0
        %v1429 = vsel %vm820, %v1426, 0.0
        %v1430 = vrot.slane %v825, 1
        %v1431 = vrot.slane %v826, 1
        %v1432 = vsel %vm837, %v1430, %v1431
        %v1433 = vsel %vm837, %v1431, %v1430
        %v1434 = vsel %vm821, %v1432, 0.0
        %v1435 = vsel %vm822, %v1433, 0.0
        %v1436 = vld [vmem:[%s616] sm:$0xff]
        %v1437 = vld [vmem:[%s616 + $0x8] sm:$0xff]
        %v1438 = vld [vmem:[%s616 + $0x10] sm:$0xff]
        %v1439 = vld [vmem:[%s616 + $0x18] sm:$0xff]
        %v1440 = vld [vmem:[%s616 + $0x20] sm:$0xff]
        %v1441 = vld [vmem:[%s616 + $0x28] sm:$0xff]
        %v1442 = vld [vmem:[%s616 + $0x30] sm:$0xff]
        %v1443 = vld [vmem:[%s616 + $0x38] sm:$0xff]
        %v1444 = vld [vmem:[%s616 + $0x40] sm:$0xff]
        %v1445 = vld [vmem:[%s616 + $0x48] sm:$0xff]
        %v1446 = vld [vmem:[%s616 + $0x50] sm:$0xff]
        %v1447 = vld [vmem:[%s616 + $0x58] sm:$0xff]
        %v1448 = vld [vmem:[%s616 + $0x60] sm:$0xff]
        %v1449 = vld [vmem:[%s616 + $0x68] sm:$0xff]
        %v1450 = vld [vmem:[%s616 + $0x70] sm:$0xff]
        %v1451 = vld [vmem:[%s616 + $0x78] sm:$0xff]
        %v1452 = vld [vmem:[%s616 + $0x80] sm:$0xff]
        %v1453 = vld [vmem:[%s616 + $0x88] sm:$0xff]
        %v1454 = vld [vmem:[%s616 + $0x90] sm:$0xff]
        %v1455 = vld [vmem:[%s616 + $0x98] sm:$0xff]
        %v1456 = vld [vmem:[%s616 + $0xa0] sm:$0xff]
        %v1457 = vld [vmem:[%s616 + $0xa8] sm:$0xff]
        %v1458 = vld [vmem:[%s616 + $0xb0] sm:$0xff]
        %v1459 = vld [vmem:[%s616 + $0xb8] sm:$0xff]
        %v1460 = vld [vmem:[%s616 + $0xc0] sm:$0xff]
        %v1461 = vld [vmem:[%s616 + $0xc8] sm:$0xff]
        %v1462 = vld [vmem:[%s616 + $0xd0] sm:$0xff]
        %v1463 = vld [vmem:[%s616 + $0xd8] sm:$0xff]
        %v1464 = vld [vmem:[%s616 + $0xe0] sm:$0xff]
        %v1465 = vld [vmem:[%s616 + $0xe8] sm:$0xff]
        %v1466 = vld [vmem:[%s616 + $0xf0] sm:$0xff]
        %v1467 = vld [vmem:[%s616 + $0xf8] sm:$0xff]
        %1468 = vmatprep.subr.mxu0 0.0
        %1469 = vmatpush1.msra.mxu0 %v1452
        %1470 = vmatprep.subr.mxu0 0.0
        %1471 = vmatpush1.msra.mxu0 %v1453
        %1472 = vmatprep.subr.mxu0 0.0
        %1473 = vmatpush1.msra.mxu0 %v1454
        %1474 = vmatprep.subr.mxu0 0.0
        %1475 = vmatpush1.msra.mxu0 %v1455
        %1476 = vmatprep.subr.mxu0 0.0
        %1477 = vmatpush1.msra.mxu0 %v1456
        %1478 = vmatprep.subr.mxu0 0.0
        %1479 = vmatpush1.msra.mxu0 %v1457
        %1480 = vmatprep.subr.mxu0 0.0
        %1481 = vmatpush1.msra.mxu0 %v1458
        %1482 = vmatprep.subr.mxu0 0.0
        %1483 = vmatpush1.msra.mxu0 %v1459
        %1484 = vmatprep.subr.mxu0 0.0
        %1485 = vmatpush1.msra.mxu0 %v1460
        %1486 = vmatprep.subr.mxu0 0.0
        %1487 = vmatpush1.msra.mxu0 %v1461
        %1488 = vmatprep.subr.mxu0 0.0
        %1489 = vmatpush1.msra.mxu0 %v1462
        %1490 = vmatprep.subr.mxu0 0.0
        %1491 = vmatpush1.msra.mxu0 %v1463
        %1492 = vmatprep.subr.mxu0 0.0
        %1493 = vmatpush1.msra.mxu0 %v1464
        %1494 = vmatprep.subr.mxu0 0.0
        %1495 = vmatpush1.msra.mxu0 %v1465
        %1496 = vmatprep.subr.mxu0 0.0
        %1497 = vmatpush1.msra.mxu0 %v1466
        %1498 = vmatprep.subr.mxu0 0.0
        %1499 = vmatpush1.msra.mxu0 %v1467
        %1500 = vmatprep.subr.mxu0 0.0
        %1501 = vmatpush1.msra.mxu0 0.0
        %1502 = vmatprep.subr.mxu0 0.0
        %1503 = vmatpush1.msra.mxu0 0.0
        %1504 = vmatprep.subr.mxu0 0.0
        %1505 = vmatpush1.msra.mxu0 0.0
        %1506 = vmatprep.subr.mxu0 0.0
        %1507 = vmatpush1.msra.mxu0 0.0
        %1508 = vmatprep.subr.mxu0 0.0
        %1509 = vmatpush1.msra.mxu0 0.0
        %1510 = vmatprep.subr.mxu0 0.0
        %1511 = vmatpush1.msra.mxu0 0.0
        %1512 = vmatprep.subr.mxu0 0.0
        %1513 = vmatpush1.msra.mxu0 0.0
        %1514 = vmatprep.subr.mxu0 0.0
        %1515 = vmatpush1.msra.mxu0 0.0
        %1516 = vmatprep.subr.mxu0 0.0
        %1517 = vmatpush1.msra.mxu0 0.0
        %1518 = vmatprep.subr.mxu0 0.0
        %1519 = vmatpush1.msra.mxu0 0.0
        %1520 = vmatprep.subr.mxu0 0.0
        %1521 = vmatpush1.msra.mxu0 0.0
        %1522 = vmatprep.subr.mxu0 0.0
        %1523 = vmatpush1.msra.mxu0 0.0
        %1524 = vmatprep.subr.mxu0 0.0
        %1525 = vmatpush1.msra.mxu0 0.0
        %1526 = vmatprep.subr.mxu0 0.0
        %1527 = vmatpush1.msra.mxu0 0.0
        %1528 = vmatprep.subr.mxu0 0.0
        %1529 = vmatpush1.msra.mxu0 0.0
        %1530 = vmatprep.subr.mxu0 0.0
        %1531 = vmatpush1.msra.mxu0 0.0
        %1532 = vmatprep.mubr.f32.mxu0 0.0
        %1533 = vmatmul.mubr.f32.gmra.mrb[0].mxu0 %v825
        %v1534 = vpop.f32.mrb[0].mxu0
        %v1535 = vadd.f32 0.0, %v1534
        %v1536 = vpop.f32.mrb[0].mxu0
        %1537 = vmatprep.mubr.f32.mxu0 0.0
        %1538 = vmatmul.mubr.f32.gmra.mrb[0].mxu0 %v826
        %v1539 = vpop.f32.mrb[0].mxu0
        %v1540 = vadd.f32 0.0, %v1539
        %v1541 = vpop.f32.mrb[0].mxu0
        %1542 = vdwg.mxu0
        %1543 = vmatprep.subr.mxu0 0.0
        %1544 = vmatpush1.msra.mxu0 %v1436
        %1545 = vmatprep.subr.mxu0 0.0
        %1546 = vmatpush1.msra.mxu0 %v1437
        %1547 = vmatprep.subr.mxu0 0.0
        %1548 = vmatpush1.msra.mxu0 %v1438
        %1549 = vmatprep.subr.mxu0 0.0
        %1550 = vmatpush1.msra.mxu0 %v1439
        %1551 = vmatprep.subr.mxu0 0.0
        %1552 = vmatpush1.msra.mxu0 %v1440
        %1553 = vmatprep.subr.mxu0 0.0
        %1554 = vmatpush1.msra.mxu0 %v1441
        %1555 = vmatprep.subr.mxu0 0.0
        %1556 = vmatpush1.msra.mxu0 %v1442
        %1557 = vmatprep.subr.mxu0 0.0
        %1558 = vmatpush1.msra.mxu0 %v1443
        %1559 = vmatprep.subr.mxu0 0.0
        %1560 = vmatpush1.msra.mxu0 %v1444
        %1561 = vmatprep.subr.mxu0 0.0
        %1562 = vmatpush1.msra.mxu0 %v1445
        %1563 = vmatprep.subr.mxu0 0.0
        %1564 = vmatpush1.msra.mxu0 %v1446
        %1565 = vmatprep.subr.mxu0 0.0
        %1566 = vmatpush1.msra.mxu0 %v1447
        %1567 = vmatprep.subr.mxu0 0.0
        %1568 = vmatpush1.msra.mxu0 %v1448
        %1569 = vmatprep.subr.mxu0 0.0
        %1570 = vmatpush1.msra.mxu0 %v1449
        %1571 = vmatprep.subr.mxu0 0.0
        %1572 = vmatpush1.msra.mxu0 %v1450
        %1573 = vmatprep.subr.mxu0 0.0
        %1574 = vmatpush1.msra.mxu0 %v1451
        %1575 = vmatprep.subr.mxu0 0.0
        %1576 = vmatpush1.msra.mxu0 0.0
        %1577 = vmatprep.subr.mxu0 0.0
        %1578 = vmatpush1.msra.mxu0 0.0
        %1579 = vmatprep.subr.mxu0 0.0
        %1580 = vmatpush1.msra.mxu0 0.0
        %1581 = vmatprep.subr.mxu0 0.0
        %1582 = vmatpush1.msra.mxu0 0.0
        %1583 = vmatprep.subr.mxu0 0.0
        %1584 = vmatpush1.msra.mxu0 0.0
        %1585 = vmatprep.subr.mxu0 0.0
        %1586 = vmatpush1.msra.mxu0 0.0
        %1587 = vmatprep.subr.mxu0 0.0
        %1588 = vmatpush1.msra.mxu0 0.0
        %1589 = vmatprep.subr.mxu0 0.0
        %1590 = vmatpush1.msra.mxu0 0.0
        %1591 = vmatprep.subr.mxu0 0.0
        %1592 = vmatpush1.msra.mxu0 0.0
        %1593 = vmatprep.subr.mxu0 0.0
        %1594 = vmatpush1.msra.mxu0 0.0
        %1595 = vmatprep.subr.mxu0 0.0
        %1596 = vmatpush1.msra.mxu0 0.0
        %1597 = vmatprep.subr.mxu0 0.0
        %1598 = vmatpush1.msra.mxu0 0.0
        %1599 = vmatprep.subr.mxu0 0.0
        %1600 = vmatpush1.msra.mxu0 0.0
        %1601 = vmatprep.subr.mxu0 0.0
        %1602 = vmatpush1.msra.mxu0 0.0
        %1603 = vmatprep.subr.mxu0 0.0
        %1604 = vmatpush1.msra.mxu0 0.0
        %1605 = vmatprep.subr.mxu0 0.0
        %1606 = vmatpush1.msra.mxu0 0.0
        %1607 = vmatprep.mubr.f32.mxu0 0.0
        %1608 = vmatmul.mubr.f32.gmra.mrb[0].mxu0 %v1428
        %v1609 = vpop.f32.mrb[0].mxu0
        %v1610 = vadd.f32 %v1535, %v1609
        %v1611 = vpop.f32.mrb[0].mxu0
        %1612 = vmatprep.mubr.f32.mxu0 0.0
        %1613 = vmatmul.mubr.f32.gmra.mrb[0].mxu0 %v1429
        %v1614 = vpop.f32.mrb[0].mxu0
        %v1615 = vadd.f32 %v1540, %v1614
        %v1616 = vpop.f32.mrb[0].mxu0
        %1617 = vdwg.mxu0
        %v1618 = vld [vmem:[%s616 + $0x100] sm:$0xff]
        %v1619 = vld [vmem:[%s616 + $0x108] sm:$0xff]
        %v1620 = vld [vmem:[%s616 + $0x110] sm:$0xff]
        %v1621 = vld [vmem:[%s616 + $0x118] sm:$0xff]
        %v1622 = vld [vmem:[%s616 + $0x120] sm:$0xff]
        %v1623 = vld [vmem:[%s616 + $0x128] sm:$0xff]
        %v1624 = vld [vmem:[%s616 + $0x130] sm:$0xff]
        %v1625 = vld [vmem:[%s616 + $0x138] sm:$0xff]
        %v1626 = vld [vmem:[%s616 + $0x140] sm:$0xff]
        %v1627 = vld [vmem:[%s616 + $0x148] sm:$0xff]
        %v1628 = vld [vmem:[%s616 + $0x150] sm:$0xff]
        %v1629 = vld [vmem:[%s616 + $0x158] sm:$0xff]
        %v1630 = vld [vmem:[%s616 + $0x160] sm:$0xff]
        %v1631 = vld [vmem:[%s616 + $0x168] sm:$0xff]
        %v1632 = vld [vmem:[%s616 + $0x170] sm:$0xff]
        %v1633 = vld [vmem:[%s616 + $0x178] sm:$0xff]
        %1634 = vmatprep.subr.mxu0 0.0
        %1635 = vmatpush1.msra.mxu0 %v1618
        %1636 = vmatprep.subr.mxu0 0.0
        %1637 = vmatpush1.msra.mxu0 %v1619
        %1638 = vmatprep.subr.mxu0 0.0
        %1639 = vmatpush1.msra.mxu0 %v1620
        %1640 = vmatprep.subr.mxu0 0.0
        %1641 = vmatpush1.msra.mxu0 %v1621
        %1642 = vmatprep.subr.mxu0 0.0
        %1643 = vmatpush1.msra.mxu0 %v1622
        %1644 = vmatprep.subr.mxu0 0.0
        %1645 = vmatpush1.msra.mxu0 %v1623
        %1646 = vmatprep.subr.mxu0 0.0
        %1647 = vmatpush1.msra.mxu0 %v1624
        %1648 = vmatprep.subr.mxu0 0.0
        %1649 = vmatpush1.msra.mxu0 %v1625
        %1650 = vmatprep.subr.mxu0 0.0
        %1651 = vmatpush1.msra.mxu0 %v1626
        %1652 = vmatprep.subr.mxu0 0.0
        %1653 = vmatpush1.msra.mxu0 %v1627
        %1654 = vmatprep.subr.mxu0 0.0
        %1655 = vmatpush1.msra.mxu0 %v1628
        %1656 = vmatprep.subr.mxu0 0.0
        %1657 = vmatpush1.msra.mxu0 %v1629
        %1658 = vmatprep.subr.mxu0 0.0
        %1659 = vmatpush1.msra.mxu0 %v1630
        %1660 = vmatprep.subr.mxu0 0.0
        %1661 = vmatpush1.msra.mxu0 %v1631
        %1662 = vmatprep.subr.mxu0 0.0
        %1663 = vmatpush1.msra.mxu0 %v1632
        %1664 = vmatprep.subr.mxu0 0.0
        %1665 = vmatpush1.msra.mxu0 %v1633
        %1666 = vmatprep.subr.mxu0 0.0
        %1667 = vmatpush1.msra.mxu0 0.0
        %1668 = vmatprep.subr.mxu0 0.0
        %1669 = vmatpush1.msra.mxu0 0.0
        %1670 = vmatprep.subr.mxu0 0.0
        %1671 = vmatpush1.msra.mxu0 0.0
        %1672 = vmatprep.subr.mxu0 0.0
        %1673 = vmatpush1.msra.mxu0 0.0
        %1674 = vmatprep.subr.mxu0 0.0
        %1675 = vmatpush1.msra.mxu0 0.0
        %1676 = vmatprep.subr.mxu0 0.0
        %1677 = vmatpush1.msra.mxu0 0.0
        %1678 = vmatprep.subr.mxu0 0.0
        %1679 = vmatpush1.msra.mxu0 0.0
        %1680 = vmatprep.subr.mxu0 0.0
        %1681 = vmatpush1.msra.mxu0 0.0
        %1682 = vmatprep.subr.mxu0 0.0
        %1683 = vmatpush1.msra.mxu0 0.0
        %1684 = vmatprep.subr.mxu0 0.0
        %1685 = vmatpush1.msra.mxu0 0.0
        %1686 = vmatprep.subr.mxu0 0.0
        %1687 = vmatpush1.msra.mxu0 0.0
        %1688 = vmatprep.subr.mxu0 0.0
        %1689 = vmatpush1.msra.mxu0 0.0
        %1690 = vmatprep.subr.mxu0 0.0
        %1691 = vmatpush1.msra.mxu0 0.0
        %1692 = vmatprep.subr.mxu0 0.0
        %1693 = vmatpush1.msra.mxu0 0.0
        %1694 = vmatprep.subr.mxu0 0.0
        %1695 = vmatpush1.msra.mxu0 0.0
        %1696 = vmatprep.subr.mxu0 0.0
        %1697 = vmatpush1.msra.mxu0 0.0
        %1698 = vmatprep.mubr.f32.mxu0 0.0
        %1699 = vmatmul.mubr.f32.gmra.mrb[0].mxu0 %v1434
        %v1700 = vpop.f32.mrb[0].mxu0
        %v1701 = vadd.f32 0.0, %v1700
        %v1702 = vpop.f32.mrb[0].mxu0
        %1703 = vmatprep.mubr.f32.mxu0 0.0
        %1704 = vmatmul.mubr.f32.gmra.mrb[0].mxu0 %v1435
        %v1705 = vpop.f32.mrb[0].mxu0
        %v1706 = vadd.f32 0.0, %v1705
        %v1707 = vpop.f32.mrb[0].mxu0
        %1708 = vdwg.mxu0
        %v1709 = vadd.f32 %v1610, %v1701
        %v1710 = vadd.f32 %v1615, %v1706
        %v1711 = vlaneseq
        %v1712 = vshrl.u32 %v1711, 7
        %v1713 = vsub.s32 0, %v1712
        %v1714 = vrot.slane %v1423, %v1713
        %v1715 = vadd.f32 %v1709, %v1714
        %v1716 = vadd.f32 %v1710, %v1714
        %vm1717 = vcmp.ge.f32.partialorder %v1715, 0.0
        %vm1718 = vcmp.ge.f32.partialorder %v1716, 0.0
        %v1719 = vmul.f32 %v1715, 0.1
        %v1720 = vmul.f32 %v1716, 0.1
        %v1721 = vsel %vm1717, %v1715, %v1719
        %v1722 = vsel %vm1718, %v1716, %v1720
        %v1723 = vld [vmem:[%s793 + $0x5] sm:$0x1]
        %v1724 = vrot.slane %v1721, 7
        %v1725 = vrot.slane %v1722, 7
        %v1726 = vsel %vm830, %v1724, %v1725
        %v1727 = vsel %vm830, %v1725, %v1724
        %v1728 = vsel %vm819, %v1727, 0.0
        %v1729 = vsel %vm820, %v1726, 0.0
        %v1730 = vrot.slane %v1721, 1
        %v1731 = vrot.slane %v1722, 1
        %v1732 = vsel %vm837, %v1730, %v1731
        %v1733 = vsel %vm837, %v1731, %v1730
        %v1734 = vsel %vm821, %v1732, 0.0
        %v1735 = vsel %vm822, %v1733, 0.0
        %v1736 = vld [vmem:[%s625] sm:$0xff]
        %v1737 = vld [vmem:[%s625 + $0x8] sm:$0xff]
        %v1738 = vld [vmem:[%s625 + $0x10] sm:$0xff]
        %v1739 = vld [vmem:[%s625 + $0x18] sm:$0xff]
        %v1740 = vld [vmem:[%s625 + $0x20] sm:$0xff]
        %v1741 = vld [vmem:[%s625 + $0x28] sm:$0xff]
        %v1742 = vld [vmem:[%s625 + $0x30] sm:$0xff]
        %v1743 = vld [vmem:[%s625 + $0x38] sm:$0xff]
        %v1744 = vld [vmem:[%s625 + $0x40] sm:$0xff]
        %v1745 = vld [vmem:[%s625 + $0x48] sm:$0xff]
        %v1746 = vld [vmem:[%s625 + $0x50] sm:$0xff]
        %v1747 = vld [vmem:[%s625 + $0x58] sm:$0xff]
        %v1748 = vld [vmem:[%s625 + $0x60] sm:$0xff]
        %v1749 = vld [vmem:[%s625 + $0x68] sm:$0xff]
        %v1750 = vld [vmem:[%s625 + $0x70] sm:$0xff]
        %v1751 = vld [vmem:[%s625 + $0x78] sm:$0xff]
        %v1752 = vld [vmem:[%s625 + $0x80] sm:$0xff]
        %v1753 = vld [vmem:[%s625 + $0x88] sm:$0xff]
        %v1754 = vld [vmem:[%s625 + $0x90] sm:$0xff]
        %v1755 = vld [vmem:[%s625 + $0x98] sm:$0xff]
        %v1756 = vld [vmem:[%s625 + $0xa0] sm:$0xff]
        %v1757 = vld [vmem:[%s625 + $0xa8] sm:$0xff]
        %v1758 = vld [vmem:[%s625 + $0xb0] sm:$0xff]
        %v1759 = vld [vmem:[%s625 + $0xb8] sm:$0xff]
        %v1760 = vld [vmem:[%s625 + $0xc0] sm:$0xff]
        %v1761 = vld [vmem:[%s625 + $0xc8] sm:$0xff]
        %v1762 = vld [vmem:[%s625 + $0xd0] sm:$0xff]
        %v1763 = vld [vmem:[%s625 + $0xd8] sm:$0xff]
        %v1764 = vld [vmem:[%s625 + $0xe0] sm:$0xff]
        %v1765 = vld [vmem:[%s625 + $0xe8] sm:$0xff]
        %v1766 = vld [vmem:[%s625 + $0xf0] sm:$0xff]
        %v1767 = vld [vmem:[%s625 + $0xf8] sm:$0xff]
        %1768 = vmatprep.subr.mxu0 0.0
        %1769 = vmatpush1.msra.mxu0 %v1752
        %1770 = vmatprep.subr.mxu0 0.0
        %1771 = vmatpush1.msra.mxu0 %v1753
        %1772 = vmatprep.subr.mxu0 0.0
        %1773 = vmatpush1.msra.mxu0 %v1754
        %1774 = vmatprep.subr.mxu0 0.0
        %1775 = vmatpush1.msra.mxu0 %v1755
        %1776 = vmatprep.subr.mxu0 0.0
        %1777 = vmatpush1.msra.mxu0 %v1756
        %1778 = vmatprep.subr.mxu0 0.0
        %1779 = vmatpush1.msra.mxu0 %v1757
        %1780 = vmatprep.subr.mxu0 0.0
        %1781 = vmatpush1.msra.mxu0 %v1758
        %1782 = vmatprep.subr.mxu0 0.0
        %1783 = vmatpush1.msra.mxu0 %v1759
        %1784 = vmatprep.subr.mxu0 0.0
        %1785 = vmatpush1.msra.mxu0 %v1760
        %1786 = vmatprep.subr.mxu0 0.0
        %1787 = vmatpush1.msra.mxu0 %v1761
        %1788 = vmatprep.subr.mxu0 0.0
        %1789 = vmatpush1.msra.mxu0 %v1762
        %1790 = vmatprep.subr.mxu0 0.0
        %1791 = vmatpush1.msra.mxu0 %v1763
        %1792 = vmatprep.subr.mxu0 0.0
        %1793 = vmatpush1.msra.mxu0 %v1764
        %1794 = vmatprep.subr.mxu0 0.0
        %1795 = vmatpush1.msra.mxu0 %v1765
        %1796 = vmatprep.subr.mxu0 0.0
        %1797 = vmatpush1.msra.mxu0 %v1766
        %1798 = vmatprep.subr.mxu0 0.0
        %1799 = vmatpush1.msra.mxu0 %v1767
        %1800 = vmatprep.subr.mxu0 0.0
        %1801 = vmatpush1.msra.mxu0 0.0
        %1802 = vmatprep.subr.mxu0 0.0
        %1803 = vmatpush1.msra.mxu0 0.0
        %1804 = vmatprep.subr.mxu0 0.0
        %1805 = vmatpush1.msra.mxu0 0.0
        %1806 = vmatprep.subr.mxu0 0.0
        %1807 = vmatpush1.msra.mxu0 0.0
        %1808 = vmatprep.subr.mxu0 0.0
        %1809 = vmatpush1.msra.mxu0 0.0
        %1810 = vmatprep.subr.mxu0 0.0
        %1811 = vmatpush1.msra.mxu0 0.0
        %1812 = vmatprep.subr.mxu0 0.0
        %1813 = vmatpush1.msra.mxu0 0.0
        %1814 = vmatprep.subr.mxu0 0.0
        %1815 = vmatpush1.msra.mxu0 0.0
        %1816 = vmatprep.subr.mxu0 0.0
        %1817 = vmatpush1.msra.mxu0 0.0
        %1818 = vmatprep.subr.mxu0 0.0
        %1819 = vmatpush1.msra.mxu0 0.0
        %1820 = vmatprep.subr.mxu0 0.0
        %1821 = vmatpush1.msra.mxu0 0.0
        %1822 = vmatprep.subr.mxu0 0.0
        %1823 = vmatpush1.msra.mxu0 0.0
        %1824 = vmatprep.subr.mxu0 0.0
        %1825 = vmatpush1.msra.mxu0 0.0
        %1826 = vmatprep.subr.mxu0 0.0
        %1827 = vmatpush1.msra.mxu0 0.0
        %1828 = vmatprep.subr.mxu0 0.0
        %1829 = vmatpush1.msra.mxu0 0.0
        %1830 = vmatprep.subr.mxu0 0.0
        %1831 = vmatpush1.msra.mxu0 0.0
        %1832 = vmatprep.mubr.f32.mxu0 0.0
        %1833 = vmatmul.mubr.f32.gmra.mrb[0].mxu0 %v1721
        %v1834 = vpop.f32.mrb[0].mxu0
        %v1835 = vadd.f32 0.0, %v1834
        %v1836 = vpop.f32.mrb[0].mxu0
        %1837 = vmatprep.mubr.f32.mxu0 0.0
        %1838 = vmatmul.mubr.f32.gmra.mrb[0].mxu0 %v1722
        %v1839 = vpop.f32.mrb[0].mxu0
        %v1840 = vadd.f32 0.0, %v1839
        %v1841 = vpop.f32.mrb[0].mxu0
        %1842 = vdwg.mxu0
        %1843 = vmatprep.subr.mxu0 0.0
        %1844 = vmatpush1.msra.mxu0 %v1736
        %1845 = vmatprep.subr.mxu0 0.0
        %1846 = vmatpush1.msra.mxu0 %v1737
        %1847 = vmatprep.subr.mxu0 0.0
        %1848 = vmatpush1.msra.mxu0 %v1738
        %1849 = vmatprep.subr.mxu0 0.0
        %1850 = vmatpush1.msra.mxu0 %v1739
        %1851 = vmatprep.subr.mxu0 0.0
        %1852 = vmatpush1.msra.mxu0 %v1740
        %1853 = vmatprep.subr.mxu0 0.0
        %1854 = vmatpush1.msra.mxu0 %v1741
        %1855 = vmatprep.subr.mxu0 0.0
        %1856 = vmatpush1.msra.mxu0 %v1742
        %1857 = vmatprep.subr.mxu0 0.0
        %1858 = vmatpush1.msra.mxu0 %v1743
        %1859 = vmatprep.subr.mxu0 0.0
        %1860 = vmatpush1.msra.mxu0 %v1744
        %1861 = vmatprep.subr.mxu0 0.0
        %1862 = vmatpush1.msra.mxu0 %v1745
        %1863 = vmatprep.subr.mxu0 0.0
        %1864 = vmatpush1.msra.mxu0 %v1746
        %1865 = vmatprep.subr.mxu0 0.0
        %1866 = vmatpush1.msra.mxu0 %v1747
        %1867 = vmatprep.subr.mxu0 0.0
        %1868 = vmatpush1.msra.mxu0 %v1748
        %1869 = vmatprep.subr.mxu0 0.0
        %1870 = vmatpush1.msra.mxu0 %v1749
        %1871 = vmatprep.subr.mxu0 0.0
        %1872 = vmatpush1.msra.mxu0 %v1750
        %1873 = vmatprep.subr.mxu0 0.0
        %1874 = vmatpush1.msra.mxu0 %v1751
        %1875 = vmatprep.subr.mxu0 0.0
        %1876 = vmatpush1.msra.mxu0 0.0
        %1877 = vmatprep.subr.mxu0 0.0
        %1878 = vmatpush1.msra.mxu0 0.0
        %1879 = vmatprep.subr.mxu0 0.0
        %1880 = vmatpush1.msra.mxu0 0.0
        %1881 = vmatprep.subr.mxu0 0.0
        %1882 = vmatpush1.msra.mxu0 0.0
        %1883 = vmatprep.subr.mxu0 0.0
        %1884 = vmatpush1.msra.mxu0 0.0
        %1885 = vmatprep.subr.mxu0 0.0
        %1886 = vmatpush1.msra.mxu0 0.0
        %1887 = vmatprep.subr.mxu0 0.0
        %1888 = vmatpush1.msra.mxu0 0.0
        %1889 = vmatprep.subr.mxu0 0.0
        %1890 = vmatpush1.msra.mxu0 0.0
        %1891 = vmatprep.subr.mxu0 0.0
        %1892 = vmatpush1.msra.mxu0 0.0
        %1893 = vmatprep.subr.mxu0 0.0
        %1894 = vmatpush1.msra.mxu0 0.0
        %1895 = vmatprep.subr.mxu0 0.0
        %1896 = vmatpush1.msra.mxu0 0.0
        %1897 = vmatprep.subr.mxu0 0.0
        %1898 = vmatpush1.msra.mxu0 0.0
        %1899 = vmatprep.subr.mxu0 0.0
        %1900 = vmatpush1.msra.mxu0 0.0
        %1901 = vmatprep.subr.mxu0 0.0
        %1902 = vmatpush1.msra.mxu0 0.0
        %1903 = vmatprep.subr.mxu0 0.0
        %1904 = vmatpush1.msra.mxu0 0.0
        %1905 = vmatprep.subr.mxu0 0.0
        %1906 = vmatpush1.msra.mxu0 0.0
        %1907 = vmatprep.mubr.f32.mxu0 0.0
        %1908 = vmatmul.mubr.f32.gmra.mrb[0].mxu0 %v1728
        %v1909 = vpop.f32.mrb[0].mxu0
        %v1910 = vadd.f32 %v1835, %v1909
        %v1911 = vpop.f32.mrb[0].mxu0
        %1912 = vmatprep.mubr.f32.mxu0 0.0
        %1913 = vmatmul.mubr.f32.gmra.mrb[0].mxu0 %v1729
        %v1914 = vpop.f32.mrb[0].mxu0
        %v1915 = vadd.f32 %v1840, %v1914
        %v1916 = vpop.f32.mrb[0].mxu0
        %1917 = vdwg.mxu0
        %v1918 = vld [vmem:[%s625 + $0x100] sm:$0xff]
        %v1919 = vld [vmem:[%s625 + $0x108] sm:$0xff]
        %v1920 = vld [vmem:[%s625 + $0x110] sm:$0xff]
        %v1921 = vld [vmem:[%s625 + $0x118] sm:$0xff]
        %v1922 = vld [vmem:[%s625 + $0x120] sm:$0xff]
        %v1923 = vld [vmem:[%s625 + $0x128] sm:$0xff]
        %v1924 = vld [vmem:[%s625 + $0x130] sm:$0xff]
        %v1925 = vld [vmem:[%s625 + $0x138] sm:$0xff]
        %v1926 = vld [vmem:[%s625 + $0x140] sm:$0xff]
        %v1927 = vld [vmem:[%s625 + $0x148] sm:$0xff]
        %v1928 = vld [vmem:[%s625 + $0x150] sm:$0xff]
        %v1929 = vld [vmem:[%s625 + $0x158] sm:$0xff]
        %v1930 = vld [vmem:[%s625 + $0x160] sm:$0xff]
        %v1931 = vld [vmem:[%s625 + $0x168] sm:$0xff]
        %v1932 = vld [vmem:[%s625 + $0x170] sm:$0xff]
        %v1933 = vld [vmem:[%s625 + $0x178] sm:$0xff]
        %1934 = vmatprep.subr.mxu0 0.0
        %1935 = vmatpush1.msra.mxu0 %v1918
        %1936 = vmatprep.subr.mxu0 0.0
        %1937 = vmatpush1.msra.mxu0 %v1919
        %1938 = vmatprep.subr.mxu0 0.0
        %1939 = vmatpush1.msra.mxu0 %v1920
        %1940 = vmatprep.subr.mxu0 0.0
        %1941 = vmatpush1.msra.mxu0 %v1921
        %1942 = vmatprep.subr.mxu0 0.0
        %1943 = vmatpush1.msra.mxu0 %v1922
        %1944 = vmatprep.subr.mxu0 0.0
        %1945 = vmatpush1.msra.mxu0 %v1923
        %1946 = vmatprep.subr.mxu0 0.0
        %1947 = vmatpush1.msra.mxu0 %v1924
        %1948 = vmatprep.subr.mxu0 0.0
        %1949 = vmatpush1.msra.mxu0 %v1925
        %1950 = vmatprep.subr.mxu0 0.0
        %1951 = vmatpush1.msra.mxu0 %v1926
        %1952 = vmatprep.subr.mxu0 0.0
        %1953 = vmatpush1.msra.mxu0 %v1927
        %1954 = vmatprep.subr.mxu0 0.0
        %1955 = vmatpush1.msra.mxu0 %v1928
        %1956 = vmatprep.subr.mxu0 0.0
        %1957 = vmatpush1.msra.mxu0 %v1929
        %1958 = vmatprep.subr.mxu0 0.0
        %1959 = vmatpush1.msra.mxu0 %v1930
        %1960 = vmatprep.subr.mxu0 0.0
        %1961 = vmatpush1.msra.mxu0 %v1931
        %1962 = vmatprep.subr.mxu0 0.0
        %1963 = vmatpush1.msra.mxu0 %v1932
        %1964 = vmatprep.subr.mxu0 0.0
        %1965 = vmatpush1.msra.mxu0 %v1933
        %1966 = vmatprep.subr.mxu0 0.0
        %1967 = vmatpush1.msra.mxu0 0.0
        %1968 = vmatprep.subr.mxu0 0.0
        %1969 = vmatpush1.msra.mxu0 0.0
        %1970 = vmatprep.subr.mxu0 0.0
        %1971 = vmatpush1.msra.mxu0 0.0
        %1972 = vmatprep.subr.mxu0 0.0
        %1973 = vmatpush1.msra.mxu0 0.0
        %1974 = vmatprep.subr.mxu0 0.0
        %1975 = vmatpush1.msra.mxu0 0.0
        %1976 = vmatprep.subr.mxu0 0.0
        %1977 = vmatpush1.msra.mxu0 0.0
        %1978 = vmatprep.subr.mxu0 0.0
        %1979 = vmatpush1.msra.mxu0 0.0
        %1980 = vmatprep.subr.mxu0 0.0
        %1981 = vmatpush1.msra.mxu0 0.0
        %1982 = vmatprep.subr.mxu0 0.0
        %1983 = vmatpush1.msra.mxu0 0.0
        %1984 = vmatprep.subr.mxu0 0.0
        %1985 = vmatpush1.msra.mxu0 0.0
        %1986 = vmatprep.subr.mxu0 0.0
        %1987 = vmatpush1.msra.mxu0 0.0
        %1988 = vmatprep.subr.mxu0 0.0
        %1989 = vmatpush1.msra.mxu0 0.0
        %1990 = vmatprep.subr.mxu0 0.0
        %1991 = vmatpush1.msra.mxu0 0.0
        %1992 = vmatprep.subr.mxu0 0.0
        %1993 = vmatpush1.msra.mxu0 0.0
        %1994 = vmatprep.subr.mxu0 0.0
        %1995 = vmatpush1.msra.mxu0 0.0
        %1996 = vmatprep.subr.mxu0 0.0
        %1997 = vmatpush1.msra.mxu0 0.0
        %1998 = vmatprep.mubr.f32.mxu0 0.0
        %1999 = vmatmul.mubr.f32.gmra.mrb[0].mxu0 %v1734
        %v2000 = vpop.f32.mrb[0].mxu0
        %v2001 = vadd.f32 0.0, %v2000
        %v2002 = vpop.f32.mrb[0].mxu0
        %2003 = vmatprep.mubr.f32.mxu0 0.0
        %2004 = vmatmul.mubr.f32.gmra.mrb[0].mxu0 %v1735
        %v2005 = vpop.f32.mrb[0].mxu0
        %v2006 = vadd.f32 0.0, %v2005
        %v2007 = vpop.f32.mrb[0].mxu0
        %2008 = vdwg.mxu0
        %v2009 = vadd.f32 %v1910, %v2001
        %v2010 = vadd.f32 %v1915, %v2006
        %v2011 = vlaneseq
        %v2012 = vshrl.u32 %v2011, 7
        %v2013 = vsub.s32 0, %v2012
        %v2014 = vrot.slane %v1723, %v2013
        %v2015 = vadd.f32 %v2009, %v2014
        %v2016 = vadd.f32 %v2010, %v2014
        %vm2017 = vcmp.ge.f32.partialorder %v1421, 0.0
        %vm2018 = vcmp.ge.f32.partialorder %v1422, 0.0
        %v2019 = vmul.f32 %v1421, 0.1
        %v2020 = vmul.f32 %v1422, 0.1
        %v2021 = vsel %vm2017, %v1421, %v2019
        %v2022 = vsel %vm2018, %v1422, %v2020
        %v2023 = vrot.slane %v2021, 7
        %v2024 = vrot.slane %v2022, 7
        %v2025 = vsel %vm830, %v2023, %v2024
        %v2026 = vsel %vm830, %v2024, %v2023
        %v2027 = vsel %vm819, %v2026, 0.0
        %v2028 = vsel %vm820, %v2025, 0.0
        %v2029 = vrot.slane %v2021, 1
        %v2030 = vrot.slane %v2022, 1
        %v2031 = vsel %vm837, %v2029, %v2030
        %v2032 = vsel %vm837, %v2030, %v2029
        %v2033 = vsel %vm821, %v2031, 0.0
        %v2034 = vsel %vm822, %v2032, 0.0
        %v2035 = vld [vmem:[%s634] sm:$0xff]
        %v2036 = vld [vmem:[%s634 + $0x8] sm:$0xff]
        %v2037 = vld [vmem:[%s634 + $0x10] sm:$0xff]
        %v2038 = vld [vmem:[%s634 + $0x18] sm:$0xff]
        %v2039 = vld [vmem:[%s634 + $0x20] sm:$0xff]
        %v2040 = vld [vmem:[%s634 + $0x28] sm:$0xff]
        %v2041 = vld [vmem:[%s634 + $0x30] sm:$0xff]
        %v2042 = vld [vmem:[%s634 + $0x38] sm:$0xff]
        %v2043 = vld [vmem:[%s634 + $0x40] sm:$0xff]
        %v2044 = vld [vmem:[%s634 + $0x48] sm:$0xff]
        %v2045 = vld [vmem:[%s634 + $0x50] sm:$0xff]
        %v2046 = vld [vmem:[%s634 + $0x58] sm:$0xff]
        %v2047 = vld [vmem:[%s634 + $0x60] sm:$0xff]
        %v2048 = vld [vmem:[%s634 + $0x68] sm:$0xff]
        %v2049 = vld [vmem:[%s634 + $0x70] sm:$0xff]
        %v2050 = vld [vmem:[%s634 + $0x78] sm:$0xff]
        %v2051 = vld [vmem:[%s634 + $0x80] sm:$0xff]
        %v2052 = vld [vmem:[%s634 + $0x88] sm:$0xff]
        %v2053 = vld [vmem:[%s634 + $0x90] sm:$0xff]
        %v2054 = vld [vmem:[%s634 + $0x98] sm:$0xff]
        %v2055 = vld [vmem:[%s634 + $0xa0] sm:$0xff]
        %v2056 = vld [vmem:[%s634 + $0xa8] sm:$0xff]
        %v2057 = vld [vmem:[%s634 + $0xb0] sm:$0xff]
        %v2058 = vld [vmem:[%s634 + $0xb8] sm:$0xff]
        %v2059 = vld [vmem:[%s634 + $0xc0] sm:$0xff]
        %v2060 = vld [vmem:[%s634 + $0xc8] sm:$0xff]
        %v2061 = vld [vmem:[%s634 + $0xd0] sm:$0xff]
        %v2062 = vld [vmem:[%s634 + $0xd8] sm:$0xff]
        %v2063 = vld [vmem:[%s634 + $0xe0] sm:$0xff]
        %v2064 = vld [vmem:[%s634 + $0xe8] sm:$0xff]
        %v2065 = vld [vmem:[%s634 + $0xf0] sm:$0xff]
        %v2066 = vld [vmem:[%s634 + $0xf8] sm:$0xff]
        %2067 = vmatprep.subr.mxu0 0.0
        %2068 = vmatpush1.msra.mxu0 %v2051
        %2069 = vmatprep.subr.mxu0 0.0
        %2070 = vmatpush1.msra.mxu0 %v2052
        %2071 = vmatprep.subr.mxu0 0.0
        %2072 = vmatpush1.msra.mxu0 %v2053
        %2073 = vmatprep.subr.mxu0 0.0
        %2074 = vmatpush1.msra.mxu0 %v2054
        %2075 = vmatprep.subr.mxu0 0.0
        %2076 = vmatpush1.msra.mxu0 %v2055
        %2077 = vmatprep.subr.mxu0 0.0
        %2078 = vmatpush1.msra.mxu0 %v2056
        %2079 = vmatprep.subr.mxu0 0.0
        %2080 = vmatpush1.msra.mxu0 %v2057
        %2081 = vmatprep.subr.mxu0 0.0
        %2082 = vmatpush1.msra.mxu0 %v2058
        %2083 = vmatprep.subr.mxu0 0.0
        %2084 = vmatpush1.msra.mxu0 %v2059
        %2085 = vmatprep.subr.mxu0 0.0
        %2086 = vmatpush1.msra.mxu0 %v2060
        %2087 = vmatprep.subr.mxu0 0.0
        %2088 = vmatpush1.msra.mxu0 %v2061
        %2089 = vmatprep.subr.mxu0 0.0
        %2090 = vmatpush1.msra.mxu0 %v2062
        %2091 = vmatprep.subr.mxu0 0.0
        %2092 = vmatpush1.msra.mxu0 %v2063
        %2093 = vmatprep.subr.mxu0 0.0
        %2094 = vmatpush1.msra.mxu0 %v2064
        %2095 = vmatprep.subr.mxu0 0.0
        %2096 = vmatpush1.msra.mxu0 %v2065
        %2097 = vmatprep.subr.mxu0 0.0
        %2098 = vmatpush1.msra.mxu0 %v2066
        %2099 = vmatprep.subr.mxu0 0.0
        %2100 = vmatpush1.msra.mxu0 0.0
        %2101 = vmatprep.subr.mxu0 0.0
        %2102 = vmatpush1.msra.mxu0 0.0
        %2103 = vmatprep.subr.mxu0 0.0
        %2104 = vmatpush1.msra.mxu0 0.0
        %2105 = vmatprep.subr.mxu0 0.0
        %2106 = vmatpush1.msra.mxu0 0.0
        %2107 = vmatprep.subr.mxu0 0.0
        %2108 = vmatpush1.msra.mxu0 0.0
        %2109 = vmatprep.subr.mxu0 0.0
        %2110 = vmatpush1.msra.mxu0 0.0
        %2111 = vmatprep.subr.mxu0 0.0
        %2112 = vmatpush1.msra.mxu0 0.0
        %2113 = vmatprep.subr.mxu0 0.0
        %2114 = vmatpush1.msra.mxu0 0.0
        %2115 = vmatprep.subr.mxu0 0.0
        %2116 = vmatpush1.msra.mxu0 0.0
        %2117 = vmatprep.subr.mxu0 0.0
        %2118 = vmatpush1.msra.mxu0 0.0
        %2119 = vmatprep.subr.mxu0 0.0
        %2120 = vmatpush1.msra.mxu0 0.0
        %2121 = vmatprep.subr.mxu0 0.0
        %2122 = vmatpush1.msra.mxu0 0.0
        %2123 = vmatprep.subr.mxu0 0.0
        %2124 = vmatpush1.msra.mxu0 0.0
        %2125 = vmatprep.subr.mxu0 0.0
        %2126 = vmatpush1.msra.mxu0 0.0
        %2127 = vmatprep.subr.mxu0 0.0
        %2128 = vmatpush1.msra.mxu0 0.0
        %2129 = vmatprep.subr.mxu0 0.0
        %2130 = vmatpush1.msra.mxu0 0.0
        %2131 = vmatprep.mubr.f32.mxu0 0.0
        %2132 = vmatmul.mubr.f32.gmra.mrb[0].mxu0 %v2021
        %v2133 = vpop.f32.mrb[0].mxu0
        %v2134 = vadd.f32 0.0, %v2133
        %v2135 = vpop.f32.mrb[0].mxu0
        %2136 = vmatprep.mubr.f32.mxu0 0.0
        %2137 = vmatmul.mubr.f32.gmra.mrb[0].mxu0 %v2022
        %v2138 = vpop.f32.mrb[0].mxu0
        %v2139 = vadd.f32 0.0, %v2138
        %v2140 = vpop.f32.mrb[0].mxu0
        %2141 = vdwg.mxu0
        %2142 = vmatprep.subr.mxu0 0.0
        %2143 = vmatpush1.msra.mxu0 %v2035
        %2144 = vmatprep.subr.mxu0 0.0
        %2145 = vmatpush1.msra.mxu0 %v2036
        %2146 = vmatprep.subr.mxu0 0.0
        %2147 = vmatpush1.msra.mxu0 %v2037
        %2148 = vmatprep.subr.mxu0 0.0
        %2149 = vmatpush1.msra.mxu0 %v2038
        %2150 = vmatprep.subr.mxu0 0.0
        %2151 = vmatpush1.msra.mxu0 %v2039
        %2152 = vmatprep.subr.mxu0 0.0
        %2153 = vmatpush1.msra.mxu0 %v2040
        %2154 = vmatprep.subr.mxu0 0.0
        %2155 = vmatpush1.msra.mxu0 %v2041
        %2156 = vmatprep.subr.mxu0 0.0
        %2157 = vmatpush1.msra.mxu0 %v2042
        %2158 = vmatprep.subr.mxu0 0.0
        %2159 = vmatpush1.msra.mxu0 %v2043
        %2160 = vmatprep.subr.mxu0 0.0
        %2161 = vmatpush1.msra.mxu0 %v2044
        %2162 = vmatprep.subr.mxu0 0.0
        %2163 = vmatpush1.msra.mxu0 %v2045
        %2164 = vmatprep.subr.mxu0 0.0
        %2165 = vmatpush1.msra.mxu0 %v2046
        %2166 = vmatprep.subr.mxu0 0.0
        %2167 = vmatpush1.msra.mxu0 %v2047
        %2168 = vmatprep.subr.mxu0 0.0
        %2169 = vmatpush1.msra.mxu0 %v2048
        %2170 = vmatprep.subr.mxu0 0.0
        %2171 = vmatpush1.msra.mxu0 %v2049
        %2172 = vmatprep.subr.mxu0 0.0
        %2173 = vmatpush1.msra.mxu0 %v2050
        %2174 = vmatprep.subr.mxu0 0.0
        %2175 = vmatpush1.msra.mxu0 0.0
        %2176 = vmatprep.subr.mxu0 0.0
        %2177 = vmatpush1.msra.mxu0 0.0
        %2178 = vmatprep.subr.mxu0 0.0
        %2179 = vmatpush1.msra.mxu0 0.0
        %2180 = vmatprep.subr.mxu0 0.0
        %2181 = vmatpush1.msra.mxu0 0.0
        %2182 = vmatprep.subr.mxu0 0.0
        %2183 = vmatpush1.msra.mxu0 0.0
        %2184 = vmatprep.subr.mxu0 0.0
        %2185 = vmatpush1.msra.mxu0 0.0
        %2186 = vmatprep.subr.mxu0 0.0
        %2187 = vmatpush1.msra.mxu0 0.0
        %2188 = vmatprep.subr.mxu0 0.0
        %2189 = vmatpush1.msra.mxu0 0.0
        %2190 = vmatprep.subr.mxu0 0.0
        %2191 = vmatpush1.msra.mxu0 0.0
        %2192 = vmatprep.subr.mxu0 0.0
        %2193 = vmatpush1.msra.mxu0 0.0
        %2194 = vmatprep.subr.mxu0 0.0
        %2195 = vmatpush1.msra.mxu0 0.0
        %2196 = vmatprep.subr.mxu0 0.0
        %2197 = vmatpush1.msra.mxu0 0.0
        %2198 = vmatprep.subr.mxu0 0.0
        %2199 = vmatpush1.msra.mxu0 0.0
        %2200 = vmatprep.subr.mxu0 0.0
        %2201 = vmatpush1.msra.mxu0 0.0
        %2202 = vmatprep.subr.mxu0 0.0
        %2203 = vmatpush1.msra.mxu0 0.0
        %2204 = vmatprep.subr.mxu0 0.0
        %2205 = vmatpush1.msra.mxu0 0.0
        %2206 = vmatprep.mubr.f32.mxu0 0.0
        %2207 = vmatmul.mubr.f32.gmra.mrb[0].mxu0 %v2027
        %v2208 = vpop.f32.mrb[0].mxu0
        %v2209 = vadd.f32 %v2134, %v2208
        %v2210 = vpop.f32.mrb[0].mxu0
        %2211 = vmatprep.mubr.f32.mxu0 0.0
        %2212 = vmatmul.mubr.f32.gmra.mrb[0].mxu0 %v2028
        %v2213 = vpop.f32.mrb[0].mxu0
        %v2214 = vadd.f32 %v2139, %v2213
        %v2215 = vpop.f32.mrb[0].mxu0
        %2216 = vdwg.mxu0
        %v2217 = vld [vmem:[%s634 + $0x100] sm:$0xff]
        %v2218 = vld [vmem:[%s634 + $0x108] sm:$0xff]
        %v2219 = vld [vmem:[%s634 + $0x110] sm:$0xff]
        %v2220 = vld [vmem:[%s634 + $0x118] sm:$0xff]
        %v2221 = vld [vmem:[%s634 + $0x120] sm:$0xff]
        %v2222 = vld [vmem:[%s634 + $0x128] sm:$0xff]
        %v2223 = vld [vmem:[%s634 + $0x130] sm:$0xff]
        %v2224 = vld [vmem:[%s634 + $0x138] sm:$0xff]
        %v2225 = vld [vmem:[%s634 + $0x140] sm:$0xff]
        %v2226 = vld [vmem:[%s634 + $0x148] sm:$0xff]
        %v2227 = vld [vmem:[%s634 + $0x150] sm:$0xff]
        %v2228 = vld [vmem:[%s634 + $0x158] sm:$0xff]
        %v2229 = vld [vmem:[%s634 + $0x160] sm:$0xff]
        %v2230 = vld [vmem:[%s634 + $0x168] sm:$0xff]
        %v2231 = vld [vmem:[%s634 + $0x170] sm:$0xff]
        %v2232 = vld [vmem:[%s634 + $0x178] sm:$0xff]
        %2233 = vmatprep.subr.mxu0 0.0
        %2234 = vmatpush1.msra.mxu0 %v2217
        %2235 = vmatprep.subr.mxu0 0.0
        %2236 = vmatpush1.msra.mxu0 %v2218
        %2237 = vmatprep.subr.mxu0 0.0
        %2238 = vmatpush1.msra.mxu0 %v2219
        %2239 = vmatprep.subr.mxu0 0.0
        %2240 = vmatpush1.msra.mxu0 %v2220
        %2241 = vmatprep.subr.mxu0 0.0
        %2242 = vmatpush1.msra.mxu0 %v2221
        %2243 = vmatprep.subr.mxu0 0.0
        %2244 = vmatpush1.msra.mxu0 %v2222
        %2245 = vmatprep.subr.mxu0 0.0
        %2246 = vmatpush1.msra.mxu0 %v2223
        %2247 = vmatprep.subr.mxu0 0.0
        %2248 = vmatpush1.msra.mxu0 %v2224
        %2249 = vmatprep.subr.mxu0 0.0
        %2250 = vmatpush1.msra.mxu0 %v2225
        %2251 = vmatprep.subr.mxu0 0.0
        %2252 = vmatpush1.msra.mxu0 %v2226
        %2253 = vmatprep.subr.mxu0 0.0
        %2254 = vmatpush1.msra.mxu0 %v2227
        %2255 = vmatprep.subr.mxu0 0.0
        %2256 = vmatpush1.msra.mxu0 %v2228
        %2257 = vmatprep.subr.mxu0 0.0
        %2258 = vmatpush1.msra.mxu0 %v2229
        %2259 = vmatprep.subr.mxu0 0.0
        %2260 = vmatpush1.msra.mxu0 %v2230
        %2261 = vmatprep.subr.mxu0 0.0
        %2262 = vmatpush1.msra.mxu0 %v2231
        %2263 = vmatprep.subr.mxu0 0.0
        %2264 = vmatpush1.msra.mxu0 %v2232
        %2265 = vmatprep.subr.mxu0 0.0
        %2266 = vmatpush1.msra.mxu0 0.0
        %2267 = vmatprep.subr.mxu0 0.0
        %2268 = vmatpush1.msra.mxu0 0.0
        %2269 = vmatprep.subr.mxu0 0.0
        %2270 = vmatpush1.msra.mxu0 0.0
        %2271 = vmatprep.subr.mxu0 0.0
        %2272 = vmatpush1.msra.mxu0 0.0
        %2273 = vmatprep.subr.mxu0 0.0
        %2274 = vmatpush1.msra.mxu0 0.0
        %2275 = vmatprep.subr.mxu0 0.0
        %2276 = vmatpush1.msra.mxu0 0.0
        %2277 = vmatprep.subr.mxu0 0.0
        %2278 = vmatpush1.msra.mxu0 0.0
        %2279 = vmatprep.subr.mxu0 0.0
        %2280 = vmatpush1.msra.mxu0 0.0
        %2281 = vmatprep.subr.mxu0 0.0
        %2282 = vmatpush1.msra.mxu0 0.0
        %2283 = vmatprep.subr.mxu0 0.0
        %2284 = vmatpush1.msra.mxu0 0.0
        %2285 = vmatprep.subr.mxu0 0.0
        %2286 = vmatpush1.msra.mxu0 0.0
        %2287 = vmatprep.subr.mxu0 0.0
        %2288 = vmatpush1.msra.mxu0 0.0
        %2289 = vmatprep.subr.mxu0 0.0
        %2290 = vmatpush1.msra.mxu0 0.0
        %2291 = vmatprep.subr.mxu0 0.0
        %2292 = vmatpush1.msra.mxu0 0.0
        %2293 = vmatprep.subr.mxu0 0.0
        %2294 = vmatpush1.msra.mxu0 0.0
        %2295 = vmatprep.subr.mxu0 0.0
        %2296 = vmatpush1.msra.mxu0 0.0
        %2297 = vmatprep.mubr.f32.mxu0 0.0
        %2298 = vmatmul.mubr.f32.gmra.mrb[0].mxu0 %v2033
        %v2299 = vpop.f32.mrb[0].mxu0
        %v2300 = vadd.f32 0.0, %v2299
        %v2301 = vpop.f32.mrb[0].mxu0
        %2302 = vmatprep.mubr.f32.mxu0 0.0
        %2303 = vmatmul.mubr.f32.gmra.mrb[0].mxu0 %v2034
        %v2304 = vpop.f32.mrb[0].mxu0
        %v2305 = vadd.f32 0.0, %v2304
        %v2306 = vpop.f32.mrb[0].mxu0
        %2307 = vdwg.mxu0
        %v2308 = vadd.f32 %v2209, %v2300
        %v2309 = vadd.f32 %v2214, %v2305
        %vm2310 = vcmp.ge.f32.partialorder %v2015, 0.0
        %vm2311 = vcmp.ge.f32.partialorder %v2016, 0.0
        %v2312 = vmul.f32 %v2015, 0.1
        %v2313 = vmul.f32 %v2016, 0.1
        %v2314 = vsel %vm2310, %v2015, %v2312
        %v2315 = vsel %vm2311, %v2016, %v2313
        %v2316 = vrot.slane %v2314, 7
        %v2317 = vrot.slane %v2315, 7
        %v2318 = vsel %vm830, %v2316, %v2317
        %v2319 = vsel %vm830, %v2317, %v2316
        %v2320 = vsel %vm819, %v2319, 0.0
        %v2321 = vsel %vm820, %v2318, 0.0
        %v2322 = vrot.slane %v2314, 1
        %v2323 = vrot.slane %v2315, 1
        %v2324 = vsel %vm837, %v2322, %v2323
        %v2325 = vsel %vm837, %v2323, %v2322
        %v2326 = vsel %vm821, %v2324, 0.0
        %v2327 = vsel %vm822, %v2325, 0.0
        %v2328 = vld [vmem:[%s643] sm:$0xff]
        %v2329 = vld [vmem:[%s643 + $0x8] sm:$0xff]
        %v2330 = vld [vmem:[%s643 + $0x10] sm:$0xff]
        %v2331 = vld [vmem:[%s643 + $0x18] sm:$0xff]
        %v2332 = vld [vmem:[%s643 + $0x20] sm:$0xff]
        %v2333 = vld [vmem:[%s643 + $0x28] sm:$0xff]
        %v2334 = vld [vmem:[%s643 + $0x30] sm:$0xff]
        %v2335 = vld [vmem:[%s643 + $0x38] sm:$0xff]
        %v2336 = vld [vmem:[%s643 + $0x40] sm:$0xff]
        %v2337 = vld [vmem:[%s643 + $0x48] sm:$0xff]
        %v2338 = vld [vmem:[%s643 + $0x50] sm:$0xff]
        %v2339 = vld [vmem:[%s643 + $0x58] sm:$0xff]
        %v2340 = vld [vmem:[%s643 + $0x60] sm:$0xff]
        %v2341 = vld [vmem:[%s643 + $0x68] sm:$0xff]
        %v2342 = vld [vmem:[%s643 + $0x70] sm:$0xff]
        %v2343 = vld [vmem:[%s643 + $0x78] sm:$0xff]
        %v2344 = vld [vmem:[%s643 + $0x80] sm:$0xff]
        %v2345 = vld [vmem:[%s643 + $0x88] sm:$0xff]
        %v2346 = vld [vmem:[%s643 + $0x90] sm:$0xff]
        %v2347 = vld [vmem:[%s643 + $0x98] sm:$0xff]
        %v2348 = vld [vmem:[%s643 + $0xa0] sm:$0xff]
        %v2349 = vld [vmem:[%s643 + $0xa8] sm:$0xff]
        %v2350 = vld [vmem:[%s643 + $0xb0] sm:$0xff]
        %v2351 = vld [vmem:[%s643 + $0xb8] sm:$0xff]
        %v2352 = vld [vmem:[%s643 + $0xc0] sm:$0xff]
        %v2353 = vld [vmem:[%s643 + $0xc8] sm:$0xff]
        %v2354 = vld [vmem:[%s643 + $0xd0] sm:$0xff]
        %v2355 = vld [vmem:[%s643 + $0xd8] sm:$0xff]
        %v2356 = vld [vmem:[%s643 + $0xe0] sm:$0xff]
        %v2357 = vld [vmem:[%s643 + $0xe8] sm:$0xff]
        %v2358 = vld [vmem:[%s643 + $0xf0] sm:$0xff]
        %v2359 = vld [vmem:[%s643 + $0xf8] sm:$0xff]
        %2360 = vmatprep.subr.mxu0 0.0
        %2361 = vmatpush1.msra.mxu0 %v2344
        %2362 = vmatprep.subr.mxu0 0.0
        %2363 = vmatpush1.msra.mxu0 %v2345
        %2364 = vmatprep.subr.mxu0 0.0
        %2365 = vmatpush1.msra.mxu0 %v2346
        %2366 = vmatprep.subr.mxu0 0.0
        %2367 = vmatpush1.msra.mxu0 %v2347
        %2368 = vmatprep.subr.mxu0 0.0
        %2369 = vmatpush1.msra.mxu0 %v2348
        %2370 = vmatprep.subr.mxu0 0.0
        %2371 = vmatpush1.msra.mxu0 %v2349
        %2372 = vmatprep.subr.mxu0 0.0
        %2373 = vmatpush1.msra.mxu0 %v2350
        %2374 = vmatprep.subr.mxu0 0.0
        %2375 = vmatpush1.msra.mxu0 %v2351
        %2376 = vmatprep.subr.mxu0 0.0
        %2377 = vmatpush1.msra.mxu0 %v2352
        %2378 = vmatprep.subr.mxu0 0.0
        %2379 = vmatpush1.msra.mxu0 %v2353
        %2380 = vmatprep.subr.mxu0 0.0
        %2381 = vmatpush1.msra.mxu0 %v2354
        %2382 = vmatprep.subr.mxu0 0.0
        %2383 = vmatpush1.msra.mxu0 %v2355
        %2384 = vmatprep.subr.mxu0 0.0
        %2385 = vmatpush1.msra.mxu0 %v2356
        %2386 = vmatprep.subr.mxu0 0.0
        %2387 = vmatpush1.msra.mxu0 %v2357
        %2388 = vmatprep.subr.mxu0 0.0
        %2389 = vmatpush1.msra.mxu0 %v2358
        %2390 = vmatprep.subr.mxu0 0.0
        %2391 = vmatpush1.msra.mxu0 %v2359
        %2392 = vmatprep.subr.mxu0 0.0
        %2393 = vmatpush1.msra.mxu0 0.0
        %2394 = vmatprep.subr.mxu0 0.0
        %2395 = vmatpush1.msra.mxu0 0.0
        %2396 = vmatprep.subr.mxu0 0.0
        %2397 = vmatpush1.msra.mxu0 0.0
        %2398 = vmatprep.subr.mxu0 0.0
        %2399 = vmatpush1.msra.mxu0 0.0
        %2400 = vmatprep.subr.mxu0 0.0
        %2401 = vmatpush1.msra.mxu0 0.0
        %2402 = vmatprep.subr.mxu0 0.0
        %2403 = vmatpush1.msra.mxu0 0.0
        %2404 = vmatprep.subr.mxu0 0.0
        %2405 = vmatpush1.msra.mxu0 0.0
        %2406 = vmatprep.subr.mxu0 0.0
        %2407 = vmatpush1.msra.mxu0 0.0
        %2408 = vmatprep.subr.mxu0 0.0
        %2409 = vmatpush1.msra.mxu0 0.0
        %2410 = vmatprep.subr.mxu0 0.0
        %2411 = vmatpush1.msra.mxu0 0.0
        %2412 = vmatprep.subr.mxu0 0.0
        %2413 = vmatpush1.msra.mxu0 0.0
        %2414 = vmatprep.subr.mxu0 0.0
        %2415 = vmatpush1.msra.mxu0 0.0
        %2416 = vmatprep.subr.mxu0 0.0
        %2417 = vmatpush1.msra.mxu0 0.0
        %2418 = vmatprep.subr.mxu0 0.0
        %2419 = vmatpush1.msra.mxu0 0.0
        %2420 = vmatprep.subr.mxu0 0.0
        %2421 = vmatpush1.msra.mxu0 0.0
        %2422 = vmatprep.subr.mxu0 0.0
        %2423 = vmatpush1.msra.mxu0 0.0
        %2424 = vmatprep.mubr.f32.mxu0 0.0
        %2425 = vmatmul.mubr.f32.gmra.mrb[0].mxu0 %v2314
        %v2426 = vpop.f32.mrb[0].mxu0
        %v2427 = vadd.f32 0.0, %v2426
        %v2428 = vpop.f32.mrb[0].mxu0
        %2429 = vmatprep.mubr.f32.mxu0 0.0
        %2430 = vmatmul.mubr.f32.gmra.mrb[0].mxu0 %v2315
        %v2431 = vpop.f32.mrb[0].mxu0
        %v2432 = vadd.f32 0.0, %v2431
        %v2433 = vpop.f32.mrb[0].mxu0
        %2434 = vdwg.mxu0
        %2435 = vmatprep.subr.mxu0 0.0
        %2436 = vmatpush1.msra.mxu0 %v2328
        %2437 = vmatprep.subr.mxu0 0.0
        %2438 = vmatpush1.msra.mxu0 %v2329
        %2439 = vmatprep.subr.mxu0 0.0
        %2440 = vmatpush1.msra.mxu0 %v2330
        %2441 = vmatprep.subr.mxu0 0.0
        %2442 = vmatpush1.msra.mxu0 %v2331
        %2443 = vmatprep.subr.mxu0 0.0
        %2444 = vmatpush1.msra.mxu0 %v2332
        %2445 = vmatprep.subr.mxu0 0.0
        %2446 = vmatpush1.msra.mxu0 %v2333
        %2447 = vmatprep.subr.mxu0 0.0
        %2448 = vmatpush1.msra.mxu0 %v2334
        %2449 = vmatprep.subr.mxu0 0.0
        %2450 = vmatpush1.msra.mxu0 %v2335
        %2451 = vmatprep.subr.mxu0 0.0
        %2452 = vmatpush1.msra.mxu0 %v2336
        %2453 = vmatprep.subr.mxu0 0.0
        %2454 = vmatpush1.msra.mxu0 %v2337
        %2455 = vmatprep.subr.mxu0 0.0
        %2456 = vmatpush1.msra.mxu0 %v2338
        %2457 = vmatprep.subr.mxu0 0.0
        %2458 = vmatpush1.msra.mxu0 %v2339
        %2459 = vmatprep.subr.mxu0 0.0
        %2460 = vmatpush1.msra.mxu0 %v2340
        %2461 = vmatprep.subr.mxu0 0.0
        %2462 = vmatpush1.msra.mxu0 %v2341
        %2463 = vmatprep.subr.mxu0 0.0
        %2464 = vmatpush1.msra.mxu0 %v2342
        %2465 = vmatprep.subr.mxu0 0.0
        %2466 = vmatpush1.msra.mxu0 %v2343
        %2467 = vmatprep.subr.mxu0 0.0
        %2468 = vmatpush1.msra.mxu0 0.0
        %2469 = vmatprep.subr.mxu0 0.0
        %2470 = vmatpush1.msra.mxu0 0.0
        %2471 = vmatprep.subr.mxu0 0.0
        %2472 = vmatpush1.msra.mxu0 0.0
        %2473 = vmatprep.subr.mxu0 0.0
        %2474 = vmatpush1.msra.mxu0 0.0
        %2475 = vmatprep.subr.mxu0 0.0
        %2476 = vmatpush1.msra.mxu0 0.0
        %2477 = vmatprep.subr.mxu0 0.0
        %2478 = vmatpush1.msra.mxu0 0.0
        %2479 = vmatprep.subr.mxu0 0.0
        %2480 = vmatpush1.msra.mxu0 0.0
        %2481 = vmatprep.subr.mxu0 0.0
        %2482 = vmatpush1.msra.mxu0 0.0
        %2483 = vmatprep.subr.mxu0 0.0
        %2484 = vmatpush1.msra.mxu0 0.0
        %2485 = vmatprep.subr.mxu0 0.0
        %2486 = vmatpush1.msra.mxu0 0.0
        %2487 = vmatprep.subr.mxu0 0.0
        %2488 = vmatpush1.msra.mxu0 0.0
        %2489 = vmatprep.subr.mxu0 0.0
        %2490 = vmatpush1.msra.mxu0 0.0
        %2491 = vmatprep.subr.mxu0 0.0
        %2492 = vmatpush1.msra.mxu0 0.0
        %2493 = vmatprep.subr.mxu0 0.0
        %2494 = vmatpush1.msra.mxu0 0.0
        %2495 = vmatprep.subr.mxu0 0.0
        %2496 = vmatpush1.msra.mxu0 0.0
        %2497 = vmatprep.subr.mxu0 0.0
        %2498 = vmatpush1.msra.mxu0 0.0
        %2499 = vmatprep.mubr.f32.mxu0 0.0
        %2500 = vmatmul.mubr.f32.gmra.mrb[0].mxu0 %v2320
        %v2501 = vpop.f32.mrb[0].mxu0
        %v2502 = vadd.f32 %v2427, %v2501
        %v2503 = vpop.f32.mrb[0].mxu0
        %2504 = vmatprep.mubr.f32.mxu0 0.0
        %2505 = vmatmul.mubr.f32.gmra.mrb[0].mxu0 %v2321
        %v2506 = vpop.f32.mrb[0].mxu0
        %v2507 = vadd.f32 %v2432, %v2506
        %v2508 = vpop.f32.mrb[0].mxu0
        %2509 = vdwg.mxu0
        %v2510 = vld [vmem:[%s643 + $0x100] sm:$0xff]
        %v2511 = vld [vmem:[%s643 + $0x108] sm:$0xff]
        %v2512 = vld [vmem:[%s643 + $0x110] sm:$0xff]
        %v2513 = vld [vmem:[%s643 + $0x118] sm:$0xff]
        %v2514 = vld [vmem:[%s643 + $0x120] sm:$0xff]
        %v2515 = vld [vmem:[%s643 + $0x128] sm:$0xff]
        %v2516 = vld [vmem:[%s643 + $0x130] sm:$0xff]
        %v2517 = vld [vmem:[%s643 + $0x138] sm:$0xff]
        %v2518 = vld [vmem:[%s643 + $0x140] sm:$0xff]
        %v2519 = vld [vmem:[%s643 + $0x148] sm:$0xff]
        %v2520 = vld [vmem:[%s643 + $0x150] sm:$0xff]
        %v2521 = vld [vmem:[%s643 + $0x158] sm:$0xff]
        %v2522 = vld [vmem:[%s643 + $0x160] sm:$0xff]
        %v2523 = vld [vmem:[%s643 + $0x168] sm:$0xff]
        %v2524 = vld [vmem:[%s643 + $0x170] sm:$0xff]
        %v2525 = vld [vmem:[%s643 + $0x178] sm:$0xff]
        %2526 = vmatprep.subr.mxu0 0.0
        %2527 = vmatpush1.msra.mxu0 %v2510
        %2528 = vmatprep.subr.mxu0 0.0
        %2529 = vmatpush1.msra.mxu0 %v2511
        %2530 = vmatprep.subr.mxu0 0.0
        %2531 = vmatpush1.msra.mxu0 %v2512
        %2532 = vmatprep.subr.mxu0 0.0
        %2533 = vmatpush1.msra.mxu0 %v2513
        %2534 = vmatprep.subr.mxu0 0.0
        %2535 = vmatpush1.msra.mxu0 %v2514
        %2536 = vmatprep.subr.mxu0 0.0
        %2537 = vmatpush1.msra.mxu0 %v2515
        %2538 = vmatprep.subr.mxu0 0.0
        %2539 = vmatpush1.msra.mxu0 %v2516
        %2540 = vmatprep.subr.mxu0 0.0
        %2541 = vmatpush1.msra.mxu0 %v2517
        %2542 = vmatprep.subr.mxu0 0.0
        %2543 = vmatpush1.msra.mxu0 %v2518
        %2544 = vmatprep.subr.mxu0 0.0
        %2545 = vmatpush1.msra.mxu0 %v2519
        %2546 = vmatprep.subr.mxu0 0.0
        %2547 = vmatpush1.msra.mxu0 %v2520
        %2548 = vmatprep.subr.mxu0 0.0
        %2549 = vmatpush1.msra.mxu0 %v2521
        %2550 = vmatprep.subr.mxu0 0.0
        %2551 = vmatpush1.msra.mxu0 %v2522
        %2552 = vmatprep.subr.mxu0 0.0
        %2553 = vmatpush1.msra.mxu0 %v2523
        %2554 = vmatprep.subr.mxu0 0.0
        %2555 = vmatpush1.msra.mxu0 %v2524
        %2556 = vmatprep.subr.mxu0 0.0
        %2557 = vmatpush1.msra.mxu0 %v2525
        %2558 = vmatprep.subr.mxu0 0.0
        %2559 = vmatpush1.msra.mxu0 0.0
        %2560 = vmatprep.subr.mxu0 0.0
        %2561 = vmatpush1.msra.mxu0 0.0
        %2562 = vmatprep.subr.mxu0 0.0
        %2563 = vmatpush1.msra.mxu0 0.0
        %2564 = vmatprep.subr.mxu0 0.0
        %2565 = vmatpush1.msra.mxu0 0.0
        %2566 = vmatprep.subr.mxu0 0.0
        %2567 = vmatpush1.msra.mxu0 0.0
        %2568 = vmatprep.subr.mxu0 0.0
        %2569 = vmatpush1.msra.mxu0 0.0
        %2570 = vmatprep.subr.mxu0 0.0
        %2571 = vmatpush1.msra.mxu0 0.0
        %2572 = vmatprep.subr.mxu0 0.0
        %2573 = vmatpush1.msra.mxu0 0.0
        %2574 = vmatprep.subr.mxu0 0.0
        %2575 = vmatpush1.msra.mxu0 0.0
        %2576 = vmatprep.subr.mxu0 0.0
        %2577 = vmatpush1.msra.mxu0 0.0
        %2578 = vmatprep.subr.mxu0 0.0
        %2579 = vmatpush1.msra.mxu0 0.0
        %2580 = vmatprep.subr.mxu0 0.0
        %2581 = vmatpush1.msra.mxu0 0.0
        %2582 = vmatprep.subr.mxu0 0.0
        %2583 = vmatpush1.msra.mxu0 0.0
        %2584 = vmatprep.subr.mxu0 0.0
        %2585 = vmatpush1.msra.mxu0 0.0
        %2586 = vmatprep.subr.mxu0 0.0
        %2587 = vmatpush1.msra.mxu0 0.0
        %2588 = vmatprep.subr.mxu0 0.0
        %2589 = vmatpush1.msra.mxu0 0.0
        %2590 = vmatprep.mubr.f32.mxu0 0.0
        %2591 = vmatmul.mubr.f32.gmra.mrb[0].mxu0 %v2326
        %v2592 = vpop.f32.mrb[0].mxu0
        %v2593 = vadd.f32 0.0, %v2592
        %v2594 = vpop.f32.mrb[0].mxu0
        %2595 = vmatprep.mubr.f32.mxu0 0.0
        %2596 = vmatmul.mubr.f32.gmra.mrb[0].mxu0 %v2327
        %v2597 = vpop.f32.mrb[0].mxu0
        %v2598 = vadd.f32 0.0, %v2597
        %v2599 = vpop.f32.mrb[0].mxu0
        %2600 = vdwg.mxu0
        %v2601 = vadd.f32 %v2502, %v2593
        %v2602 = vadd.f32 %v2507, %v2598
        %v2603 = vadd.f32 %v2308, %v2601
        %v2604 = vadd.f32 %v2309, %v2602
        %v2605 = vld [vmem:[%s793 + $0x2] sm:$0x1]
        %v2606 = vlaneseq
        %v2607 = vshrl.u32 %v2606, 7
        %v2608 = vsub.s32 0, %v2607
        %v2609 = vrot.slane %v2605, %v2608
        %v2610 = vadd.f32 %v2603, %v2609
        %v2611 = vadd.f32 %v2604, %v2609
        %v2612 = vld [vmem:[%s793 + $0x7] sm:$0x1]
        %v2613 = vld [vmem:[%s793 + $0x3] sm:$0x1]
        %v2614 = vadd.f32 %v2610, %v2611
        %v2615 = vrot.slane %v2614, 4
        %v2616 = vadd.f32 %v2614, %v2615
        %v2617 = vrot.slane %v2616, 2
        %v2618 = vadd.f32 %v2616, %v2617
        %v2619 = vrot.slane %v2618, 1
        %v2620 = vadd.f32 %v2618, %v2619
        %v2621 = vrcp.pop 16.0
        %v2622 = vmul.f32 %v2620, %v2621
        %v2623 = vld [vmem:[%s775] sm:$0xff]
        %v2624 = vld [vmem:[%s775 + $0x8] sm:$0xff]
        %v2625 = vld [vmem:[%s775 + $0x10] sm:$0xff]
        %v2626 = vld [vmem:[%s775 + $0x18] sm:$0xff]
        %v2627 = vld [vmem:[%s775 + $0x20] sm:$0xff]
        %v2628 = vld [vmem:[%s775 + $0x28] sm:$0xff]
        %v2629 = vld [vmem:[%s775 + $0x30] sm:$0xff]
        %v2630 = vld [vmem:[%s775 + $0x38] sm:$0xff]
        %v2631 = vld [vmem:[%s775 + $0x40] sm:$0xff]
        %v2632 = vld [vmem:[%s775 + $0x48] sm:$0xff]
        %v2633 = vld [vmem:[%s775 + $0x50] sm:$0xff]
        %v2634 = vld [vmem:[%s775 + $0x58] sm:$0xff]
        %v2635 = vld [vmem:[%s775 + $0x60] sm:$0xff]
        %v2636 = vld [vmem:[%s775 + $0x68] sm:$0xff]
        %v2637 = vld [vmem:[%s775 + $0x70] sm:$0xff]
        %v2638 = vld [vmem:[%s775 + $0x78] sm:$0xff]
        %2639 = vmatprep.subr.mxu0 0.0
        %2640 = vmatpush1.msra.mxu0 %v2623
        %2641 = vmatprep.subr.mxu0 0.0
        %2642 = vmatpush1.msra.mxu0 %v2624
        %2643 = vmatprep.subr.mxu0 0.0
        %2644 = vmatpush1.msra.mxu0 %v2625
        %2645 = vmatprep.subr.mxu0 0.0
        %2646 = vmatpush1.msra.mxu0 %v2626
        %2647 = vmatprep.subr.mxu0 0.0
        %2648 = vmatpush1.msra.mxu0 %v2627
        %2649 = vmatprep.subr.mxu0 0.0
        %2650 = vmatpush1.msra.mxu0 %v2628
        %2651 = vmatprep.subr.mxu0 0.0
        %2652 = vmatpush1.msra.mxu0 %v2629
        %2653 = vmatprep.subr.mxu0 0.0
        %2654 = vmatpush1.msra.mxu0 %v2630
        %2655 = vmatprep.subr.mxu0 0.0
        %2656 = vmatpush1.msra.mxu0 %v2631
        %2657 = vmatprep.subr.mxu0 0.0
        %2658 = vmatpush1.msra.mxu0 %v2632
        %2659 = vmatprep.subr.mxu0 0.0
        %2660 = vmatpush1.msra.mxu0 %v2633
        %2661 = vmatprep.subr.mxu0 0.0
        %2662 = vmatpush1.msra.mxu0 %v2634
        %2663 = vmatprep.subr.mxu0 0.0
        %2664 = vmatpush1.msra.mxu0 %v2635
        %2665 = vmatprep.subr.mxu0 0.0
        %2666 = vmatpush1.msra.mxu0 %v2636
        %2667 = vmatprep.subr.mxu0 0.0
        %2668 = vmatpush1.msra.mxu0 %v2637
        %2669 = vmatprep.subr.mxu0 0.0
        %2670 = vmatpush1.msra.mxu0 %v2638
        %2671 = vmatprep.subr.mxu0 0.0
        %2672 = vmatpush1.msra.mxu0 0.0
        %2673 = vmatprep.subr.mxu0 0.0
        %2674 = vmatpush1.msra.mxu0 0.0
        %2675 = vmatprep.subr.mxu0 0.0
        %2676 = vmatpush1.msra.mxu0 0.0
        %2677 = vmatprep.subr.mxu0 0.0
        %2678 = vmatpush1.msra.mxu0 0.0
        %2679 = vmatprep.subr.mxu0 0.0
        %2680 = vmatpush1.msra.mxu0 0.0
        %2681 = vmatprep.subr.mxu0 0.0
        %2682 = vmatpush1.msra.mxu0 0.0
        %2683 = vmatprep.subr.mxu0 0.0
        %2684 = vmatpush1.msra.mxu0 0.0
        %2685 = vmatprep.subr.mxu0 0.0
        %2686 = vmatpush1.msra.mxu0 0.0
        %2687 = vmatprep.subr.mxu0 0.0
        %2688 = vmatpush1.msra.mxu0 0.0
        %2689 = vmatprep.subr.mxu0 0.0
        %2690 = vmatpush1.msra.mxu0 0.0
        %2691 = vmatprep.subr.mxu0 0.0
        %2692 = vmatpush1.msra.mxu0 0.0
        %2693 = vmatprep.subr.mxu0 0.0
        %2694 = vmatpush1.msra.mxu0 0.0
        %2695 = vmatprep.subr.mxu0 0.0
        %2696 = vmatpush1.msra.mxu0 0.0
        %2697 = vmatprep.subr.mxu0 0.0
        %2698 = vmatpush1.msra.mxu0 0.0
        %2699 = vmatprep.subr.mxu0 0.0
        %2700 = vmatpush1.msra.mxu0 0.0
        %2701 = vmatprep.subr.mxu0 0.0
        %2702 = vmatpush1.msra.mxu0 0.0
        %2703 = vmatprep.mubr.f32.mxu0 0.0
        %2704 = vmatmul.mubr.f32.gmra.mrb[0].mxu0 %v2622
        %v2705 = vpop.f32.mrb[0].mxu0
        %v2706 = vadd.f32 %v2612, %v2705
        %v2707 = vpop.f32.mrb[0].mxu0
        %2708 = vdwg.mxu0
        %v2709 = vmax.f32 %v2706, 0.0
        %v2710 = vld [vmem:[%s779] sm:$0xff]
        %vm2711 = vcmask 64512
        %v2713 = vsel %vm2711, %v2709, 0
        %2715 = vmatprep.subr.mxu0 0.0
        %2716 = vmatpush1.msra.mxu0 %v2710
        %2717 = vmatprep.subr.mxu0 0.0
        %2718 = vmatpush1.msra.mxu0 0.0
        %2719 = vmatprep.subr.mxu0 0.0
        %2720 = vmatpush1.msra.mxu0 0.0
        %2721 = vmatprep.subr.mxu0 0.0
        %2722 = vmatpush1.msra.mxu0 0.0
        %2723 = vmatprep.subr.mxu0 0.0
        %2724 = vmatpush1.msra.mxu0 0.0
        %2725 = vmatprep.subr.mxu0 0.0
        %2726 = vmatpush1.msra.mxu0 0.0
        %2727 = vmatprep.subr.mxu0 0.0
        %2728 = vmatpush1.msra.mxu0 0.0
        %2729 = vmatprep.subr.mxu0 0.0
        %2730 = vmatpush1.msra.mxu0 0.0
        %2731 = vmatprep.subr.mxu0 0.0
        %2732 = vmatpush1.msra.mxu0 0.0
        %2733 = vmatprep.subr.mxu0 0.0
        %2734 = vmatpush1.msra.mxu0 0.0
        %2735 = vmatprep.subr.mxu0 0.0
        %2736 = vmatpush1.msra.mxu0 0.0
        %2737 = vmatprep.subr.mxu0 0.0
        %2738 = vmatpush1.msra.mxu0 0.0
        %2739 = vmatprep.subr.mxu0 0.0
        %2740 = vmatpush1.msra.mxu0 0.0
        %2741 = vmatprep.subr.mxu0 0.0
        %2742 = vmatpush1.msra.mxu0 0.0
        %2743 = vmatprep.subr.mxu0 0.0
        %2744 = vmatpush1.msra.mxu0 0.0
        %2745 = vmatprep.subr.mxu0 0.0
        %2746 = vmatpush1.msra.mxu0 0.0
        %2747 = vmatprep.subr.mxu0 0.0
        %2748 = vmatpush1.msra.mxu0 0.0
        %2749 = vmatprep.subr.mxu0 0.0
        %2750 = vmatpush1.msra.mxu0 0.0
        %2751 = vmatprep.subr.mxu0 0.0
        %2752 = vmatpush1.msra.mxu0 0.0
        %2753 = vmatprep.subr.mxu0 0.0
        %2754 = vmatpush1.msra.mxu0 0.0
        %2755 = vmatprep.subr.mxu0 0.0
        %2756 = vmatpush1.msra.mxu0 0.0
        %2757 = vmatprep.subr.mxu0 0.0
        %2758 = vmatpush1.msra.mxu0 0.0
        %2759 = vmatprep.subr.mxu0 0.0
        %2760 = vmatpush1.msra.mxu0 0.0
        %2761 = vmatprep.subr.mxu0 0.0
        %2762 = vmatpush1.msra.mxu0 0.0
        %2763 = vmatprep.subr.mxu0 0.0
        %2764 = vmatpush1.msra.mxu0 0.0
        %2765 = vmatprep.subr.mxu0 0.0
        %2766 = vmatpush1.msra.mxu0 0.0
        %2767 = vmatprep.subr.mxu0 0.0
        %2768 = vmatpush1.msra.mxu0 0.0
        %2769 = vmatprep.subr.mxu0 0.0
        %2770 = vmatpush1.msra.mxu0 0.0
        %2771 = vmatprep.subr.mxu0 0.0
        %2772 = vmatpush1.msra.mxu0 0.0
        %2773 = vmatprep.subr.mxu0 0.0
        %2774 = vmatpush1.msra.mxu0 0.0
        %2775 = vmatprep.subr.mxu0 0.0
        %2776 = vmatpush1.msra.mxu0 0.0
        %2777 = vmatprep.subr.mxu0 0.0
        %2778 = vmatpush1.msra.mxu0 0.0
        %2779 = vmatprep.mubr.f32.mxu0 0.0
        %2780 = vmatmul.mubr.f32.gmra.mrb[0].mxu0 %v2713
        %v2781 = vpop.f32.mrb[0].mxu0
        %v2782 = vadd.f32 %v2613, %v2781
        %v2783 = vpop.f32.mrb[0].mxu0
        %2784 = vdwg.mxu0
        %v2785 = vsub.f32 0.0, %v2782
        %v2786 = vmul.f32 %v2785, 1.442695
        %v2787 = vpow.pop %v2786
        %v2788 = vadd.f32 %v2787, 1.0
        %v2789 = vrcp.pop %v2788
        %v2790 = vlaneseq
        %v2791 = vshrl.u32 %v2790, 7
        %v2792 = vsub.s32 0, %v2791
        %v2793 = vrot.slane %v2789, %v2792
        %v2794 = vmul.f32 %v2610, %v2793
        %v2795 = vmul.f32 %v2611, %v2793
        %v2796 = vadd.f32 %v823, %v2794
        %v2797 = vadd.f32 %v824, %v2795
        %v2798 = vld [vmem:[%s793 + $0x8] sm:$0x1]
        %v2799 = vld [vmem:[%s793 + $0x6] sm:$0x1]
        %v2800 = vadd.f32 %v2015, %v2016
        %v2801 = vrot.slane %v2800, 4
        %v2802 = vadd.f32 %v2800, %v2801
        %v2803 = vrot.slane %v2802, 2
        %v2804 = vadd.f32 %v2802, %v2803
        %v2805 = vrot.slane %v2804, 1
        %v2806 = vadd.f32 %v2804, %v2805
        %v2807 = vmul.f32 %v2806, %v2621
        %v2808 = vld [vmem:[%s784] sm:$0xff]
        %v2809 = vld [vmem:[%s784 + $0x8] sm:$0xff]
        %v2810 = vld [vmem:[%s784 + $0x10] sm:$0xff]
        %v2811 = vld [vmem:[%s784 + $0x18] sm:$0xff]
        %v2812 = vld [vmem:[%s784 + $0x20] sm:$0xff]
        %v2813 = vld [vmem:[%s784 + $0x28] sm:$0xff]
        %v2814 = vld [vmem:[%s784 + $0x30] sm:$0xff]
        %v2815 = vld [vmem:[%s784 + $0x38] sm:$0xff]
        %v2816 = vld [vmem:[%s784 + $0x40] sm:$0xff]
        %v2817 = vld [vmem:[%s784 + $0x48] sm:$0xff]
        %v2818 = vld [vmem:[%s784 + $0x50] sm:$0xff]
        %v2819 = vld [vmem:[%s784 + $0x58] sm:$0xff]
        %v2820 = vld [vmem:[%s784 + $0x60] sm:$0xff]
        %v2821 = vld [vmem:[%s784 + $0x68] sm:$0xff]
        %v2822 = vld [vmem:[%s784 + $0x70] sm:$0xff]
        %v2823 = vld [vmem:[%s784 + $0x78] sm:$0xff]
        %2824 = vmatprep.subr.mxu0 0.0
        %2825 = vmatpush1.msra.mxu0 %v2808
        %2826 = vmatprep.subr.mxu0 0.0
        %2827 = vmatpush1.msra.mxu0 %v2809
        %2828 = vmatprep.subr.mxu0 0.0
        %2829 = vmatpush1.msra.mxu0 %v2810
        %2830 = vmatprep.subr.mxu0 0.0
        %2831 = vmatpush1.msra.mxu0 %v2811
        %2832 = vmatprep.subr.mxu0 0.0
        %2833 = vmatpush1.msra.mxu0 %v2812
        %2834 = vmatprep.subr.mxu0 0.0
        %2835 = vmatpush1.msra.mxu0 %v2813
        %2836 = vmatprep.subr.mxu0 0.0
        %2837 = vmatpush1.msra.mxu0 %v2814
        %2838 = vmatprep.subr.mxu0 0.0
        %2839 = vmatpush1.msra.mxu0 %v2815
        %2840 = vmatprep.subr.mxu0 0.0
        %2841 = vmatpush1.msra.mxu0 %v2816
        %2842 = vmatprep.subr.mxu0 0.0
        %2843 = vmatpush1.msra.mxu0 %v2817
        %2844 = vmatprep.subr.mxu0 0.0
        %2845 = vmatpush1.msra.mxu0 %v2818
        %2846 = vmatprep.subr.mxu0 0.0
        %2847 = vmatpush1.msra.mxu0 %v2819
        %2848 = vmatprep.subr.mxu0 0.0
        %2849 = vmatpush1.msra.mxu0 %v2820
        %2850 = vmatprep.subr.mxu0 0.0
        %2851 = vmatpush1.msra.mxu0 %v2821
        %2852 = vmatprep.subr.mxu0 0.0
        %2853 = vmatpush1.msra.mxu0 %v2822
        %2854 = vmatprep.subr.mxu0 0.0
        %2855 = vmatpush1.msra.mxu0 %v2823
        %2856 = vmatprep.subr.mxu0 0.0
        %2857 = vmatpush1.msra.mxu0 0.0
        %2858 = vmatprep.subr.mxu0 0.0
        %2859 = vmatpush1.msra.mxu0 0.0
        %2860 = vmatprep.subr.mxu0 0.0
        %2861 = vmatpush1.msra.mxu0 0.0
        %2862 = vmatprep.subr.mxu0 0.0
        %2863 = vmatpush1.msra.mxu0 0.0
        %2864 = vmatprep.subr.mxu0 0.0
        %2865 = vmatpush1.msra.mxu0 0.0
        %2866 = vmatprep.subr.mxu0 0.0
        %2867 = vmatpush1.msra.mxu0 0.0
        %2868 = vmatprep.subr.mxu0 0.0
        %2869 = vmatpush1.msra.mxu0 0.0
        %2870 = vmatprep.subr.mxu0 0.0
        %2871 = vmatpush1.msra.mxu0 0.0
        %2872 = vmatprep.subr.mxu0 0.0
        %2873 = vmatpush1.msra.mxu0 0.0
        %2874 = vmatprep.subr.mxu0 0.0
        %2875 = vmatpush1.msra.mxu0 0.0
        %2876 = vmatprep.subr.mxu0 0.0
        %2877 = vmatpush1.msra.mxu0 0.0
        %2878 = vmatprep.subr.mxu0 0.0
        %2879 = vmatpush1.msra.mxu0 0.0
        %2880 = vmatprep.subr.mxu0 0.0
        %2881 = vmatpush1.msra.mxu0 0.0
        %2882 = vmatprep.subr.mxu0 0.0
        %2883 = vmatpush1.msra.mxu0 0.0
        %2884 = vmatprep.subr.mxu0 0.0
        %2885 = vmatpush1.msra.mxu0 0.0
        %2886 = vmatprep.subr.mxu0 0.0
        %2887 = vmatpush1.msra.mxu0 0.0
        %2888 = vmatprep.mubr.f32.mxu0 0.0
        %2889 = vmatmul.mubr.f32.gmra.mrb[0].mxu0 %v2807
        %v2890 = vpop.f32.mrb[0].mxu0
        %v2891 = vadd.f32 %v2798, %v2890
        %v2892 = vpop.f32.mrb[0].mxu0
        %2893 = vdwg.mxu0
        %v2894 = vmax.f32 %v2891, 0.0
        %v2895 = vld [vmem:[%s788] sm:$0xff]
        %v2897 = vsel %vm2711, %v2894, 0
        %2899 = vmatprep.subr.mxu0 0.0
        %2900 = vmatpush1.msra.mxu0 %v2895
        %2901 = vmatprep.subr.mxu0 0.0
        %2902 = vmatpush1.msra.mxu0 0.0
        %2903 = vmatprep.subr.mxu0 0.0
        %2904 = vmatpush1.msra.mxu0 0.0
        %2905 = vmatprep.subr.mxu0 0.0
        %2906 = vmatpush1.msra.mxu0 0.0
        %2907 = vmatprep.subr.mxu0 0.0
        %2908 = vmatpush1.msra.mxu0 0.0
        %2909 = vmatprep.subr.mxu0 0.0
        %2910 = vmatpush1.msra.mxu0 0.0
        %2911 = vmatprep.subr.mxu0 0.0
        %2912 = vmatpush1.msra.mxu0 0.0
        %2913 = vmatprep.subr.mxu0 0.0
        %2914 = vmatpush1.msra.mxu0 0.0
        %2915 = vmatprep.subr.mxu0 0.0
        %2916 = vmatpush1.msra.mxu0 0.0
        %2917 = vmatprep.subr.mxu0 0.0
        %2918 = vmatpush1.msra.mxu0 0.0
        %2919 = vmatprep.subr.mxu0 0.0
        %2920 = vmatpush1.msra.mxu0 0.0
        %2921 = vmatprep.subr.mxu0 0.0
        %2922 = vmatpush1.msra.mxu0 0.0
        %2923 = vmatprep.subr.mxu0 0.0
        %2924 = vmatpush1.msra.mxu0 0.0
        %2925 = vmatprep.subr.mxu0 0.0
        %2926 = vmatpush1.msra.mxu0 0.0
        %2927 = vmatprep.subr.mxu0 0.0
        %2928 = vmatpush1.msra.mxu0 0.0
        %2929 = vmatprep.subr.mxu0 0.0
        %2930 = vmatpush1.msra.mxu0 0.0
        %2931 = vmatprep.subr.mxu0 0.0
        %2932 = vmatpush1.msra.mxu0 0.0
        %2933 = vmatprep.subr.mxu0 0.0
        %2934 = vmatpush1.msra.mxu0 0.0
        %2935 = vmatprep.subr.mxu0 0.0
        %2936 = vmatpush1.msra.mxu0 0.0
        %2937 = vmatprep.subr.mxu0 0.0
        %2938 = vmatpush1.msra.mxu0 0.0
        %2939 = vmatprep.subr.mxu0 0.0
        %2940 = vmatpush1.msra.mxu0 0.0
        %2941 = vmatprep.subr.mxu0 0.0
        %2942 = vmatpush1.msra.mxu0 0.0
        %2943 = vmatprep.subr.mxu0 0.0
        %2944 = vmatpush1.msra.mxu0 0.0
        %2945 = vmatprep.subr.mxu0 0.0
        %2946 = vmatpush1.msra.mxu0 0.0
        %2947 = vmatprep.subr.mxu0 0.0
        %2948 = vmatpush1.msra.mxu0 0.0
        %2949 = vmatprep.subr.mxu0 0.0
        %2950 = vmatpush1.msra.mxu0 0.0
        %2951 = vmatprep.subr.mxu0 0.0
        %2952 = vmatpush1.msra.mxu0 0.0
        %2953 = vmatprep.subr.mxu0 0.0
        %2954 = vmatpush1.msra.mxu0 0.0
        %2955 = vmatprep.subr.mxu0 0.0
        %2956 = vmatpush1.msra.mxu0 0.0
        %2957 = vmatprep.subr.mxu0 0.0
        %2958 = vmatpush1.msra.mxu0 0.0
        %2959 = vmatprep.subr.mxu0 0.0
        %2960 = vmatpush1.msra.mxu0 0.0
        %2961 = vmatprep.subr.mxu0 0.0
        %2962 = vmatpush1.msra.mxu0 0.0
        %2963 = vmatprep.mubr.f32.mxu0 0.0
        %2964 = vmatmul.mubr.f32.gmra.mrb[0].mxu0 %v2897
        %v2965 = vpop.f32.mrb[0].mxu0
        %v2966 = vadd.f32 %v2799, %v2965
        %v2967 = vpop.f32.mrb[0].mxu0
        %2968 = vdwg.mxu0
        %v2969 = vsub.f32 0.0, %v2966
        %v2970 = vmul.f32 %v2969, 1.442695
        %v2971 = vpow.pop %v2970
        %v2972 = vadd.f32 %v2971, 1.0
        %v2973 = vrcp.pop %v2972
        %v2974 = vlaneseq
        %v2975 = vshrl.u32 %v2974, 7
        %v2976 = vsub.s32 0, %v2975
        %v2977 = vrot.slane %v2973, %v2976
        %v2978 = vmul.f32 %v2015, %v2977
        %v2979 = vmul.f32 %v2016, %v2977
        %v2980 = vadd.f32 %v825, %v2978
        %v2981 = vadd.f32 %v826, %v2979
        %2982 = vst [vmem:[#allocation2] sm:$0xff] %v2796
        %2983 = vst [vmem:[#allocation2 + $0x8] sm:$0xff] %v2797
        %2984 = vst [vmem:[#allocation3] sm:$0xff] %v2980
        %2985 = vst [vmem:[#allocation3 + $0x8] sm:$0xff] %v2981
        %p2986 = scmp.eq.s32.totalorder %s40, 1
        // Predicated region
        $region93: #{pallas_fwd.1} parent=71 // pred_check
          %p2987 = pneg %p2986
        $region94: #{pallas_fwd.1} parent=71 // pred_check_branch
          %2989 = sbr.rel (%p2987) target = $region96
        $region95: #{pallas_fwd.1} parent=71 // pred_region
          %v2990 = vadd.f32 %v2796, %v2796
          %v2991 = vadd.f32 %v2797, %v2797
          %2992 = vst [vmem:[%s798] sm:$0xff] %v2990
          %2993 = vst [vmem:[%s798 + $0x8] sm:$0xff] %v2991
          %v2994 = vadd.f32 %v2980, %v2980
          %v2995 = vadd.f32 %v2981, %v2981
          %2996 = vst [vmem:[%s803] sm:$0xff] %v2994
          %2997 = vst [vmem:[%s803 + $0x8] sm:$0xff] %v2995
        $region96: #{pallas_fwd.1} parent=71 // pred_fallthru
          _
        %p2998 = scmp.lt.s32.totalorder %s39, 1
        %s2999 = scalar_select %p2998, %s39, 1
        %s3000 = smul.addr %s2999, 2
        %s3001 = smul.addr %s3000, 8
        %s3002 = scalar_lea.vmem %s13, %s3001
        %p3003 = scmp.lt.s32.totalorder %s39, 1
        %s3004 = scalar_select %p3003, %s39, 1
        %s3005 = smul.addr %s3004, 2
        %s3006 = smul.addr %s3005, 8
        %s3007 = scalar_lea.vmem %s14, %s3006
        // Predicated region
        $region97: #{pallas_fwd.1} parent=71 // pred_check
          %p3008 = pneg %p403
        $region98: #{pallas_fwd.1} parent=71 // pred_check_branch
          %3010 = sbr.rel (%p3008) target = $region100
        $region99: #{pallas_fwd.1} parent=71 // pred_region
          _
        $region100: #{pallas_fwd.1} parent=71 // pred_fallthru
          _
        // Predicated region
        $region101: #{pallas_fwd.1} parent=71 // pred_check
          %p3011 = pneg %p429
        $region102: #{pallas_fwd.1} parent=71 // pred_check_branch
          %3013 = sbr.rel (%p3011) target = $region104
        $region103: #{pallas_fwd.1} parent=71 // pred_region
          _
        $region104: #{pallas_fwd.1} parent=71 // pred_fallthru
          _
      $region72: #{pallas_fwd.1} parent=5 // pred_fallthru
        _
      %p3014 = scmp.le.s32.totalorder 2, %s30
      // Predicated region
      $region105: #{pallas_fwd.1} parent=5 // pred_check
        %p3015 = pneg %p3014
      $region106: #{pallas_fwd.1} parent=5 // pred_check_branch
        %3017 = sbr.rel (%p3015) target = $region108
      $region107: #{pallas_fwd.1} parent=5 // pred_region
        %s3018 = ssub.s32 %s30, 2
        // Predicated region
        $region109: #{pallas_fwd.1} parent=107 // pred_check
          %p3019 = pneg %p409
        $region110: #{pallas_fwd.1} parent=107 // pred_check_branch
          %3021 = sbr.rel (%p3019) target = $region112
        $region111: #{pallas_fwd.1} parent=107 // pred_region
          %p3022 = scmp.lt.s32.totalorder %s41, 1
          %s3023 = scalar_select %p3022, %s41, 1
          %s3024 = smul.addr %s3023, 2
          %s3025 = smul.addr %s3024, 8
          %s3026 = scalar_lea.vmem %s13, %s3025
        $region112: #{pallas_fwd.1} parent=107 // pred_fallthru
          _
        // Predicated region
        $region113: #{pallas_fwd.1} parent=107 // pred_check
          %p3027 = pneg %p435
        $region114: #{pallas_fwd.1} parent=107 // pred_check_branch
          %3029 = sbr.rel (%p3027) target = $region116
        $region115: #{pallas_fwd.1} parent=107 // pred_region
          %p3030 = scmp.lt.s32.totalorder %s41, 1
          %s3031 = scalar_select %p3030, %s41, 1
          %s3032 = smul.addr %s3031, 2
          %s3033 = smul.addr %s3032, 8
          %s3034 = scalar_lea.vmem %s14, %s3033
        $region116: #{pallas_fwd.1} parent=107 // pred_fallthru
          _
      $region108: #{pallas_fwd.1} parent=5 // pred_fallthru
        _
    $region6: #{pallas_fwd.1} parent=1 // loop_footer
      %s34 = sadd.s32 1, %s30
    $region7: #{pallas_fwd.1} parent=1 // loop_footer_branch
      %29 = sbr.rel target = $region3
    $region8: #{pallas_fwd.1} parent=1 // loop_exit
      _
    %3035 = vsyncpa [#allocation5], 1
    %s3036 = scalar_lea.sflag [#allocation5], 1
    %3037 = vsyncpa %s3036, 1
    %3038 = vsyncpa [#allocation7], 1
    %s3039 = scalar_lea.sflag [#allocation7], 1
    %3040 = vsyncpa %s3039, 1
    %3041 = vsyncpa [#allocation10], 1
    %s3042 = scalar_lea.sflag [#allocation10], 1
    %3043 = vsyncpa %s3042, 1

</llo_original>
